<compile_context>
chip_gen: v5e
topology: v5e:2x2
jax: 0.10.0
libtpu: 0.0.40
codegen_flags: <defaults>
</compile_context>

<pallas_src>
import math

import jax
import jax.numpy as jnp
from jax.experimental import pallas as pl
from jax.experimental.pallas import tpu as pltpu


_LANE = 128                       # lane width: feature dims padded to this
_ROW_PAD = 512                    # node dim padded so 512-wide tiles always divide
_VMEM_LIMIT = 48 * 1024 * 1024    # safe on v7x (64 MiB/TC), generous on v5e/v6e


def _round_up(x, m):
    return ((x + m - 1) // m) * m


# ---------------------------------------------------------------------------
# Kernel 1: dense linear (row-tiled)   out = x @ W^T + b   (bf16 in, bf16 out)
# ---------------------------------------------------------------------------
def _linear_kernel(x_ref, w_ref, b_ref, o_ref):
    # x_ref: (tm, f_in) bf16   w_ref: (f_in, f_out) bf16 (resident)
    # b_ref: (1, f_out) f32    o_ref: (tm, f_out) bf16
    acc = jnp.dot(x_ref[...], w_ref[...], preferred_element_type=jnp.float32)
    o_ref[...] = (acc + b_ref[...]).astype(o_ref.dtype)


def _linear(x, w_t, b2d, *, tm):
    n, f_in = x.shape
    f_out = w_t.shape[1]

    # Guard the untiled contraction (large-feature datasets): shrink the row
    # tile so the double-buffered x tile + resident W stay well under VMEM.
    # TODO(synk): for f_in >~ 8K a k-axis with an accumulator (as in _spmm)
    # would be better than shrinking tm.
    while tm > 128 and (2 * tm * f_in + f_in * f_out) * 2 > 24 * 1024 * 1024:
        tm //= 2

    return pl.pallas_call(
        _linear_kernel,
        out_shape=jax.ShapeDtypeStruct((n, f_out), jnp.bfloat16),
        grid_spec=pltpu.PrefetchScalarGridSpec(
            num_scalar_prefetch=0,
            grid=(n // tm,),
            in_specs=[
                pl.BlockSpec((tm, f_in), lambda i: (i, 0)),
                pl.BlockSpec((f_in, f_out), lambda i: (0, 0)),  # W resident
                pl.BlockSpec((1, f_out), lambda i: (0, 0)),
            ],
            out_specs=pl.BlockSpec((tm, f_out), lambda i: (i, 0)),
        ),
        compiler_params=pltpu.CompilerParams(
            dimension_semantics=("parallel",),
            vmem_limit_bytes=_VMEM_LIMIT,
        ),
    )(x, w_t, b2d)


# ---------------------------------------------------------------------------
# Kernel 2: spmm (dense adj) with optional fused ReLU:  out = relu?(adj @ s)
#   adj streamed tile-by-tile (bf16); support fully VMEM-resident (bf16);
#   accumulation in f32 (scratch if output is bf16, directly in o_ref if f32).
# ---------------------------------------------------------------------------
def _spmm_body(adj_ref, s_ref, o_ref, acc_ref, *, tk, apply_relu):
    k = pl.program_id(1)

    @pl.when(k == 0)
    def _():
        acc_ref[...] = jnp.zeros_like(acc_ref)

    kk = pl.multiple_of(k * tk, tk)
    acc_ref[...] += jnp.dot(
        adj_ref[...], s_ref[pl.ds(kk, tk), :], preferred_element_type=jnp.float32
    )

    @pl.when(k == pl.num_programs(1) - 1)
    def _():
        r = acc_ref[...]
        if apply_relu:
            r = jnp.maximum(r, 0.0)
        o_ref[...] = r.astype(o_ref.dtype)


def _spmm(adj, support, *, tm, tk, apply_relu, out_dtype):
    n = adj.shape[0]
    f_out = support.shape[1]

    use_scratch = jnp.dtype(out_dtype) != jnp.dtype(jnp.float32)
    if use_scratch:
        # bf16 output: accumulate in an f32 scratch, cast in the epilogue.
        def kernel(adj_ref, s_ref, o_ref, acc_ref):
            _spmm_body(adj_ref, s_ref, o_ref, acc_ref, tk=tk, apply_relu=apply_relu)

        scratch_shapes = [pltpu.VMEM((tm, f_out), jnp.float32)]
    else:
        # f32 output is resident across the reduction axis: accumulate in place.
        def kernel(adj_ref, s_ref, o_ref):
            _spmm_body(adj_ref, s_ref, o_ref, o_ref, tk=tk, apply_relu=apply_relu)

        scratch_shapes = []

    return pl.pallas_call(
        kernel,
        out_shape=jax.ShapeDtypeStruct((n, f_out), out_dtype),
        grid_spec=pltpu.PrefetchScalarGridSpec(
            num_scalar_prefetch=0,
            grid=(n // tm, n // tk),                       # reduction axis last
            in_specs=[
                pl.BlockSpec((tm, tk), lambda i, k: (i, k)),
                pl.BlockSpec((n, f_out), lambda i, k: (0, 0)),  # resident support
            ],
            out_specs=pl.BlockSpec((tm, f_out), lambda i, k: (i, 0)),
            scratch_shapes=scratch_shapes,
        ),
        compiler_params=pltpu.CompilerParams(
            dimension_semantics=("parallel", "arbitrary"),
            vmem_limit_bytes=_VMEM_LIMIT,
        ),
    )(adj, support)


# ---------------------------------------------------------------------------
# Padding / casting (done once, outside the jitted forward)
# ---------------------------------------------------------------------------
def pad_and_cast_inputs(x, adj, w1, b1, w2, b2):
    """Zero-pad to 512/128 multiples and cast the streamed tensors to bf16."""
    n, nfeat = x.shape
    nhid = w1.shape[0]
    nclass = w2.shape[0]

    n_p = _round_up(n, _ROW_PAD)
    fin_p = _round_up(nfeat, _LANE)
    h_p = _round_up(nhid, _LANE)
    c_p = _round_up(nclass, _LANE)

    bf16, f32 = jnp.bfloat16, jnp.float32
    x_p = jnp.zeros((n_p, fin_p), bf16).at[:n, :nfeat].set(x.astype(bf16))
    adj_p = jnp.zeros((n_p, n_p), bf16).at[:n, :n].set(adj.astype(bf16))
    w1t_p = jnp.zeros((fin_p, h_p), bf16).at[:nfeat, :nhid].set(w1.T.astype(bf16))
    b1_p = jnp.zeros((1, h_p), f32).at[0, :nhid].set(b1.astype(f32))
    w2t_p = jnp.zeros((h_p, c_p), bf16).at[:nhid, :nclass].set(w2.T.astype(bf16))
    b2_p = jnp.zeros((1, c_p), f32).at[0, :nclass].set(b2.astype(f32))
    return x_p, adj_p, w1t_p, b1_p, w2t_p, b2_p


def _select_tiles(n_p):
    # n_p is a multiple of 512 by construction, so tm=512 always divides.
    tm = min(512, n_p)
    tk = 1024 if n_p % 1024 == 0 else 512
    return tm, tk


# ---------------------------------------------------------------------------
# Full GCN forward (padded, jitted)
# ---------------------------------------------------------------------------
@jax.jit
def gcn_forward_padded(x_p, adj_p, w1t_p, b1_p, w2t_p, b2_p):
    n_p = adj_p.shape[0]
    tm, tk = _select_tiles(n_p)

    s1 = _linear(x_p, w1t_p, b1_p, tm=tm)                                   # x @ W1^T + b1
    h = _spmm(adj_p, s1, tm=tm, tk=tk, apply_relu=True,                     # relu(adj @ s1)
              out_dtype=jnp.bfloat16)
    # TODO(synk): F.dropout is identity at inference; training-mode dropout would
    # use pltpu.prng_seed / prng_random_bits fused into the spmm epilogue.
    s2 = _linear(h, w2t_p, b2_p, tm=tm)                                     # h @ W2^T + b2
    out = _spmm(adj_p, s2, tm=tm, tk=tk, apply_relu=False,                  # adj @ s2
                out_dtype=jnp.float32)
    return out


def gcn_forward(x, adj, w1, b1, w2, b2):
    """x:[N,nfeat], adj:[N,N] dense, w1:[nhid,nfeat], b1:[nhid], w2:[nclass,nhid], b2:[nclass]."""
    n = x.shape[0]
    nclass = w2.shape[0]
    padded = pad_and_cast_inputs(x, adj, w1, b1, w2, b2)
    out_p = gcn_forward_padded(*padded)
    return out_p[:n, :nclass]


# ---------------------------------------------------------------------------
# References
# ---------------------------------------------------------------------------
def reference_forward_f32(x, adj, w1, b1, w2, b2):
    h = jnp.maximum(adj @ (x @ w1.T + b1), 0.0)
    return adj @ (h @ w2.T + b2)


def reference_forward_bf16(x, adj, w1, b1, w2, b2):
    """Emulates the kernel numerics: bf16 storage, f32 accumulation."""
    def bf(a):
        return a.astype(jnp.bfloat16).astype(jnp.float32)

    xb, adjb, w1b, w2b = bf(x), bf(adj), bf(w1), bf(w2)
    s1 = bf(xb @ w1b.T + b1)
    hh = bf(jnp.maximum(adjb @ s1, 0.0))
    s2 = bf(hh @ w2b.T + b2)
    return adjb @ s2


if __name__ == "__main__":
    # Small shapes consistent with the module: N nodes, nfeat -> nhid -> nclass.
    N, nfeat, nhid, nclass = 16, 32, 16, 7

    key = jax.random.PRNGKey(0)
    kx, ka, kw1, kb1, kw2, kb2 = jax.random.split(key, 6)

    x = jax.random.normal(kx, (N, nfeat), dtype=jnp.float32)

    # Dense, row-normalized random adjacency (stand-in for the sparse adj of torch.spmm).
    a = (jax.random.uniform(ka, (N, N)) > 0.6).astype(jnp.float32)
    a = a + jnp.eye(N, dtype=jnp.float32)
    adj = a / jnp.sum(a, axis=1, keepdims=True)

    # Deterministic GraphConvolution-style init: U(-1/sqrt(in_features), +1/sqrt(in_features)).
    std1 = 1.0 / math.sqrt(nfeat)
    w1 = jax.random.uniform(kw1, (nhid, nfeat), minval=-std1, maxval=std1, dtype=jnp.float32)
    b1 = jax.random.uniform(kb1, (nhid,), minval=-std1, maxval=std1, dtype=jnp.float32)
    std2 = 1.0 / math.sqrt(nhid)
    w2 = jax.random.uniform(kw2, (nclass, nhid), minval=-std2, maxval=std2, dtype=jnp.float32)
    b2 = jax.random.uniform(kb2, (nclass,), minval=-std2, maxval=std2, dtype=jnp.float32)

    out = jax.block_until_ready(gcn_forward(x, adj, w1, b1, w2, b2))
    assert out.shape == (N, nclass)

    # Tight check vs a reference that emulates the bf16-storage / f32-accumulation
    # numerics, plus a looser sanity check vs the pure f32 reference.
    ref_bf16 = reference_forward_bf16(x, adj, w1, b1, w2, b2)
    ref_f32 = reference_forward_f32(x, adj, w1, b1, w2, b2)
    assert jnp.allclose(out, ref_bf16, atol=1e-2, rtol=1e-2), "mismatch vs bf16-emulated reference"
    assert jnp.allclose(out, ref_f32, atol=5e-2, rtol=5e-2), "mismatch vs f32 reference"

    print("KERNEL_OK")
</pallas_src>

<mosaic_0001>
module attributes {stable_mosaic.version = 11 : i64} {
  func.func @_linear_kernel(%arg0: i32, %arg1: memref<512x128xbf16, #tpu.memory_space<vmem>>, %arg2: memref<128x128xbf16, #tpu.memory_space<vmem>>, %arg3: memref<1x128xf32, #tpu.memory_space<vmem>>, %arg4: memref<512x128xbf16, #tpu.memory_space<vmem>>) attributes {dimension_semantics = [#tpu.dimension_semantics<parallel>], iteration_bounds = array<i64: 1>, scalar_prefetch = 0 : i64, scratch_operands = 0 : i64, tpu.core_type = #tpu.core_type<tc>, window_params = [{transform_indices = @transform_0, window_bounds = array<i64: 512, 128>}, {pipeline_mode = #tpu.pipeline_mode<synchronous>, transform_indices = @transform_1, window_bounds = array<i64: 128, 128>}, {pipeline_mode = #tpu.pipeline_mode<synchronous>, transform_indices = @transform_2, window_bounds = array<i64: 1, 128>}, {transform_indices = @transform_3, window_bounds = array<i64: 512, 128>}]} {
    %c0 = arith.constant 0 : index
    %c0_0 = arith.constant 0 : index
    %0 = vector.load %arg1[%c0, %c0_0] : memref<512x128xbf16, #tpu.memory_space<vmem>>, vector<512x128xbf16>
    %c0_1 = arith.constant 0 : index
    %c0_2 = arith.constant 0 : index
    %1 = vector.load %arg2[%c0_1, %c0_2] : memref<128x128xbf16, #tpu.memory_space<vmem>>, vector<128x128xbf16>
    %cst = arith.constant dense<0.000000e+00> : vector<512x128xf32>
    %2 = tpu.matmul %0, %1, %cst {dimension_numbers = #tpu.dot_dimension_numbers<[1], [0], [0], [1], [0, 0, 1, 1], [], []>} : vector<512x128xbf16>, vector<128x128xbf16>, vector<512x128xf32> -> vector<512x128xf32>
    %c0_3 = arith.constant 0 : index
    %c0_4 = arith.constant 0 : index
    %3 = vector.load %arg3[%c0_3, %c0_4] : memref<1x128xf32, #tpu.memory_space<vmem>>, vector<1x128xf32>
    %4 = vector.broadcast %3 : vector<1x128xf32> to vector<512x128xf32>
    %5 = arith.addf %2, %4 : vector<512x128xf32>
    %6 = arith.truncf %5 : vector<512x128xf32> to vector<512x128xbf16>
    %c0_5 = arith.constant 0 : index
    %c0_6 = arith.constant 0 : index
    %7 = vector.load %arg4[%c0_5, %c0_6] : memref<512x128xbf16, #tpu.memory_space<vmem>>, vector<512x128xbf16>
    tpu.vector_store %arg4[%c0_5, %c0_6], %6 {strides = array<i32>} : memref<512x128xbf16, #tpu.memory_space<vmem>>, vector<512x128xbf16>,
    return
  }
  func.func @transform_0(%arg0: i32) -> (i32, i32) {
    %c0_i32 = arith.constant 0 : i32
    %c0_i32_0 = arith.constant 0 : i32
    return %arg0, %c0_i32 : i32, i32
  }
  func.func @transform_1(%arg0: i32) -> (i32, i32) {
    %c0_i32 = arith.constant 0 : i32
    %c0_i32_0 = arith.constant 0 : i32
    %c0_i32_1 = arith.constant 0 : i32
    return %c0_i32, %c0_i32_0 : i32, i32
  }
  func.func @transform_2(%arg0: i32) -> (i32, i32) {
    %c0_i32 = arith.constant 0 : i32
    %c0_i32_0 = arith.constant 0 : i32
    %c0_i32_1 = arith.constant 0 : i32
    return %c0_i32, %c0_i32_0 : i32, i32
  }
  func.func @transform_3(%arg0: i32) -> (i32, i32) {
    %c0_i32 = arith.constant 0 : i32
    %c0_i32_0 = arith.constant 0 : i32
    return %arg0, %c0_i32 : i32, i32
  }
}

module attributes {stable_mosaic.version = 11 : i64} {
  func.func @kernel(%arg0: i32, %arg1: i32, %arg2: memref<512x512xbf16, #tpu.memory_space<vmem>>, %arg3: memref<512x128xbf16, #tpu.memory_space<vmem>>, %arg4: memref<512x128xbf16, #tpu.memory_space<vmem>>, %arg5: memref<512x128xf32, #tpu.memory_space<vmem>>) attributes {dimension_semantics = [#tpu.dimension_semantics<parallel>, #tpu.dimension_semantics<arbitrary>], iteration_bounds = array<i64: 1, 1>, scalar_prefetch = 0 : i64, scratch_operands = 1 : i64, tpu.core_type = #tpu.core_type<tc>, window_params = [{transform_indices = @transform_0, window_bounds = array<i64: 512, 512>}, {pipeline_mode = #tpu.pipeline_mode<synchronous>, transform_indices = @transform_1, window_bounds = array<i64: 512, 128>}, {transform_indices = @transform_2, window_bounds = array<i64: 512, 128>}]} {
    %c0_i32 = arith.constant 0 : i32
    %0 = arith.cmpi eq, %arg1, %c0_i32 : i32
    %1 = arith.extui %0 : i1 to i32
    %c0_i32_0 = arith.constant 0 : i32
    %2 = arith.cmpi ne, %1, %c0_i32_0 : i32
    scf.if %2 {
      %cst_9 = arith.constant 0.000000e+00 : f32
      %15 = vector.broadcast %cst_9 : f32 to vector<512x128xf32>
      %c0_10 = arith.constant 0 : index
      %c0_11 = arith.constant 0 : index
      %16 = vector.load %arg5[%c0_10, %c0_11] : memref<512x128xf32, #tpu.memory_space<vmem>>, vector<512x128xf32>
      tpu.vector_store %arg5[%c0_10, %c0_11], %15 {strides = array<i32>} : memref<512x128xf32, #tpu.memory_space<vmem>>, vector<512x128xf32>,
    } else {
    }
    %c512_i32 = arith.constant 512 : i32
    %3 = arith.muli %arg1, %c512_i32 : i32
    %4 = tpu.assume_multiple %3, 512 : i32
    %c0 = arith.constant 0 : index
    %c0_1 = arith.constant 0 : index
    %5 = vector.load %arg5[%c0, %c0_1] : memref<512x128xf32, #tpu.memory_space<vmem>>, vector<512x128xf32>
    %c0_2 = arith.constant 0 : index
    %c0_3 = arith.constant 0 : index
    %6 = vector.load %arg2[%c0_2, %c0_3] : memref<512x512xbf16, #tpu.memory_space<vmem>>, vector<512x512xbf16>
    %7 = arith.index_cast %4 : i32 to index
    %c0_4 = arith.constant 0 : index
    %8 = vector.load %arg3[%7, %c0_4] : memref<512x128xbf16, #tpu.memory_space<vmem>>, vector<512x128xbf16>
    %cst = arith.constant dense<0.000000e+00> : vector<512x128xf32>
    %9 = tpu.matmul %6, %8, %cst {dimension_numbers = #tpu.dot_dimension_numbers<[1], [0], [0], [1], [0, 0, 1, 1], [], []>} : vector<512x512xbf16>, vector<512x128xbf16>, vector<512x128xf32> -> vector<512x128xf32>
    %10 = arith.addf %5, %9 : vector<512x128xf32>
    %c0_5 = arith.constant 0 : index
    %c0_6 = arith.constant 0 : index
    %11 = vector.load %arg5[%c0_5, %c0_6] : memref<512x128xf32, #tpu.memory_space<vmem>>, vector<512x128xf32>
    tpu.vector_store %arg5[%c0_5, %c0_6], %10 {strides = array<i32>} : memref<512x128xf32, #tpu.memory_space<vmem>>, vector<512x128xf32>,
    %c0_i32_7 = arith.constant 0 : i32
    %12 = arith.cmpi eq, %arg1, %c0_i32_7 : i32
    %13 = arith.extui %12 : i1 to i32
    %c0_i32_8 = arith.constant 0 : i32
    %14 = arith.cmpi ne, %13, %c0_i32_8 : i32
    scf.if %14 {
      %c0_9 = arith.constant 0 : index
      %c0_10 = arith.constant 0 : index
      %15 = vector.load %arg5[%c0_9, %c0_10] : memref<512x128xf32, #tpu.memory_space<vmem>>, vector<512x128xf32>
      %cst_11 = arith.constant 0.000000e+00 : f32
      %16 = vector.broadcast %cst_11 : f32 to vector<512x128xf32>
      %17 = arith.maximumf %15, %16 : vector<512x128xf32>
      %18 = arith.truncf %17 : vector<512x128xf32> to vector<512x128xbf16>
      %c0_12 = arith.constant 0 : index
      %c0_13 = arith.constant 0 : index
      %19 = vector.load %arg4[%c0_12, %c0_13] : memref<512x128xbf16, #tpu.memory_space<vmem>>, vector<512x128xbf16>
      tpu.vector_store %arg4[%c0_12, %c0_13], %18 {strides = array<i32>} : memref<512x128xbf16, #tpu.memory_space<vmem>>, vector<512x128xbf16>,
    } else {
    }
    return
  }
  func.func @transform_0(%arg0: i32, %arg1: i32) -> (i32, i32) {
    %c0_i32 = arith.constant 0 : i32
    return %arg0, %arg1 : i32, i32
  }
  func.func @transform_1(%arg0: i32, %arg1: i32) -> (i32, i32) {
    %c0_i32 = arith.constant 0 : i32
    %c0_i32_0 = arith.constant 0 : i32
    %c0_i32_1 = arith.constant 0 : i32
    return %c0_i32, %c0_i32_0 : i32, i32
  }
  func.func @transform_2(%arg0: i32, %arg1: i32) -> (i32, i32) {
    %c0_i32 = arith.constant 0 : i32
    %c0_i32_0 = arith.constant 0 : i32
    return %arg0, %c0_i32 : i32, i32
  }
}

module attributes {stable_mosaic.version = 11 : i64} {
  func.func @_linear_kernel(%arg0: i32, %arg1: memref<512x128xbf16, #tpu.memory_space<vmem>>, %arg2: memref<128x128xbf16, #tpu.memory_space<vmem>>, %arg3: memref<1x128xf32, #tpu.memory_space<vmem>>, %arg4: memref<512x128xbf16, #tpu.memory_space<vmem>>) attributes {dimension_semantics = [#tpu.dimension_semantics<parallel>], iteration_bounds = array<i64: 1>, scalar_prefetch = 0 : i64, scratch_operands = 0 : i64, tpu.core_type = #tpu.core_type<tc>, window_params = [{transform_indices = @transform_0, window_bounds = array<i64: 512, 128>}, {pipeline_mode = #tpu.pipeline_mode<synchronous>, transform_indices = @transform_1, window_bounds = array<i64: 128, 128>}, {pipeline_mode = #tpu.pipeline_mode<synchronous>, transform_indices = @transform_2, window_bounds = array<i64: 1, 128>}, {transform_indices = @transform_3, window_bounds = array<i64: 512, 128>}]} {
    %c0 = arith.constant 0 : index
    %c0_0 = arith.constant 0 : index
    %0 = vector.load %arg1[%c0, %c0_0] : memref<512x128xbf16, #tpu.memory_space<vmem>>, vector<512x128xbf16>
    %c0_1 = arith.constant 0 : index
    %c0_2 = arith.constant 0 : index
    %1 = vector.load %arg2[%c0_1, %c0_2] : memref<128x128xbf16, #tpu.memory_space<vmem>>, vector<128x128xbf16>
    %cst = arith.constant dense<0.000000e+00> : vector<512x128xf32>
    %2 = tpu.matmul %0, %1, %cst {dimension_numbers = #tpu.dot_dimension_numbers<[1], [0], [0], [1], [0, 0, 1, 1], [], []>} : vector<512x128xbf16>, vector<128x128xbf16>, vector<512x128xf32> -> vector<512x128xf32>
    %c0_3 = arith.constant 0 : index
    %c0_4 = arith.constant 0 : index
    %3 = vector.load %arg3[%c0_3, %c0_4] : memref<1x128xf32, #tpu.memory_space<vmem>>, vector<1x128xf32>
    %4 = vector.broadcast %3 : vector<1x128xf32> to vector<512x128xf32>
    %5 = arith.addf %2, %4 : vector<512x128xf32>
    %6 = arith.truncf %5 : vector<512x128xf32> to vector<512x128xbf16>
    %c0_5 = arith.constant 0 : index
    %c0_6 = arith.constant 0 : index
    %7 = vector.load %arg4[%c0_5, %c0_6] : memref<512x128xbf16, #tpu.memory_space<vmem>>, vector<512x128xbf16>
    tpu.vector_store %arg4[%c0_5, %c0_6], %6 {strides = array<i32>} : memref<512x128xbf16, #tpu.memory_space<vmem>>, vector<512x128xbf16>,
    return
  }
  func.func @transform_0(%arg0: i32) -> (i32, i32) {
    %c0_i32 = arith.constant 0 : i32
    %c0_i32_0 = arith.constant 0 : i32
    return %arg0, %c0_i32 : i32, i32
  }
  func.func @transform_1(%arg0: i32) -> (i32, i32) {
    %c0_i32 = arith.constant 0 : i32
    %c0_i32_0 = arith.constant 0 : i32
    %c0_i32_1 = arith.constant 0 : i32
    return %c0_i32, %c0_i32_0 : i32, i32
  }
  func.func @transform_2(%arg0: i32) -> (i32, i32) {
    %c0_i32 = arith.constant 0 : i32
    %c0_i32_0 = arith.constant 0 : i32
    %c0_i32_1 = arith.constant 0 : i32
    return %c0_i32, %c0_i32_0 : i32, i32
  }
  func.func @transform_3(%arg0: i32) -> (i32, i32) {
    %c0_i32 = arith.constant 0 : i32
    %c0_i32_0 = arith.constant 0 : i32
    return %arg0, %c0_i32 : i32, i32
  }
}

module attributes {stable_mosaic.version = 11 : i64} {
  func.func @kernel(%arg0: i32, %arg1: i32, %arg2: memref<512x512xbf16, #tpu.memory_space<vmem>>, %arg3: memref<512x128xbf16, #tpu.memory_space<vmem>>, %arg4: memref<512x128xf32, #tpu.memory_space<vmem>>) attributes {dimension_semantics = [#tpu.dimension_semantics<parallel>, #tpu.dimension_semantics<arbitrary>], iteration_bounds = array<i64: 1, 1>, scalar_prefetch = 0 : i64, scratch_operands = 0 : i64, tpu.core_type = #tpu.core_type<tc>, window_params = [{transform_indices = @transform_0, window_bounds = array<i64: 512, 512>}, {pipeline_mode = #tpu.pipeline_mode<synchronous>, transform_indices = @transform_1, window_bounds = array<i64: 512, 128>}, {transform_indices = @transform_2, window_bounds = array<i64: 512, 128>}]} {
    %c0_i32 = arith.constant 0 : i32
    %0 = arith.cmpi eq, %arg1, %c0_i32 : i32
    %1 = arith.extui %0 : i1 to i32
    %c0_i32_0 = arith.constant 0 : i32
    %2 = arith.cmpi ne, %1, %c0_i32_0 : i32
    scf.if %2 {
      %cst_9 = arith.constant 0.000000e+00 : f32
      %15 = vector.broadcast %cst_9 : f32 to vector<512x128xf32>
      %c0_10 = arith.constant 0 : index
      %c0_11 = arith.constant 0 : index
      %16 = vector.load %arg4[%c0_10, %c0_11] : memref<512x128xf32, #tpu.memory_space<vmem>>, vector<512x128xf32>
      tpu.vector_store %arg4[%c0_10, %c0_11], %15 {strides = array<i32>} : memref<512x128xf32, #tpu.memory_space<vmem>>, vector<512x128xf32>,
    } else {
    }
    %c512_i32 = arith.constant 512 : i32
    %3 = arith.muli %arg1, %c512_i32 : i32
    %4 = tpu.assume_multiple %3, 512 : i32
    %c0 = arith.constant 0 : index
    %c0_1 = arith.constant 0 : index
    %5 = vector.load %arg4[%c0, %c0_1] : memref<512x128xf32, #tpu.memory_space<vmem>>, vector<512x128xf32>
    %c0_2 = arith.constant 0 : index
    %c0_3 = arith.constant 0 : index
    %6 = vector.load %arg2[%c0_2, %c0_3] : memref<512x512xbf16, #tpu.memory_space<vmem>>, vector<512x512xbf16>
    %7 = arith.index_cast %4 : i32 to index
    %c0_4 = arith.constant 0 : index
    %8 = vector.load %arg3[%7, %c0_4] : memref<512x128xbf16, #tpu.memory_space<vmem>>, vector<512x128xbf16>
    %cst = arith.constant dense<0.000000e+00> : vector<512x128xf32>
    %9 = tpu.matmul %6, %8, %cst {dimension_numbers = #tpu.dot_dimension_numbers<[1], [0], [0], [1], [0, 0, 1, 1], [], []>} : vector<512x512xbf16>, vector<512x128xbf16>, vector<512x128xf32> -> vector<512x128xf32>
    %10 = arith.addf %5, %9 : vector<512x128xf32>
    %c0_5 = arith.constant 0 : index
    %c0_6 = arith.constant 0 : index
    %11 = vector.load %arg4[%c0_5, %c0_6] : memref<512x128xf32, #tpu.memory_space<vmem>>, vector<512x128xf32>
    tpu.vector_store %arg4[%c0_5, %c0_6], %10 {strides = array<i32>} : memref<512x128xf32, #tpu.memory_space<vmem>>, vector<512x128xf32>,
    %c0_i32_7 = arith.constant 0 : i32
    %12 = arith.cmpi eq, %arg1, %c0_i32_7 : i32
    %13 = arith.extui %12 : i1 to i32
    %c0_i32_8 = arith.constant 0 : i32
    %14 = arith.cmpi ne, %13, %c0_i32_8 : i32
    scf.if %14 {
      %c0_9 = arith.constant 0 : index
      %c0_10 = arith.constant 0 : index
      %15 = vector.load %arg4[%c0_9, %c0_10] : memref<512x128xf32, #tpu.memory_space<vmem>>, vector<512x128xf32>
      %c0_11 = arith.constant 0 : index
      %c0_12 = arith.constant 0 : index
      %16 = vector.load %arg4[%c0_11, %c0_12] : memref<512x128xf32, #tpu.memory_space<vmem>>, vector<512x128xf32>
      tpu.vector_store %arg4[%c0_11, %c0_12], %15 {strides = array<i32>} : memref<512x128xf32, #tpu.memory_space<vmem>>, vector<512x128xf32>,
    } else {
    }
    return
  }
  func.func @transform_0(%arg0: i32, %arg1: i32) -> (i32, i32) {
    %c0_i32 = arith.constant 0 : i32
    return %arg0, %arg1 : i32, i32
  }
  func.func @transform_1(%arg0: i32, %arg1: i32) -> (i32, i32) {
    %c0_i32 = arith.constant 0 : i32
    %c0_i32_0 = arith.constant 0 : i32
    %c0_i32_1 = arith.constant 0 : i32
    return %c0_i32, %c0_i32_0 : i32, i32
  }
  func.func @transform_2(%arg0: i32, %arg1: i32) -> (i32, i32) {
    %c0_i32 = arith.constant 0 : i32
    %c0_i32_0 = arith.constant 0 : i32
    return %arg0, %c0_i32 : i32, i32
  }
}

</mosaic_0001>

<llo_original>
// kernel: gcn_forward_padded.6
$region0: #{gcn_forward_padded.6}
  #allocation0 [shape = 'u32[]', space=smem, size = 0x4, offset = 0x4, fixed_abs, tag = 'smem constant byte address 0x4 - core index']
  #allocation1 [shape = 'u32[72,128]{1,0:T(1,128)}', space=vmem, size = 0x9000, scoped, tag = 'internal scratch']
  %s0 = inlined_call_operand.vmem [shape: bf16[512,128], index: 0, kind: input, shape index: {}]
  %s1 = inlined_call_operand.hbm [shape: bf16[128,128], index: 1, kind: input, shape index: {}]
  %s2 = inlined_call_operand.vmem [shape: f32[1,128], index: 2, kind: input, shape index: {}]
  %s3 = inlined_call_operand.vmem [shape: bf16[512,128], index: 3, kind: output, shape index: {}]
  %s4 = sld [smem:[#allocation0]]
  $region26: #{gcn_forward_padded.6} parent=0
    _
  %s6 = ssub.s32 1, %s4
  %s7 = scalar_select 0, %s6, %s4
  $region1: #{gcn_forward_padded.6} parent=0
    #allocation2 [shape = 'u8[32768]{0}', space=vmem, size = 0x8000, scoped, tag = 'input window, operand 1, single buffered']
    #allocation3 [shape = 's32[1]{0}', space=sflag, size = 0x4, scoped, tag = 'scoped memory for gcn_forward_padded.6']
    %8 = vsyncpa [#allocation3], 0
    // Predicated region
    $region2: #{gcn_forward_padded.6} parent=1 // pred_check
      _
    $region3: #{gcn_forward_padded.6} parent=1 // pred_check_branch
      %10 = sbr.rel (0) target = $region5
    $region4: #{gcn_forward_padded.6} parent=1 // pred_region
      _
    $region5: #{gcn_forward_padded.6} parent=1 // pred_fallthru
      _
    // Predicated region
    $region6: #{gcn_forward_padded.6} parent=1 // pred_check
      _
    $region7: #{gcn_forward_padded.6} parent=1 // pred_check_branch
      %12 = sbr.rel (0) target = $region9
    $region8: #{gcn_forward_padded.6} parent=1 // pred_region
      %14 = vsyncadd [#allocation3], 0
      %s15 = sshll.u32 %s1, 4
      %s16 = int_to_ptr.hbm [resolvable:$true] %s15
      %s17 = sshll.u32 [#allocation2], 4
      %s18 = int_to_ptr.vmem [resolvable:$true] %s17
      %23 = dma.hbm_to_vmem [thread:$0]  %s16, 1024, %s18, [#allocation3], 64, 64, 4
    $region9: #{gcn_forward_padded.6} parent=1 // pred_fallthru
      _
    // Predicated region
    $region10: #{gcn_forward_padded.6} parent=1 // pred_check
      _
    $region11: #{gcn_forward_padded.6} parent=1 // pred_check_branch
      %25 = sbr.rel (0) target = $region13
    $region12: #{gcn_forward_padded.6} parent=1 // pred_region
      _
    $region13: #{gcn_forward_padded.6} parent=1 // pred_fallthru
      _
    // Predicated region
    $region14: #{gcn_forward_padded.6} parent=1 // pred_check
      _
    $region15: #{gcn_forward_padded.6} parent=1 // pred_check_branch
      %27 = sbr.rel (0) target = $region17
    $region16: #{gcn_forward_padded.6} parent=1 // pred_region
      %29 = dma.done [#allocation3], 1024
    $region17: #{gcn_forward_padded.6} parent=1 // pred_fallthru
      _
    %v30 = vld [vmem:[%s0] sm:$0xf]
    %v31 = vld [vmem:[%s0 + $0x4] sm:$0xf]
    %v32 = vld [vmem:[%s0 + $0x8] sm:$0xf]
    %v33 = vld [vmem:[%s0 + $0xc] sm:$0xf]
    %v34 = vld [vmem:[%s0 + $0x10] sm:$0xf]
    %v35 = vld [vmem:[%s0 + $0x14] sm:$0xf]
    %v36 = vld [vmem:[%s0 + $0x18] sm:$0xf]
    %v37 = vld [vmem:[%s0 + $0x1c] sm:$0xf]
    %v38 = vld [vmem:[%s0 + $0x20] sm:$0xf]
    %v39 = vld [vmem:[%s0 + $0x24] sm:$0xf]
    %v40 = vld [vmem:[%s0 + $0x28] sm:$0xf]
    %v41 = vld [vmem:[%s0 + $0x2c] sm:$0xf]
    %v42 = vld [vmem:[%s0 + $0x30] sm:$0xf]
    %v43 = vld [vmem:[%s0 + $0x34] sm:$0xf]
    %v44 = vld [vmem:[%s0 + $0x38] sm:$0xf]
    %v45 = vld [vmem:[%s0 + $0x3c] sm:$0xf]
    %v46 = vld [vmem:[%s0 + $0x40] sm:$0xf]
    %v47 = vld [vmem:[%s0 + $0x44] sm:$0xf]
    %v48 = vld [vmem:[%s0 + $0x48] sm:$0xf]
    %v49 = vld [vmem:[%s0 + $0x4c] sm:$0xf]
    %v50 = vld [vmem:[%s0 + $0x50] sm:$0xf]
    %v51 = vld [vmem:[%s0 + $0x54] sm:$0xf]
    %v52 = vld [vmem:[%s0 + $0x58] sm:$0xf]
    %v53 = vld [vmem:[%s0 + $0x5c] sm:$0xf]
    %v54 = vld [vmem:[%s0 + $0x60] sm:$0xf]
    %v55 = vld [vmem:[%s0 + $0x64] sm:$0xf]
    %v56 = vld [vmem:[%s0 + $0x68] sm:$0xf]
    %v57 = vld [vmem:[%s0 + $0x6c] sm:$0xf]
    %v58 = vld [vmem:[%s0 + $0x70] sm:$0xf]
    %v59 = vld [vmem:[%s0 + $0x74] sm:$0xf]
    %v60 = vld [vmem:[%s0 + $0x78] sm:$0xf]
    %v61 = vld [vmem:[%s0 + $0x7c] sm:$0xf]
    %v62 = vld [vmem:[%s0 + $0x80] sm:$0xf]
    %v63 = vld [vmem:[%s0 + $0x84] sm:$0xf]
    %v64 = vld [vmem:[%s0 + $0x88] sm:$0xf]
    %v65 = vld [vmem:[%s0 + $0x8c] sm:$0xf]
    %v66 = vld [vmem:[%s0 + $0x90] sm:$0xf]
    %v67 = vld [vmem:[%s0 + $0x94] sm:$0xf]
    %v68 = vld [vmem:[%s0 + $0x98] sm:$0xf]
    %v69 = vld [vmem:[%s0 + $0x9c] sm:$0xf]
    %v70 = vld [vmem:[%s0 + $0xa0] sm:$0xf]
    %v71 = vld [vmem:[%s0 + $0xa4] sm:$0xf]
    %v72 = vld [vmem:[%s0 + $0xa8] sm:$0xf]
    %v73 = vld [vmem:[%s0 + $0xac] sm:$0xf]
    %v74 = vld [vmem:[%s0 + $0xb0] sm:$0xf]
    %v75 = vld [vmem:[%s0 + $0xb4] sm:$0xf]
    %v76 = vld [vmem:[%s0 + $0xb8] sm:$0xf]
    %v77 = vld [vmem:[%s0 + $0xbc] sm:$0xf]
    %v78 = vld [vmem:[%s0 + $0xc0] sm:$0xf]
    %v79 = vld [vmem:[%s0 + $0xc4] sm:$0xf]
    %v80 = vld [vmem:[%s0 + $0xc8] sm:$0xf]
    %v81 = vld [vmem:[%s0 + $0xcc] sm:$0xf]
    %v82 = vld [vmem:[%s0 + $0xd0] sm:$0xf]
    %v83 = vld [vmem:[%s0 + $0xd4] sm:$0xf]
    %v84 = vld [vmem:[%s0 + $0xd8] sm:$0xf]
    %v85 = vld [vmem:[%s0 + $0xdc] sm:$0xf]
    %v86 = vld [vmem:[%s0 + $0xe0] sm:$0xf]
    %v87 = vld [vmem:[%s0 + $0xe4] sm:$0xf]
    %v88 = vld [vmem:[%s0 + $0xe8] sm:$0xf]
    %v89 = vld [vmem:[%s0 + $0xec] sm:$0xf]
    %v90 = vld [vmem:[%s0 + $0xf0] sm:$0xf]
    %v91 = vld [vmem:[%s0 + $0xf4] sm:$0xf]
    %v92 = vld [vmem:[%s0 + $0xf8] sm:$0xf]
    %v93 = vld [vmem:[%s0 + $0xfc] sm:$0xf]
    %v94 = vld [vmem:[#allocation2] sm:$0xf]
    %v95 = vld [vmem:[#allocation2 + $0x4] sm:$0xf]
    %v96 = vld [vmem:[#allocation2 + $0x8] sm:$0xf]
    %v97 = vld [vmem:[#allocation2 + $0xc] sm:$0xf]
    %v98 = vld [vmem:[#allocation2 + $0x10] sm:$0xf]
    %v99 = vld [vmem:[#allocation2 + $0x14] sm:$0xf]
    %v100 = vld [vmem:[#allocation2 + $0x18] sm:$0xf]
    %v101 = vld [vmem:[#allocation2 + $0x1c] sm:$0xf]
    %v102 = vld [vmem:[#allocation2 + $0x20] sm:$0xf]
    %v103 = vld [vmem:[#allocation2 + $0x24] sm:$0xf]
    %v104 = vld [vmem:[#allocation2 + $0x28] sm:$0xf]
    %v105 = vld [vmem:[#allocation2 + $0x2c] sm:$0xf]
    %v106 = vld [vmem:[#allocation2 + $0x30] sm:$0xf]
    %v107 = vld [vmem:[#allocation2 + $0x34] sm:$0xf]
    %v108 = vld [vmem:[#allocation2 + $0x38] sm:$0xf]
    %v109 = vld [vmem:[#allocation2 + $0x3c] sm:$0xf]
    %v110 = vld [vmem:[%s2] sm:$0x1]
    %v112 = vperm.slane %v110, 0
    %v178 = vunpack.c.l.b16 %v30
    %v179 = vunpack.c.l.b16 %v31
    %v180 = vunpack.c.l.b16 %v32
    %v181 = vunpack.c.l.b16 %v33
    %v182 = vunpack.c.l.b16 %v34
    %v183 = vunpack.c.l.b16 %v35
    %v184 = vunpack.c.l.b16 %v36
    %v185 = vunpack.c.l.b16 %v37
    %v186 = vunpack.c.l.b16 %v38
    %v187 = vunpack.c.l.b16 %v39
    %v188 = vunpack.c.l.b16 %v40
    %v189 = vunpack.c.l.b16 %v41
    %v190 = vunpack.c.l.b16 %v42
    %v191 = vunpack.c.l.b16 %v43
    %v192 = vunpack.c.l.b16 %v44
    %v193 = vunpack.c.l.b16 %v45
    %v194 = vunpack.c.l.b16 %v46
    %v195 = vunpack.c.l.b16 %v47
    %v196 = vunpack.c.l.b16 %v48
    %v197 = vunpack.c.l.b16 %v49
    %v198 = vunpack.c.l.b16 %v50
    %v199 = vunpack.c.l.b16 %v51
    %v200 = vunpack.c.l.b16 %v52
    %v201 = vunpack.c.l.b16 %v53
    %v202 = vunpack.c.l.b16 %v54
    %v203 = vunpack.c.l.b16 %v55
    %v204 = vunpack.c.l.b16 %v56
    %v205 = vunpack.c.l.b16 %v57
    %v206 = vunpack.c.l.b16 %v58
    %v207 = vunpack.c.l.b16 %v59
    %v208 = vunpack.c.l.b16 %v60
    %v209 = vunpack.c.l.b16 %v61
    %v210 = vunpack.c.l.b16 %v62
    %v211 = vunpack.c.l.b16 %v63
    %v212 = vunpack.c.l.b16 %v64
    %v213 = vunpack.c.l.b16 %v65
    %v214 = vunpack.c.l.b16 %v66
    %v215 = vunpack.c.l.b16 %v67
    %v216 = vunpack.c.l.b16 %v68
    %v217 = vunpack.c.l.b16 %v69
    %v218 = vunpack.c.l.b16 %v70
    %v219 = vunpack.c.l.b16 %v71
    %v220 = vunpack.c.l.b16 %v72
    %v221 = vunpack.c.l.b16 %v73
    %v222 = vunpack.c.l.b16 %v74
    %v223 = vunpack.c.l.b16 %v75
    %v224 = vunpack.c.l.b16 %v76
    %v225 = vunpack.c.l.b16 %v77
    %v226 = vunpack.c.l.b16 %v78
    %v227 = vunpack.c.l.b16 %v79
    %v228 = vunpack.c.l.b16 %v80
    %v229 = vunpack.c.l.b16 %v81
    %v230 = vunpack.c.l.b16 %v82
    %v231 = vunpack.c.l.b16 %v83
    %v232 = vunpack.c.l.b16 %v84
    %v233 = vunpack.c.l.b16 %v85
    %v234 = vunpack.c.l.b16 %v86
    %v235 = vunpack.c.l.b16 %v87
    %v236 = vunpack.c.l.b16 %v88
    %v237 = vunpack.c.l.b16 %v89
    %v238 = vunpack.c.l.b16 %v90
    %v239 = vunpack.c.l.b16 %v91
    %v240 = vunpack.c.l.b16 %v92
    %v241 = vunpack.c.l.b16 %v93
    %v242 = vpack.c.b16 %v179, %v178
    %v243 = vpack.c.b16 %v181, %v180
    %v244 = vpack.c.b16 %v183, %v182
    %v245 = vpack.c.b16 %v185, %v184
    %v246 = vpack.c.b16 %v187, %v186
    %v247 = vpack.c.b16 %v189, %v188
    %v248 = vpack.c.b16 %v191, %v190
    %v249 = vpack.c.b16 %v193, %v192
    %v250 = vpack.c.b16 %v195, %v194
    %v251 = vpack.c.b16 %v197, %v196
    %v252 = vpack.c.b16 %v199, %v198
    %v253 = vpack.c.b16 %v201, %v200
    %v254 = vpack.c.b16 %v203, %v202
    %v255 = vpack.c.b16 %v205, %v204
    %v256 = vpack.c.b16 %v207, %v206
    %v257 = vpack.c.b16 %v209, %v208
    %v258 = vpack.c.b16 %v211, %v210
    %v259 = vpack.c.b16 %v213, %v212
    %v260 = vpack.c.b16 %v215, %v214
    %v261 = vpack.c.b16 %v217, %v216
    %v262 = vpack.c.b16 %v219, %v218
    %v263 = vpack.c.b16 %v221, %v220
    %v264 = vpack.c.b16 %v223, %v222
    %v265 = vpack.c.b16 %v225, %v224
    %v266 = vpack.c.b16 %v227, %v226
    %v267 = vpack.c.b16 %v229, %v228
    %v268 = vpack.c.b16 %v231, %v230
    %v269 = vpack.c.b16 %v233, %v232
    %v270 = vpack.c.b16 %v235, %v234
    %v271 = vpack.c.b16 %v237, %v236
    %v272 = vpack.c.b16 %v239, %v238
    %v273 = vpack.c.b16 %v241, %v240
    %v322 = vunpack.c.l.b16 %v94
    %v323 = vunpack.c.l.b16 %v95
    %v324 = vunpack.c.l.b16 %v96
    %v325 = vunpack.c.l.b16 %v97
    %v326 = vunpack.c.l.b16 %v98
    %v327 = vunpack.c.l.b16 %v99
    %v328 = vunpack.c.l.b16 %v100
    %v329 = vunpack.c.l.b16 %v101
    %v330 = vunpack.c.l.b16 %v102
    %v331 = vunpack.c.l.b16 %v103
    %v332 = vunpack.c.l.b16 %v104
    %v333 = vunpack.c.l.b16 %v105
    %v334 = vunpack.c.l.b16 %v106
    %v335 = vunpack.c.l.b16 %v107
    %v336 = vunpack.c.l.b16 %v108
    %v337 = vunpack.c.l.b16 %v109
    %v338 = vpack.c.b16 %v323, %v322
    %v339 = vpack.c.b16 %v325, %v324
    %v340 = vpack.c.b16 %v327, %v326
    %v341 = vpack.c.b16 %v329, %v328
    %v342 = vpack.c.b16 %v331, %v330
    %v343 = vpack.c.b16 %v333, %v332
    %v344 = vpack.c.b16 %v335, %v334
    %v345 = vpack.c.b16 %v337, %v336
    %354 = vmatpush.bf16.msra.mxu0 %v345
    %355 = vmatpush.bf16.msra.mxu0 %v344
    %356 = vmatpush.bf16.msra.mxu0 %v343
    %357 = vmatpush.bf16.msra.mxu0 %v342
    %358 = vmatpush.bf16.msra.mxu0 %v341
    %359 = vmatpush.bf16.msra.mxu0 %v340
    %360 = vmatpush.bf16.msra.mxu0 %v339
    %361 = vmatpush.bf16.msra.mxu0 %v338
    %362 = vmatmul.bf16.gmra.mxu0 %v242
    %v363 = vpop.f32.mrf.mxu0
    %v364 = vadd.f32 %v112, %v363
    %v365 = vpop.f32.mrf.mxu0
    %v366 = vadd.f32 %v112, %v365
    %367 = vmatmul.bf16.gmra.mxu0 %v243
    %v368 = vpop.f32.mrf.mxu0
    %v369 = vadd.f32 %v112, %v368
    %v370 = vpop.f32.mrf.mxu0
    %v371 = vadd.f32 %v112, %v370
    %372 = vmatmul.bf16.gmra.mxu0 %v244
    %v373 = vpop.f32.mrf.mxu0
    %v374 = vadd.f32 %v112, %v373
    %v375 = vpop.f32.mrf.mxu0
    %v376 = vadd.f32 %v112, %v375
    %377 = vmatmul.bf16.gmra.mxu0 %v245
    %v378 = vpop.f32.mrf.mxu0
    %v379 = vadd.f32 %v112, %v378
    %v380 = vpop.f32.mrf.mxu0
    %v381 = vadd.f32 %v112, %v380
    %382 = vmatmul.bf16.gmra.mxu0 %v246
    %v383 = vpop.f32.mrf.mxu0
    %v384 = vadd.f32 %v112, %v383
    %v385 = vpop.f32.mrf.mxu0
    %v386 = vadd.f32 %v112, %v385
    %387 = vmatmul.bf16.gmra.mxu0 %v247
    %v388 = vpop.f32.mrf.mxu0
    %v389 = vadd.f32 %v112, %v388
    %v390 = vpop.f32.mrf.mxu0
    %v391 = vadd.f32 %v112, %v390
    %392 = vmatmul.bf16.gmra.mxu0 %v248
    %v393 = vpop.f32.mrf.mxu0
    %v394 = vadd.f32 %v112, %v393
    %v395 = vpop.f32.mrf.mxu0
    %v396 = vadd.f32 %v112, %v395
    %397 = vmatmul.bf16.gmra.mxu0 %v249
    %v398 = vpop.f32.mrf.mxu0
    %v399 = vadd.f32 %v112, %v398
    %v400 = vpop.f32.mrf.mxu0
    %v401 = vadd.f32 %v112, %v400
    %402 = vmatmul.bf16.gmra.mxu0 %v250
    %v403 = vpop.f32.mrf.mxu0
    %v404 = vadd.f32 %v112, %v403
    %v405 = vpop.f32.mrf.mxu0
    %v406 = vadd.f32 %v112, %v405
    %407 = vmatmul.bf16.gmra.mxu0 %v251
    %v408 = vpop.f32.mrf.mxu0
    %v409 = vadd.f32 %v112, %v408
    %v410 = vpop.f32.mrf.mxu0
    %v411 = vadd.f32 %v112, %v410
    %412 = vmatmul.bf16.gmra.mxu0 %v252
    %v413 = vpop.f32.mrf.mxu0
    %v414 = vadd.f32 %v112, %v413
    %v415 = vpop.f32.mrf.mxu0
    %v416 = vadd.f32 %v112, %v415
    %417 = vmatmul.bf16.gmra.mxu0 %v253
    %v418 = vpop.f32.mrf.mxu0
    %v419 = vadd.f32 %v112, %v418
    %v420 = vpop.f32.mrf.mxu0
    %v421 = vadd.f32 %v112, %v420
    %422 = vmatmul.bf16.gmra.mxu0 %v254
    %v423 = vpop.f32.mrf.mxu0
    %v424 = vadd.f32 %v112, %v423
    %v425 = vpop.f32.mrf.mxu0
    %v426 = vadd.f32 %v112, %v425
    %427 = vmatmul.bf16.gmra.mxu0 %v255
    %v428 = vpop.f32.mrf.mxu0
    %v429 = vadd.f32 %v112, %v428
    %v430 = vpop.f32.mrf.mxu0
    %v431 = vadd.f32 %v112, %v430
    %432 = vmatmul.bf16.gmra.mxu0 %v256
    %v433 = vpop.f32.mrf.mxu0
    %v434 = vadd.f32 %v112, %v433
    %v435 = vpop.f32.mrf.mxu0
    %v436 = vadd.f32 %v112, %v435
    %437 = vmatmul.bf16.gmra.mxu0 %v257
    %v438 = vpop.f32.mrf.mxu0
    %v439 = vadd.f32 %v112, %v438
    %v440 = vpop.f32.mrf.mxu0
    %v441 = vadd.f32 %v112, %v440
    %442 = vmatmul.bf16.gmra.mxu0 %v258
    %v443 = vpop.f32.mrf.mxu0
    %v444 = vadd.f32 %v112, %v443
    %v445 = vpop.f32.mrf.mxu0
    %v446 = vadd.f32 %v112, %v445
    %447 = vmatmul.bf16.gmra.mxu0 %v259
    %v448 = vpop.f32.mrf.mxu0
    %v449 = vadd.f32 %v112, %v448
    %v450 = vpop.f32.mrf.mxu0
    %v451 = vadd.f32 %v112, %v450
    %452 = vmatmul.bf16.gmra.mxu0 %v260
    %v453 = vpop.f32.mrf.mxu0
    %v454 = vadd.f32 %v112, %v453
    %v455 = vpop.f32.mrf.mxu0
    %v456 = vadd.f32 %v112, %v455
    %457 = vmatmul.bf16.gmra.mxu0 %v261
    %v458 = vpop.f32.mrf.mxu0
    %v459 = vadd.f32 %v112, %v458
    %v460 = vpop.f32.mrf.mxu0
    %v461 = vadd.f32 %v112, %v460
    %462 = vmatmul.bf16.gmra.mxu0 %v262
    %v463 = vpop.f32.mrf.mxu0
    %v464 = vadd.f32 %v112, %v463
    %v465 = vpop.f32.mrf.mxu0
    %v466 = vadd.f32 %v112, %v465
    %467 = vmatmul.bf16.gmra.mxu0 %v263
    %v468 = vpop.f32.mrf.mxu0
    %v469 = vadd.f32 %v112, %v468
    %v470 = vpop.f32.mrf.mxu0
    %v471 = vadd.f32 %v112, %v470
    %472 = vmatmul.bf16.gmra.mxu0 %v264
    %v473 = vpop.f32.mrf.mxu0
    %v474 = vadd.f32 %v112, %v473
    %v475 = vpop.f32.mrf.mxu0
    %v476 = vadd.f32 %v112, %v475
    %477 = vmatmul.bf16.gmra.mxu0 %v265
    %v478 = vpop.f32.mrf.mxu0
    %v479 = vadd.f32 %v112, %v478
    %v480 = vpop.f32.mrf.mxu0
    %v481 = vadd.f32 %v112, %v480
    %482 = vmatmul.bf16.gmra.mxu0 %v266
    %v483 = vpop.f32.mrf.mxu0
    %v484 = vadd.f32 %v112, %v483
    %v485 = vpop.f32.mrf.mxu0
    %v486 = vadd.f32 %v112, %v485
    %487 = vmatmul.bf16.gmra.mxu0 %v267
    %v488 = vpop.f32.mrf.mxu0
    %v489 = vadd.f32 %v112, %v488
    %v490 = vpop.f32.mrf.mxu0
    %v491 = vadd.f32 %v112, %v490
    %492 = vmatmul.bf16.gmra.mxu0 %v268
    %v493 = vpop.f32.mrf.mxu0
    %v494 = vadd.f32 %v112, %v493
    %v495 = vpop.f32.mrf.mxu0
    %v496 = vadd.f32 %v112, %v495
    %497 = vmatmul.bf16.gmra.mxu0 %v269
    %v498 = vpop.f32.mrf.mxu0
    %v499 = vadd.f32 %v112, %v498
    %v500 = vpop.f32.mrf.mxu0
    %v501 = vadd.f32 %v112, %v500
    %502 = vmatmul.bf16.gmra.mxu0 %v270
    %v503 = vpop.f32.mrf.mxu0
    %v504 = vadd.f32 %v112, %v503
    %v505 = vpop.f32.mrf.mxu0
    %v506 = vadd.f32 %v112, %v505
    %507 = vmatmul.bf16.gmra.mxu0 %v271
    %v508 = vpop.f32.mrf.mxu0
    %v509 = vadd.f32 %v112, %v508
    %v510 = vpop.f32.mrf.mxu0
    %v511 = vadd.f32 %v112, %v510
    %512 = vmatmul.bf16.gmra.mxu0 %v272
    %v513 = vpop.f32.mrf.mxu0
    %v514 = vadd.f32 %v112, %v513
    %v515 = vpop.f32.mrf.mxu0
    %v516 = vadd.f32 %v112, %v515
    %517 = vmatmul.bf16.gmra.mxu0 %v273
    %v518 = vpop.f32.mrf.mxu0
    %v519 = vadd.f32 %v112, %v518
    %v520 = vpop.f32.mrf.mxu0
    %v521 = vadd.f32 %v112, %v520
    %522 = vdwg.mxu0
    %v523 = vpack.c.bf16 %v364, %v364
    %v524 = vpack.c.bf16 %v366, %v366
    %v525 = vpack.c.bf16 %v369, %v369
    %v526 = vpack.c.bf16 %v371, %v371
    %v527 = vpack.c.bf16 %v374, %v374
    %v528 = vpack.c.bf16 %v376, %v376
    %v529 = vpack.c.bf16 %v379, %v379
    %v530 = vpack.c.bf16 %v381, %v381
    %v531 = vpack.c.bf16 %v384, %v384
    %v532 = vpack.c.bf16 %v386, %v386
    %v533 = vpack.c.bf16 %v389, %v389
    %v534 = vpack.c.bf16 %v391, %v391
    %v535 = vpack.c.bf16 %v394, %v394
    %v536 = vpack.c.bf16 %v396, %v396
    %v537 = vpack.c.bf16 %v399, %v399
    %v538 = vpack.c.bf16 %v401, %v401
    %v539 = vpack.c.bf16 %v404, %v404
    %v540 = vpack.c.bf16 %v406, %v406
    %v541 = vpack.c.bf16 %v409, %v409
    %v542 = vpack.c.bf16 %v411, %v411
    %v543 = vpack.c.bf16 %v414, %v414
    %v544 = vpack.c.bf16 %v416, %v416
    %v545 = vpack.c.bf16 %v419, %v419
    %v546 = vpack.c.bf16 %v421, %v421
    %v547 = vpack.c.bf16 %v424, %v424
    %v548 = vpack.c.bf16 %v426, %v426
    %v549 = vpack.c.bf16 %v429, %v429
    %v550 = vpack.c.bf16 %v431, %v431
    %v551 = vpack.c.bf16 %v434, %v434
    %v552 = vpack.c.bf16 %v436, %v436
    %v553 = vpack.c.bf16 %v439, %v439
    %v554 = vpack.c.bf16 %v441, %v441
    %v555 = vpack.c.bf16 %v444, %v444
    %v556 = vpack.c.bf16 %v446, %v446
    %v557 = vpack.c.bf16 %v449, %v449
    %v558 = vpack.c.bf16 %v451, %v451
    %v559 = vpack.c.bf16 %v454, %v454
    %v560 = vpack.c.bf16 %v456, %v456
    %v561 = vpack.c.bf16 %v459, %v459
    %v562 = vpack.c.bf16 %v461, %v461
    %v563 = vpack.c.bf16 %v464, %v464
    %v564 = vpack.c.bf16 %v466, %v466
    %v565 = vpack.c.bf16 %v469, %v469
    %v566 = vpack.c.bf16 %v471, %v471
    %v567 = vpack.c.bf16 %v474, %v474
    %v568 = vpack.c.bf16 %v476, %v476
    %v569 = vpack.c.bf16 %v479, %v479
    %v570 = vpack.c.bf16 %v481, %v481
    %v571 = vpack.c.bf16 %v484, %v484
    %v572 = vpack.c.bf16 %v486, %v486
    %v573 = vpack.c.bf16 %v489, %v489
    %v574 = vpack.c.bf16 %v491, %v491
    %v575 = vpack.c.bf16 %v494, %v494
    %v576 = vpack.c.bf16 %v496, %v496
    %v577 = vpack.c.bf16 %v499, %v499
    %v578 = vpack.c.bf16 %v501, %v501
    %v579 = vpack.c.bf16 %v504, %v504
    %v580 = vpack.c.bf16 %v506, %v506
    %v581 = vpack.c.bf16 %v509, %v509
    %v582 = vpack.c.bf16 %v511, %v511
    %v583 = vpack.c.bf16 %v514, %v514
    %v584 = vpack.c.bf16 %v516, %v516
    %v585 = vpack.c.bf16 %v519, %v519
    %v586 = vpack.c.bf16 %v521, %v521
    %587 = vst [vmem:[%s3] sm:$0xf] %v523
    %588 = vst [vmem:[%s3 + $0x4] sm:$0xf] %v524
    %589 = vst [vmem:[%s3 + $0x8] sm:$0xf] %v525
    %590 = vst [vmem:[%s3 + $0xc] sm:$0xf] %v526
    %591 = vst [vmem:[%s3 + $0x10] sm:$0xf] %v527
    %592 = vst [vmem:[%s3 + $0x14] sm:$0xf] %v528
    %593 = vst [vmem:[%s3 + $0x18] sm:$0xf] %v529
    %594 = vst [vmem:[%s3 + $0x1c] sm:$0xf] %v530
    %595 = vst [vmem:[%s3 + $0x20] sm:$0xf] %v531
    %596 = vst [vmem:[%s3 + $0x24] sm:$0xf] %v532
    %597 = vst [vmem:[%s3 + $0x28] sm:$0xf] %v533
    %598 = vst [vmem:[%s3 + $0x2c] sm:$0xf] %v534
    %599 = vst [vmem:[%s3 + $0x30] sm:$0xf] %v535
    %600 = vst [vmem:[%s3 + $0x34] sm:$0xf] %v536
    %601 = vst [vmem:[%s3 + $0x38] sm:$0xf] %v537
    %602 = vst [vmem:[%s3 + $0x3c] sm:$0xf] %v538
    %603 = vst [vmem:[%s3 + $0x40] sm:$0xf] %v539
    %604 = vst [vmem:[%s3 + $0x44] sm:$0xf] %v540
    %605 = vst [vmem:[%s3 + $0x48] sm:$0xf] %v541
    %606 = vst [vmem:[%s3 + $0x4c] sm:$0xf] %v542
    %607 = vst [vmem:[%s3 + $0x50] sm:$0xf] %v543
    %608 = vst [vmem:[%s3 + $0x54] sm:$0xf] %v544
    %609 = vst [vmem:[%s3 + $0x58] sm:$0xf] %v545
    %610 = vst [vmem:[%s3 + $0x5c] sm:$0xf] %v546
    %611 = vst [vmem:[%s3 + $0x60] sm:$0xf] %v547
    %612 = vst [vmem:[%s3 + $0x64] sm:$0xf] %v548
    %613 = vst [vmem:[%s3 + $0x68] sm:$0xf] %v549
    %614 = vst [vmem:[%s3 + $0x6c] sm:$0xf] %v550
    %615 = vst [vmem:[%s3 + $0x70] sm:$0xf] %v551
    %616 = vst [vmem:[%s3 + $0x74] sm:$0xf] %v552
    %617 = vst [vmem:[%s3 + $0x78] sm:$0xf] %v553
    %618 = vst [vmem:[%s3 + $0x7c] sm:$0xf] %v554
    %619 = vst [vmem:[%s3 + $0x80] sm:$0xf] %v555
    %620 = vst [vmem:[%s3 + $0x84] sm:$0xf] %v556
    %621 = vst [vmem:[%s3 + $0x88] sm:$0xf] %v557
    %622 = vst [vmem:[%s3 + $0x8c] sm:$0xf] %v558
    %623 = vst [vmem:[%s3 + $0x90] sm:$0xf] %v559
    %624 = vst [vmem:[%s3 + $0x94] sm:$0xf] %v560
    %625 = vst [vmem:[%s3 + $0x98] sm:$0xf] %v561
    %626 = vst [vmem:[%s3 + $0x9c] sm:$0xf] %v562
    %627 = vst [vmem:[%s3 + $0xa0] sm:$0xf] %v563
    %628 = vst [vmem:[%s3 + $0xa4] sm:$0xf] %v564
    %629 = vst [vmem:[%s3 + $0xa8] sm:$0xf] %v565
    %630 = vst [vmem:[%s3 + $0xac] sm:$0xf] %v566
    %631 = vst [vmem:[%s3 + $0xb0] sm:$0xf] %v567
    %632 = vst [vmem:[%s3 + $0xb4] sm:$0xf] %v568
    %633 = vst [vmem:[%s3 + $0xb8] sm:$0xf] %v569
    %634 = vst [vmem:[%s3 + $0xbc] sm:$0xf] %v570
    %635 = vst [vmem:[%s3 + $0xc0] sm:$0xf] %v571
    %636 = vst [vmem:[%s3 + $0xc4] sm:$0xf] %v572
    %637 = vst [vmem:[%s3 + $0xc8] sm:$0xf] %v573
    %638 = vst [vmem:[%s3 + $0xcc] sm:$0xf] %v574
    %639 = vst [vmem:[%s3 + $0xd0] sm:$0xf] %v575
    %640 = vst [vmem:[%s3 + $0xd4] sm:$0xf] %v576
    %641 = vst [vmem:[%s3 + $0xd8] sm:$0xf] %v577
    %642 = vst [vmem:[%s3 + $0xdc] sm:$0xf] %v578
    %643 = vst [vmem:[%s3 + $0xe0] sm:$0xf] %v579
    %644 = vst [vmem:[%s3 + $0xe4] sm:$0xf] %v580
    %645 = vst [vmem:[%s3 + $0xe8] sm:$0xf] %v581
    %646 = vst [vmem:[%s3 + $0xec] sm:$0xf] %v582
    %647 = vst [vmem:[%s3 + $0xf0] sm:$0xf] %v583
    %648 = vst [vmem:[%s3 + $0xf4] sm:$0xf] %v584
    %649 = vst [vmem:[%s3 + $0xf8] sm:$0xf] %v585
    %650 = vst [vmem:[%s3 + $0xfc] sm:$0xf] %v586
    // Predicated region
    $region18: #{gcn_forward_padded.6} parent=1 // pred_check
      _
    $region19: #{gcn_forward_padded.6} parent=1 // pred_check_branch
      %652 = sbr.rel (0) target = $region21
    $region20: #{gcn_forward_padded.6} parent=1 // pred_region
      _
    $region21: #{gcn_forward_padded.6} parent=1 // pred_fallthru
      _
    // Predicated region
    $region22: #{gcn_forward_padded.6} parent=1 // pred_check
      _
    $region23: #{gcn_forward_padded.6} parent=1 // pred_check_branch
      %654 = sbr.rel (0) target = $region25
    $region24: #{gcn_forward_padded.6} parent=1 // pred_region
      _
    $region25: #{gcn_forward_padded.6} parent=1 // pred_fallthru
      _
    %655 = vsyncpa [#allocation3], 1

// kernel: gcn_forward_padded.4
$region0: #{gcn_forward_padded.4}
  #allocation0 [shape = 'u32[]', space=smem, size = 0x4, offset = 0x4, fixed_abs, tag = 'smem constant byte address 0x4 - core index']
  #allocation1 [shape = 'u32[72,128]{1,0:T(1,128)}', space=vmem, size = 0x9000, scoped, tag = 'internal scratch']
  %s0 = inlined_call_operand.hbm [shape: bf16[512,128], index: 0, kind: input, shape index: {}]
  %s1 = inlined_call_operand.hbm [shape: bf16[128,128], index: 1, kind: input, shape index: {}]
  %s2 = inlined_call_operand.vmem [shape: f32[1,128], index: 2, kind: input, shape index: {}]
  %s3 = inlined_call_operand.vmem [shape: bf16[512,128], index: 3, kind: output, shape index: {}]
  %s4 = sld [smem:[#allocation0]]
  $region30: #{gcn_forward_padded.4} parent=0
    _
  %s6 = ssub.s32 1, %s4
  %s7 = scalar_select 0, %s6, %s4
  $region1: #{gcn_forward_padded.4} parent=0
    #allocation2 [shape = 'u8[131072]{0}', space=vmem, size = 0x20000, scoped, tag = 'input window, operand 0, single buffered']
    #allocation3 [shape = 's32[1]{0}', space=sflag, size = 0x4, scoped, tag = 'scoped memory for gcn_forward_padded.4']
    #allocation4 [shape = 'u8[32768]{0}', space=vmem, size = 0x8000, scoped, tag = 'input window, operand 1, single buffered']
    #allocation5 [shape = 's32[1]{0}', space=sflag, size = 0x4, scoped, tag = 'scoped memory for gcn_forward_padded.4']
    %8 = vsyncpa [#allocation3], 0
    %9 = vsyncpa [#allocation5], 0
    // Predicated region
    $region2: #{gcn_forward_padded.4} parent=1 // pred_check
      _
    $region3: #{gcn_forward_padded.4} parent=1 // pred_check_branch
      %11 = sbr.rel (0) target = $region5
    $region4: #{gcn_forward_padded.4} parent=1 // pred_region
      %13 = vsyncadd [#allocation3], 0
      %s14 = sshll.u32 %s0, 4
      %s15 = int_to_ptr.hbm [resolvable:$true] %s14
      %s16 = sshll.u32 [#allocation2], 4
      %s17 = int_to_ptr.vmem [resolvable:$true] %s16
      %22 = dma.hbm_to_vmem [thread:$0]  %s15, 4096, %s17, [#allocation3], 64, 64, 4
    $region5: #{gcn_forward_padded.4} parent=1 // pred_fallthru
      _
    // Predicated region
    $region6: #{gcn_forward_padded.4} parent=1 // pred_check
      _
    $region7: #{gcn_forward_padded.4} parent=1 // pred_check_branch
      %24 = sbr.rel (0) target = $region9
    $region8: #{gcn_forward_padded.4} parent=1 // pred_region
      %26 = vsyncadd [#allocation5], 0
      %s27 = sshll.u32 %s1, 4
      %s28 = int_to_ptr.hbm [resolvable:$true] %s27
      %s29 = sshll.u32 [#allocation4], 4
      %s30 = int_to_ptr.vmem [resolvable:$true] %s29
      %35 = dma.hbm_to_vmem [thread:$0]  %s28, 1024, %s30, [#allocation5], 64, 64, 4
    $region9: #{gcn_forward_padded.4} parent=1 // pred_fallthru
      _
    // Predicated region
    $region10: #{gcn_forward_padded.4} parent=1 // pred_check
      _
    $region11: #{gcn_forward_padded.4} parent=1 // pred_check_branch
      %37 = sbr.rel (0) target = $region13
    $region12: #{gcn_forward_padded.4} parent=1 // pred_region
      _
    $region13: #{gcn_forward_padded.4} parent=1 // pred_fallthru
      _
    // Predicated region
    $region14: #{gcn_forward_padded.4} parent=1 // pred_check
      _
    $region15: #{gcn_forward_padded.4} parent=1 // pred_check_branch
      %39 = sbr.rel (0) target = $region17
    $region16: #{gcn_forward_padded.4} parent=1 // pred_region
      %41 = dma.done [#allocation3], 4096
    $region17: #{gcn_forward_padded.4} parent=1 // pred_fallthru
      _
    // Predicated region
    $region18: #{gcn_forward_padded.4} parent=1 // pred_check
      _
    $region19: #{gcn_forward_padded.4} parent=1 // pred_check_branch
      %43 = sbr.rel (0) target = $region21
    $region20: #{gcn_forward_padded.4} parent=1 // pred_region
      %45 = dma.done [#allocation5], 1024
    $region21: #{gcn_forward_padded.4} parent=1 // pred_fallthru
      _
    %v46 = vld [vmem:[#allocation2] sm:$0xf]
    %v47 = vld [vmem:[#allocation2 + $0x4] sm:$0xf]
    %v48 = vld [vmem:[#allocation2 + $0x8] sm:$0xf]
    %v49 = vld [vmem:[#allocation2 + $0xc] sm:$0xf]
    %v50 = vld [vmem:[#allocation2 + $0x10] sm:$0xf]
    %v51 = vld [vmem:[#allocation2 + $0x14] sm:$0xf]
    %v52 = vld [vmem:[#allocation2 + $0x18] sm:$0xf]
    %v53 = vld [vmem:[#allocation2 + $0x1c] sm:$0xf]
    %v54 = vld [vmem:[#allocation2 + $0x20] sm:$0xf]
    %v55 = vld [vmem:[#allocation2 + $0x24] sm:$0xf]
    %v56 = vld [vmem:[#allocation2 + $0x28] sm:$0xf]
    %v57 = vld [vmem:[#allocation2 + $0x2c] sm:$0xf]
    %v58 = vld [vmem:[#allocation2 + $0x30] sm:$0xf]
    %v59 = vld [vmem:[#allocation2 + $0x34] sm:$0xf]
    %v60 = vld [vmem:[#allocation2 + $0x38] sm:$0xf]
    %v61 = vld [vmem:[#allocation2 + $0x3c] sm:$0xf]
    %v62 = vld [vmem:[#allocation2 + $0x40] sm:$0xf]
    %v63 = vld [vmem:[#allocation2 + $0x44] sm:$0xf]
    %v64 = vld [vmem:[#allocation2 + $0x48] sm:$0xf]
    %v65 = vld [vmem:[#allocation2 + $0x4c] sm:$0xf]
    %v66 = vld [vmem:[#allocation2 + $0x50] sm:$0xf]
    %v67 = vld [vmem:[#allocation2 + $0x54] sm:$0xf]
    %v68 = vld [vmem:[#allocation2 + $0x58] sm:$0xf]
    %v69 = vld [vmem:[#allocation2 + $0x5c] sm:$0xf]
    %v70 = vld [vmem:[#allocation2 + $0x60] sm:$0xf]
    %v71 = vld [vmem:[#allocation2 + $0x64] sm:$0xf]
    %v72 = vld [vmem:[#allocation2 + $0x68] sm:$0xf]
    %v73 = vld [vmem:[#allocation2 + $0x6c] sm:$0xf]
    %v74 = vld [vmem:[#allocation2 + $0x70] sm:$0xf]
    %v75 = vld [vmem:[#allocation2 + $0x74] sm:$0xf]
    %v76 = vld [vmem:[#allocation2 + $0x78] sm:$0xf]
    %v77 = vld [vmem:[#allocation2 + $0x7c] sm:$0xf]
    %v78 = vld [vmem:[#allocation2 + $0x80] sm:$0xf]
    %v79 = vld [vmem:[#allocation2 + $0x84] sm:$0xf]
    %v80 = vld [vmem:[#allocation2 + $0x88] sm:$0xf]
    %v81 = vld [vmem:[#allocation2 + $0x8c] sm:$0xf]
    %v82 = vld [vmem:[#allocation2 + $0x90] sm:$0xf]
    %v83 = vld [vmem:[#allocation2 + $0x94] sm:$0xf]
    %v84 = vld [vmem:[#allocation2 + $0x98] sm:$0xf]
    %v85 = vld [vmem:[#allocation2 + $0x9c] sm:$0xf]
    %v86 = vld [vmem:[#allocation2 + $0xa0] sm:$0xf]
    %v87 = vld [vmem:[#allocation2 + $0xa4] sm:$0xf]
    %v88 = vld [vmem:[#allocation2 + $0xa8] sm:$0xf]
    %v89 = vld [vmem:[#allocation2 + $0xac] sm:$0xf]
    %v90 = vld [vmem:[#allocation2 + $0xb0] sm:$0xf]
    %v91 = vld [vmem:[#allocation2 + $0xb4] sm:$0xf]
    %v92 = vld [vmem:[#allocation2 + $0xb8] sm:$0xf]
    %v93 = vld [vmem:[#allocation2 + $0xbc] sm:$0xf]
    %v94 = vld [vmem:[#allocation2 + $0xc0] sm:$0xf]
    %v95 = vld [vmem:[#allocation2 + $0xc4] sm:$0xf]
    %v96 = vld [vmem:[#allocation2 + $0xc8] sm:$0xf]
    %v97 = vld [vmem:[#allocation2 + $0xcc] sm:$0xf]
    %v98 = vld [vmem:[#allocation2 + $0xd0] sm:$0xf]
    %v99 = vld [vmem:[#allocation2 + $0xd4] sm:$0xf]
    %v100 = vld [vmem:[#allocation2 + $0xd8] sm:$0xf]
    %v101 = vld [vmem:[#allocation2 + $0xdc] sm:$0xf]
    %v102 = vld [vmem:[#allocation2 + $0xe0] sm:$0xf]
    %v103 = vld [vmem:[#allocation2 + $0xe4] sm:$0xf]
    %v104 = vld [vmem:[#allocation2 + $0xe8] sm:$0xf]
    %v105 = vld [vmem:[#allocation2 + $0xec] sm:$0xf]
    %v106 = vld [vmem:[#allocation2 + $0xf0] sm:$0xf]
    %v107 = vld [vmem:[#allocation2 + $0xf4] sm:$0xf]
    %v108 = vld [vmem:[#allocation2 + $0xf8] sm:$0xf]
    %v109 = vld [vmem:[#allocation2 + $0xfc] sm:$0xf]
    %v110 = vld [vmem:[#allocation4] sm:$0xf]
    %v111 = vld [vmem:[#allocation4 + $0x4] sm:$0xf]
    %v112 = vld [vmem:[#allocation4 + $0x8] sm:$0xf]
    %v113 = vld [vmem:[#allocation4 + $0xc] sm:$0xf]
    %v114 = vld [vmem:[#allocation4 + $0x10] sm:$0xf]
    %v115 = vld [vmem:[#allocation4 + $0x14] sm:$0xf]
    %v116 = vld [vmem:[#allocation4 + $0x18] sm:$0xf]
    %v117 = vld [vmem:[#allocation4 + $0x1c] sm:$0xf]
    %v118 = vld [vmem:[#allocation4 + $0x20] sm:$0xf]
    %v119 = vld [vmem:[#allocation4 + $0x24] sm:$0xf]
    %v120 = vld [vmem:[#allocation4 + $0x28] sm:$0xf]
    %v121 = vld [vmem:[#allocation4 + $0x2c] sm:$0xf]
    %v122 = vld [vmem:[#allocation4 + $0x30] sm:$0xf]
    %v123 = vld [vmem:[#allocation4 + $0x34] sm:$0xf]
    %v124 = vld [vmem:[#allocation4 + $0x38] sm:$0xf]
    %v125 = vld [vmem:[#allocation4 + $0x3c] sm:$0xf]
    %v126 = vld [vmem:[%s2] sm:$0x1]
    %v128 = vperm.slane %v126, 0
    %v194 = vunpack.c.l.b16 %v46
    %v195 = vunpack.c.l.b16 %v47
    %v196 = vunpack.c.l.b16 %v48
    %v197 = vunpack.c.l.b16 %v49
    %v198 = vunpack.c.l.b16 %v50
    %v199 = vunpack.c.l.b16 %v51
    %v200 = vunpack.c.l.b16 %v52
    %v201 = vunpack.c.l.b16 %v53
    %v202 = vunpack.c.l.b16 %v54
    %v203 = vunpack.c.l.b16 %v55
    %v204 = vunpack.c.l.b16 %v56
    %v205 = vunpack.c.l.b16 %v57
    %v206 = vunpack.c.l.b16 %v58
    %v207 = vunpack.c.l.b16 %v59
    %v208 = vunpack.c.l.b16 %v60
    %v209 = vunpack.c.l.b16 %v61
    %v210 = vunpack.c.l.b16 %v62
    %v211 = vunpack.c.l.b16 %v63
    %v212 = vunpack.c.l.b16 %v64
    %v213 = vunpack.c.l.b16 %v65
    %v214 = vunpack.c.l.b16 %v66
    %v215 = vunpack.c.l.b16 %v67
    %v216 = vunpack.c.l.b16 %v68
    %v217 = vunpack.c.l.b16 %v69
    %v218 = vunpack.c.l.b16 %v70
    %v219 = vunpack.c.l.b16 %v71
    %v220 = vunpack.c.l.b16 %v72
    %v221 = vunpack.c.l.b16 %v73
    %v222 = vunpack.c.l.b16 %v74
    %v223 = vunpack.c.l.b16 %v75
    %v224 = vunpack.c.l.b16 %v76
    %v225 = vunpack.c.l.b16 %v77
    %v226 = vunpack.c.l.b16 %v78
    %v227 = vunpack.c.l.b16 %v79
    %v228 = vunpack.c.l.b16 %v80
    %v229 = vunpack.c.l.b16 %v81
    %v230 = vunpack.c.l.b16 %v82
    %v231 = vunpack.c.l.b16 %v83
    %v232 = vunpack.c.l.b16 %v84
    %v233 = vunpack.c.l.b16 %v85
    %v234 = vunpack.c.l.b16 %v86
    %v235 = vunpack.c.l.b16 %v87
    %v236 = vunpack.c.l.b16 %v88
    %v237 = vunpack.c.l.b16 %v89
    %v238 = vunpack.c.l.b16 %v90
    %v239 = vunpack.c.l.b16 %v91
    %v240 = vunpack.c.l.b16 %v92
    %v241 = vunpack.c.l.b16 %v93
    %v242 = vunpack.c.l.b16 %v94
    %v243 = vunpack.c.l.b16 %v95
    %v244 = vunpack.c.l.b16 %v96
    %v245 = vunpack.c.l.b16 %v97
    %v246 = vunpack.c.l.b16 %v98
    %v247 = vunpack.c.l.b16 %v99
    %v248 = vunpack.c.l.b16 %v100
    %v249 = vunpack.c.l.b16 %v101
    %v250 = vunpack.c.l.b16 %v102
    %v251 = vunpack.c.l.b16 %v103
    %v252 = vunpack.c.l.b16 %v104
    %v253 = vunpack.c.l.b16 %v105
    %v254 = vunpack.c.l.b16 %v106
    %v255 = vunpack.c.l.b16 %v107
    %v256 = vunpack.c.l.b16 %v108
    %v257 = vunpack.c.l.b16 %v109
    %v258 = vpack.c.b16 %v195, %v194
    %v259 = vpack.c.b16 %v197, %v196
    %v260 = vpack.c.b16 %v199, %v198
    %v261 = vpack.c.b16 %v201, %v200
    %v262 = vpack.c.b16 %v203, %v202
    %v263 = vpack.c.b16 %v205, %v204
    %v264 = vpack.c.b16 %v207, %v206
    %v265 = vpack.c.b16 %v209, %v208
    %v266 = vpack.c.b16 %v211, %v210
    %v267 = vpack.c.b16 %v213, %v212
    %v268 = vpack.c.b16 %v215, %v214
    %v269 = vpack.c.b16 %v217, %v216
    %v270 = vpack.c.b16 %v219, %v218
    %v271 = vpack.c.b16 %v221, %v220
    %v272 = vpack.c.b16 %v223, %v222
    %v273 = vpack.c.b16 %v225, %v224
    %v274 = vpack.c.b16 %v227, %v226
    %v275 = vpack.c.b16 %v229, %v228
    %v276 = vpack.c.b16 %v231, %v230
    %v277 = vpack.c.b16 %v233, %v232
    %v278 = vpack.c.b16 %v235, %v234
    %v279 = vpack.c.b16 %v237, %v236
    %v280 = vpack.c.b16 %v239, %v238
    %v281 = vpack.c.b16 %v241, %v240
    %v282 = vpack.c.b16 %v243, %v242
    %v283 = vpack.c.b16 %v245, %v244
    %v284 = vpack.c.b16 %v247, %v246
    %v285 = vpack.c.b16 %v249, %v248
    %v286 = vpack.c.b16 %v251, %v250
    %v287 = vpack.c.b16 %v253, %v252
    %v288 = vpack.c.b16 %v255, %v254
    %v289 = vpack.c.b16 %v257, %v256
    %v338 = vunpack.c.l.b16 %v110
    %v339 = vunpack.c.l.b16 %v111
    %v340 = vunpack.c.l.b16 %v112
    %v341 = vunpack.c.l.b16 %v113
    %v342 = vunpack.c.l.b16 %v114
    %v343 = vunpack.c.l.b16 %v115
    %v344 = vunpack.c.l.b16 %v116
    %v345 = vunpack.c.l.b16 %v117
    %v346 = vunpack.c.l.b16 %v118
    %v347 = vunpack.c.l.b16 %v119
    %v348 = vunpack.c.l.b16 %v120
    %v349 = vunpack.c.l.b16 %v121
    %v350 = vunpack.c.l.b16 %v122
    %v351 = vunpack.c.l.b16 %v123
    %v352 = vunpack.c.l.b16 %v124
    %v353 = vunpack.c.l.b16 %v125
    %v354 = vpack.c.b16 %v339, %v338
    %v355 = vpack.c.b16 %v341, %v340
    %v356 = vpack.c.b16 %v343, %v342
    %v357 = vpack.c.b16 %v345, %v344
    %v358 = vpack.c.b16 %v347, %v346
    %v359 = vpack.c.b16 %v349, %v348
    %v360 = vpack.c.b16 %v351, %v350
    %v361 = vpack.c.b16 %v353, %v352
    %370 = vmatpush.bf16.msra.mxu0 %v361
    %371 = vmatpush.bf16.msra.mxu0 %v360
    %372 = vmatpush.bf16.msra.mxu0 %v359
    %373 = vmatpush.bf16.msra.mxu0 %v358
    %374 = vmatpush.bf16.msra.mxu0 %v357
    %375 = vmatpush.bf16.msra.mxu0 %v356
    %376 = vmatpush.bf16.msra.mxu0 %v355
    %377 = vmatpush.bf16.msra.mxu0 %v354
    %378 = vmatmul.bf16.gmra.mxu0 %v258
    %v379 = vpop.f32.mrf.mxu0
    %v380 = vadd.f32 %v128, %v379
    %v381 = vpop.f32.mrf.mxu0
    %v382 = vadd.f32 %v128, %v381
    %383 = vmatmul.bf16.gmra.mxu0 %v259
    %v384 = vpop.f32.mrf.mxu0
    %v385 = vadd.f32 %v128, %v384
    %v386 = vpop.f32.mrf.mxu0
    %v387 = vadd.f32 %v128, %v386
    %388 = vmatmul.bf16.gmra.mxu0 %v260
    %v389 = vpop.f32.mrf.mxu0
    %v390 = vadd.f32 %v128, %v389
    %v391 = vpop.f32.mrf.mxu0
    %v392 = vadd.f32 %v128, %v391
    %393 = vmatmul.bf16.gmra.mxu0 %v261
    %v394 = vpop.f32.mrf.mxu0
    %v395 = vadd.f32 %v128, %v394
    %v396 = vpop.f32.mrf.mxu0
    %v397 = vadd.f32 %v128, %v396
    %398 = vmatmul.bf16.gmra.mxu0 %v262
    %v399 = vpop.f32.mrf.mxu0
    %v400 = vadd.f32 %v128, %v399
    %v401 = vpop.f32.mrf.mxu0
    %v402 = vadd.f32 %v128, %v401
    %403 = vmatmul.bf16.gmra.mxu0 %v263
    %v404 = vpop.f32.mrf.mxu0
    %v405 = vadd.f32 %v128, %v404
    %v406 = vpop.f32.mrf.mxu0
    %v407 = vadd.f32 %v128, %v406
    %408 = vmatmul.bf16.gmra.mxu0 %v264
    %v409 = vpop.f32.mrf.mxu0
    %v410 = vadd.f32 %v128, %v409
    %v411 = vpop.f32.mrf.mxu0
    %v412 = vadd.f32 %v128, %v411
    %413 = vmatmul.bf16.gmra.mxu0 %v265
    %v414 = vpop.f32.mrf.mxu0
    %v415 = vadd.f32 %v128, %v414
    %v416 = vpop.f32.mrf.mxu0
    %v417 = vadd.f32 %v128, %v416
    %418 = vmatmul.bf16.gmra.mxu0 %v266
    %v419 = vpop.f32.mrf.mxu0
    %v420 = vadd.f32 %v128, %v419
    %v421 = vpop.f32.mrf.mxu0
    %v422 = vadd.f32 %v128, %v421
    %423 = vmatmul.bf16.gmra.mxu0 %v267
    %v424 = vpop.f32.mrf.mxu0
    %v425 = vadd.f32 %v128, %v424
    %v426 = vpop.f32.mrf.mxu0
    %v427 = vadd.f32 %v128, %v426
    %428 = vmatmul.bf16.gmra.mxu0 %v268
    %v429 = vpop.f32.mrf.mxu0
    %v430 = vadd.f32 %v128, %v429
    %v431 = vpop.f32.mrf.mxu0
    %v432 = vadd.f32 %v128, %v431
    %433 = vmatmul.bf16.gmra.mxu0 %v269
    %v434 = vpop.f32.mrf.mxu0
    %v435 = vadd.f32 %v128, %v434
    %v436 = vpop.f32.mrf.mxu0
    %v437 = vadd.f32 %v128, %v436
    %438 = vmatmul.bf16.gmra.mxu0 %v270
    %v439 = vpop.f32.mrf.mxu0
    %v440 = vadd.f32 %v128, %v439
    %v441 = vpop.f32.mrf.mxu0
    %v442 = vadd.f32 %v128, %v441
    %443 = vmatmul.bf16.gmra.mxu0 %v271
    %v444 = vpop.f32.mrf.mxu0
    %v445 = vadd.f32 %v128, %v444
    %v446 = vpop.f32.mrf.mxu0
    %v447 = vadd.f32 %v128, %v446
    %448 = vmatmul.bf16.gmra.mxu0 %v272
    %v449 = vpop.f32.mrf.mxu0
    %v450 = vadd.f32 %v128, %v449
    %v451 = vpop.f32.mrf.mxu0
    %v452 = vadd.f32 %v128, %v451
    %453 = vmatmul.bf16.gmra.mxu0 %v273
    %v454 = vpop.f32.mrf.mxu0
    %v455 = vadd.f32 %v128, %v454
    %v456 = vpop.f32.mrf.mxu0
    %v457 = vadd.f32 %v128, %v456
    %458 = vmatmul.bf16.gmra.mxu0 %v274
    %v459 = vpop.f32.mrf.mxu0
    %v460 = vadd.f32 %v128, %v459
    %v461 = vpop.f32.mrf.mxu0
    %v462 = vadd.f32 %v128, %v461
    %463 = vmatmul.bf16.gmra.mxu0 %v275
    %v464 = vpop.f32.mrf.mxu0
    %v465 = vadd.f32 %v128, %v464
    %v466 = vpop.f32.mrf.mxu0
    %v467 = vadd.f32 %v128, %v466
    %468 = vmatmul.bf16.gmra.mxu0 %v276
    %v469 = vpop.f32.mrf.mxu0
    %v470 = vadd.f32 %v128, %v469
    %v471 = vpop.f32.mrf.mxu0
    %v472 = vadd.f32 %v128, %v471
    %473 = vmatmul.bf16.gmra.mxu0 %v277
    %v474 = vpop.f32.mrf.mxu0
    %v475 = vadd.f32 %v128, %v474
    %v476 = vpop.f32.mrf.mxu0
    %v477 = vadd.f32 %v128, %v476
    %478 = vmatmul.bf16.gmra.mxu0 %v278
    %v479 = vpop.f32.mrf.mxu0
    %v480 = vadd.f32 %v128, %v479
    %v481 = vpop.f32.mrf.mxu0
    %v482 = vadd.f32 %v128, %v481
    %483 = vmatmul.bf16.gmra.mxu0 %v279
    %v484 = vpop.f32.mrf.mxu0
    %v485 = vadd.f32 %v128, %v484
    %v486 = vpop.f32.mrf.mxu0
    %v487 = vadd.f32 %v128, %v486
    %488 = vmatmul.bf16.gmra.mxu0 %v280
    %v489 = vpop.f32.mrf.mxu0
    %v490 = vadd.f32 %v128, %v489
    %v491 = vpop.f32.mrf.mxu0
    %v492 = vadd.f32 %v128, %v491
    %493 = vmatmul.bf16.gmra.mxu0 %v281
    %v494 = vpop.f32.mrf.mxu0
    %v495 = vadd.f32 %v128, %v494
    %v496 = vpop.f32.mrf.mxu0
    %v497 = vadd.f32 %v128, %v496
    %498 = vmatmul.bf16.gmra.mxu0 %v282
    %v499 = vpop.f32.mrf.mxu0
    %v500 = vadd.f32 %v128, %v499
    %v501 = vpop.f32.mrf.mxu0
    %v502 = vadd.f32 %v128, %v501
    %503 = vmatmul.bf16.gmra.mxu0 %v283
    %v504 = vpop.f32.mrf.mxu0
    %v505 = vadd.f32 %v128, %v504
    %v506 = vpop.f32.mrf.mxu0
    %v507 = vadd.f32 %v128, %v506
    %508 = vmatmul.bf16.gmra.mxu0 %v284
    %v509 = vpop.f32.mrf.mxu0
    %v510 = vadd.f32 %v128, %v509
    %v511 = vpop.f32.mrf.mxu0
    %v512 = vadd.f32 %v128, %v511
    %513 = vmatmul.bf16.gmra.mxu0 %v285
    %v514 = vpop.f32.mrf.mxu0
    %v515 = vadd.f32 %v128, %v514
    %v516 = vpop.f32.mrf.mxu0
    %v517 = vadd.f32 %v128, %v516
    %518 = vmatmul.bf16.gmra.mxu0 %v286
    %v519 = vpop.f32.mrf.mxu0
    %v520 = vadd.f32 %v128, %v519
    %v521 = vpop.f32.mrf.mxu0
    %v522 = vadd.f32 %v128, %v521
    %523 = vmatmul.bf16.gmra.mxu0 %v287
    %v524 = vpop.f32.mrf.mxu0
    %v525 = vadd.f32 %v128, %v524
    %v526 = vpop.f32.mrf.mxu0
    %v527 = vadd.f32 %v128, %v526
    %528 = vmatmul.bf16.gmra.mxu0 %v288
    %v529 = vpop.f32.mrf.mxu0
    %v530 = vadd.f32 %v128, %v529
    %v531 = vpop.f32.mrf.mxu0
    %v532 = vadd.f32 %v128, %v531
    %533 = vmatmul.bf16.gmra.mxu0 %v289
    %v534 = vpop.f32.mrf.mxu0
    %v535 = vadd.f32 %v128, %v534
    %v536 = vpop.f32.mrf.mxu0
    %v537 = vadd.f32 %v128, %v536
    %538 = vdwg.mxu0
    %v539 = vpack.c.bf16 %v380, %v380
    %v540 = vpack.c.bf16 %v382, %v382
    %v541 = vpack.c.bf16 %v385, %v385
    %v542 = vpack.c.bf16 %v387, %v387
    %v543 = vpack.c.bf16 %v390, %v390
    %v544 = vpack.c.bf16 %v392, %v392
    %v545 = vpack.c.bf16 %v395, %v395
    %v546 = vpack.c.bf16 %v397, %v397
    %v547 = vpack.c.bf16 %v400, %v400
    %v548 = vpack.c.bf16 %v402, %v402
    %v549 = vpack.c.bf16 %v405, %v405
    %v550 = vpack.c.bf16 %v407, %v407
    %v551 = vpack.c.bf16 %v410, %v410
    %v552 = vpack.c.bf16 %v412, %v412
    %v553 = vpack.c.bf16 %v415, %v415
    %v554 = vpack.c.bf16 %v417, %v417
    %v555 = vpack.c.bf16 %v420, %v420
    %v556 = vpack.c.bf16 %v422, %v422
    %v557 = vpack.c.bf16 %v425, %v425
    %v558 = vpack.c.bf16 %v427, %v427
    %v559 = vpack.c.bf16 %v430, %v430
    %v560 = vpack.c.bf16 %v432, %v432
    %v561 = vpack.c.bf16 %v435, %v435
    %v562 = vpack.c.bf16 %v437, %v437
    %v563 = vpack.c.bf16 %v440, %v440
    %v564 = vpack.c.bf16 %v442, %v442
    %v565 = vpack.c.bf16 %v445, %v445
    %v566 = vpack.c.bf16 %v447, %v447
    %v567 = vpack.c.bf16 %v450, %v450
    %v568 = vpack.c.bf16 %v452, %v452
    %v569 = vpack.c.bf16 %v455, %v455
    %v570 = vpack.c.bf16 %v457, %v457
    %v571 = vpack.c.bf16 %v460, %v460
    %v572 = vpack.c.bf16 %v462, %v462
    %v573 = vpack.c.bf16 %v465, %v465
    %v574 = vpack.c.bf16 %v467, %v467
    %v575 = vpack.c.bf16 %v470, %v470
    %v576 = vpack.c.bf16 %v472, %v472
    %v577 = vpack.c.bf16 %v475, %v475
    %v578 = vpack.c.bf16 %v477, %v477
    %v579 = vpack.c.bf16 %v480, %v480
    %v580 = vpack.c.bf16 %v482, %v482
    %v581 = vpack.c.bf16 %v485, %v485
    %v582 = vpack.c.bf16 %v487, %v487
    %v583 = vpack.c.bf16 %v490, %v490
    %v584 = vpack.c.bf16 %v492, %v492
    %v585 = vpack.c.bf16 %v495, %v495
    %v586 = vpack.c.bf16 %v497, %v497
    %v587 = vpack.c.bf16 %v500, %v500
    %v588 = vpack.c.bf16 %v502, %v502
    %v589 = vpack.c.bf16 %v505, %v505
    %v590 = vpack.c.bf16 %v507, %v507
    %v591 = vpack.c.bf16 %v510, %v510
    %v592 = vpack.c.bf16 %v512, %v512
    %v593 = vpack.c.bf16 %v515, %v515
    %v594 = vpack.c.bf16 %v517, %v517
    %v595 = vpack.c.bf16 %v520, %v520
    %v596 = vpack.c.bf16 %v522, %v522
    %v597 = vpack.c.bf16 %v525, %v525
    %v598 = vpack.c.bf16 %v527, %v527
    %v599 = vpack.c.bf16 %v530, %v530
    %v600 = vpack.c.bf16 %v532, %v532
    %v601 = vpack.c.bf16 %v535, %v535
    %v602 = vpack.c.bf16 %v537, %v537
    %603 = vst [vmem:[%s3] sm:$0xf] %v539
    %604 = vst [vmem:[%s3 + $0x4] sm:$0xf] %v540
    %605 = vst [vmem:[%s3 + $0x8] sm:$0xf] %v541
    %606 = vst [vmem:[%s3 + $0xc] sm:$0xf] %v542
    %607 = vst [vmem:[%s3 + $0x10] sm:$0xf] %v543
    %608 = vst [vmem:[%s3 + $0x14] sm:$0xf] %v544
    %609 = vst [vmem:[%s3 + $0x18] sm:$0xf] %v545
    %610 = vst [vmem:[%s3 + $0x1c] sm:$0xf] %v546
    %611 = vst [vmem:[%s3 + $0x20] sm:$0xf] %v547
    %612 = vst [vmem:[%s3 + $0x24] sm:$0xf] %v548
    %613 = vst [vmem:[%s3 + $0x28] sm:$0xf] %v549
    %614 = vst [vmem:[%s3 + $0x2c] sm:$0xf] %v550
    %615 = vst [vmem:[%s3 + $0x30] sm:$0xf] %v551
    %616 = vst [vmem:[%s3 + $0x34] sm:$0xf] %v552
    %617 = vst [vmem:[%s3 + $0x38] sm:$0xf] %v553
    %618 = vst [vmem:[%s3 + $0x3c] sm:$0xf] %v554
    %619 = vst [vmem:[%s3 + $0x40] sm:$0xf] %v555
    %620 = vst [vmem:[%s3 + $0x44] sm:$0xf] %v556
    %621 = vst [vmem:[%s3 + $0x48] sm:$0xf] %v557
    %622 = vst [vmem:[%s3 + $0x4c] sm:$0xf] %v558
    %623 = vst [vmem:[%s3 + $0x50] sm:$0xf] %v559
    %624 = vst [vmem:[%s3 + $0x54] sm:$0xf] %v560
    %625 = vst [vmem:[%s3 + $0x58] sm:$0xf] %v561
    %626 = vst [vmem:[%s3 + $0x5c] sm:$0xf] %v562
    %627 = vst [vmem:[%s3 + $0x60] sm:$0xf] %v563
    %628 = vst [vmem:[%s3 + $0x64] sm:$0xf] %v564
    %629 = vst [vmem:[%s3 + $0x68] sm:$0xf] %v565
    %630 = vst [vmem:[%s3 + $0x6c] sm:$0xf] %v566
    %631 = vst [vmem:[%s3 + $0x70] sm:$0xf] %v567
    %632 = vst [vmem:[%s3 + $0x74] sm:$0xf] %v568
    %633 = vst [vmem:[%s3 + $0x78] sm:$0xf] %v569
    %634 = vst [vmem:[%s3 + $0x7c] sm:$0xf] %v570
    %635 = vst [vmem:[%s3 + $0x80] sm:$0xf] %v571
    %636 = vst [vmem:[%s3 + $0x84] sm:$0xf] %v572
    %637 = vst [vmem:[%s3 + $0x88] sm:$0xf] %v573
    %638 = vst [vmem:[%s3 + $0x8c] sm:$0xf] %v574
    %639 = vst [vmem:[%s3 + $0x90] sm:$0xf] %v575
    %640 = vst [vmem:[%s3 + $0x94] sm:$0xf] %v576
    %641 = vst [vmem:[%s3 + $0x98] sm:$0xf] %v577
    %642 = vst [vmem:[%s3 + $0x9c] sm:$0xf] %v578
    %643 = vst [vmem:[%s3 + $0xa0] sm:$0xf] %v579
    %644 = vst [vmem:[%s3 + $0xa4] sm:$0xf] %v580
    %645 = vst [vmem:[%s3 + $0xa8] sm:$0xf] %v581
    %646 = vst [vmem:[%s3 + $0xac] sm:$0xf] %v582
    %647 = vst [vmem:[%s3 + $0xb0] sm:$0xf] %v583
    %648 = vst [vmem:[%s3 + $0xb4] sm:$0xf] %v584
    %649 = vst [vmem:[%s3 + $0xb8] sm:$0xf] %v585
    %650 = vst [vmem:[%s3 + $0xbc] sm:$0xf] %v586
    %651 = vst [vmem:[%s3 + $0xc0] sm:$0xf] %v587
    %652 = vst [vmem:[%s3 + $0xc4] sm:$0xf] %v588
    %653 = vst [vmem:[%s3 + $0xc8] sm:$0xf] %v589
    %654 = vst [vmem:[%s3 + $0xcc] sm:$0xf] %v590
    %655 = vst [vmem:[%s3 + $0xd0] sm:$0xf] %v591
    %656 = vst [vmem:[%s3 + $0xd4] sm:$0xf] %v592
    %657 = vst [vmem:[%s3 + $0xd8] sm:$0xf] %v593
    %658 = vst [vmem:[%s3 + $0xdc] sm:$0xf] %v594
    %659 = vst [vmem:[%s3 + $0xe0] sm:$0xf] %v595
    %660 = vst [vmem:[%s3 + $0xe4] sm:$0xf] %v596
    %661 = vst [vmem:[%s3 + $0xe8] sm:$0xf] %v597
    %662 = vst [vmem:[%s3 + $0xec] sm:$0xf] %v598
    %663 = vst [vmem:[%s3 + $0xf0] sm:$0xf] %v599
    %664 = vst [vmem:[%s3 + $0xf4] sm:$0xf] %v600
    %665 = vst [vmem:[%s3 + $0xf8] sm:$0xf] %v601
    %666 = vst [vmem:[%s3 + $0xfc] sm:$0xf] %v602
    // Predicated region
    $region22: #{gcn_forward_padded.4} parent=1 // pred_check
      _
    $region23: #{gcn_forward_padded.4} parent=1 // pred_check_branch
      %668 = sbr.rel (0) target = $region25
    $region24: #{gcn_forward_padded.4} parent=1 // pred_region
      _
    $region25: #{gcn_forward_padded.4} parent=1 // pred_fallthru
      _
    // Predicated region
    $region26: #{gcn_forward_padded.4} parent=1 // pred_check
      _
    $region27: #{gcn_forward_padded.4} parent=1 // pred_check_branch
      %670 = sbr.rel (0) target = $region29
    $region28: #{gcn_forward_padded.4} parent=1 // pred_region
      _
    $region29: #{gcn_forward_padded.4} parent=1 // pred_fallthru
      _
    %671 = vsyncpa [#allocation3], 1
    %672 = vsyncpa [#allocation5], 1

// kernel: gcn_forward_padded.7
$region0: #{gcn_forward_padded.7}
  #allocation0 [shape = 'u32[]', space=smem, size = 0x4, offset = 0x4, fixed_abs, tag = 'smem constant byte address 0x4 - core index']
  #allocation1 [shape = 'u32[72,128]{1,0:T(1,128)}', space=vmem, size = 0x9000, scoped, tag = 'internal scratch']
  %s0 = inlined_call_operand.hbm [shape: bf16[512,512], index: 0, kind: input, shape index: {}]
  %s1 = inlined_call_operand.vmem [shape: bf16[512,128], index: 1, kind: input, shape index: {}]
  %s2 = inlined_call_operand.hbm [shape: f32[512,128], index: 2, kind: output, shape index: {}]
  %s3 = sld [smem:[#allocation0]]
  $region30: #{gcn_forward_padded.7} parent=0
    _
  %s5 = ssub.s32 1, %s3
  %s6 = scalar_select 0, %s5, %s3
  $region1: #{gcn_forward_padded.7} parent=0
    #allocation2 [shape = 'u8[524288]{0}', space=vmem, size = 0x80000, scoped, tag = 'input window, operand 0, single buffered']
    #allocation3 [shape = 's32[1]{0}', space=sflag, size = 0x4, scoped, tag = 'scoped memory for gcn_forward_padded.7']
    #allocation4 [shape = 's32[1]{0}', space=sflag, size = 0x4, scoped, tag = 'scoped memory for gcn_forward_padded.7']
    #allocation5 [shape = 'u8[262144]{0}', space=vmem, size = 0x40000, scoped, tag = 'output window, operand 0, single buffered']
    %7 = vsyncpa [#allocation3], 0
    %8 = vsyncpa [#allocation4], 0
    // Predicated region
    $region2: #{gcn_forward_padded.7} parent=1 // pred_check
      _
    $region3: #{gcn_forward_padded.7} parent=1 // pred_check_branch
      %10 = sbr.rel (0) target = $region5
    $region4: #{gcn_forward_padded.7} parent=1 // pred_region
      %12 = vsyncadd [#allocation3], 0
      %s13 = sshll.u32 %s0, 4
      %s14 = int_to_ptr.hbm [resolvable:$true] %s13
      %s15 = sshll.u32 [#allocation2], 4
      %s16 = int_to_ptr.vmem [resolvable:$true] %s15
      %21 = dma.hbm_to_vmem [thread:$0]  %s14, 16384, %s16, [#allocation3], 256, 256, 16
    $region5: #{gcn_forward_padded.7} parent=1 // pred_fallthru
      _
    // Predicated region
    $region6: #{gcn_forward_padded.7} parent=1 // pred_check
      _
    $region7: #{gcn_forward_padded.7} parent=1 // pred_check_branch
      %23 = sbr.rel (0) target = $region9
    $region8: #{gcn_forward_padded.7} parent=1 // pred_region
      _
    $region9: #{gcn_forward_padded.7} parent=1 // pred_fallthru
      _
    // Predicated region
    $region10: #{gcn_forward_padded.7} parent=1 // pred_check
      _
    $region11: #{gcn_forward_padded.7} parent=1 // pred_check_branch
      %25 = sbr.rel (0) target = $region13
    $region12: #{gcn_forward_padded.7} parent=1 // pred_region
      %27 = dma.done [#allocation3], 16384
    $region13: #{gcn_forward_padded.7} parent=1 // pred_fallthru
      _
    %p28 = scmp.eq.s32.totalorder 0, 0
    // Predicated region
    $region14: #{gcn_forward_padded.7} parent=1 // pred_check
      %p29 = pneg %p28
    $region15: #{gcn_forward_padded.7} parent=1 // pred_check_branch
      %31 = sbr.rel (%p29) target = $region17
    $region16: #{gcn_forward_padded.7} parent=1 // pred_region
      %32 = vst [vmem:[#allocation5] sm:$0xff] 0.0
      %33 = vst [vmem:[#allocation5 + $0x8] sm:$0xff] 0.0
      %34 = vst [vmem:[#allocation5 + $0x10] sm:$0xff] 0.0
      %35 = vst [vmem:[#allocation5 + $0x18] sm:$0xff] 0.0
      %36 = vst [vmem:[#allocation5 + $0x20] sm:$0xff] 0.0
      %37 = vst [vmem:[#allocation5 + $0x28] sm:$0xff] 0.0
      %38 = vst [vmem:[#allocation5 + $0x30] sm:$0xff] 0.0
      %39 = vst [vmem:[#allocation5 + $0x38] sm:$0xff] 0.0
      %40 = vst [vmem:[#allocation5 + $0x40] sm:$0xff] 0.0
      %41 = vst [vmem:[#allocation5 + $0x48] sm:$0xff] 0.0
      %42 = vst [vmem:[#allocation5 + $0x50] sm:$0xff] 0.0
      %43 = vst [vmem:[#allocation5 + $0x58] sm:$0xff] 0.0
      %44 = vst [vmem:[#allocation5 + $0x60] sm:$0xff] 0.0
      %45 = vst [vmem:[#allocation5 + $0x68] sm:$0xff] 0.0
      %46 = vst [vmem:[#allocation5 + $0x70] sm:$0xff] 0.0
      %47 = vst [vmem:[#allocation5 + $0x78] sm:$0xff] 0.0
      %48 = vst [vmem:[#allocation5 + $0x80] sm:$0xff] 0.0
      %49 = vst [vmem:[#allocation5 + $0x88] sm:$0xff] 0.0
      %50 = vst [vmem:[#allocation5 + $0x90] sm:$0xff] 0.0
      %51 = vst [vmem:[#allocation5 + $0x98] sm:$0xff] 0.0
      %52 = vst [vmem:[#allocation5 + $0xa0] sm:$0xff] 0.0
      %53 = vst [vmem:[#allocation5 + $0xa8] sm:$0xff] 0.0
      %54 = vst [vmem:[#allocation5 + $0xb0] sm:$0xff] 0.0
      %55 = vst [vmem:[#allocation5 + $0xb8] sm:$0xff] 0.0
      %56 = vst [vmem:[#allocation5 + $0xc0] sm:$0xff] 0.0
      %57 = vst [vmem:[#allocation5 + $0xc8] sm:$0xff] 0.0
      %58 = vst [vmem:[#allocation5 + $0xd0] sm:$0xff] 0.0
      %59 = vst [vmem:[#allocation5 + $0xd8] sm:$0xff] 0.0
      %60 = vst [vmem:[#allocation5 + $0xe0] sm:$0xff] 0.0
      %61 = vst [vmem:[#allocation5 + $0xe8] sm:$0xff] 0.0
      %62 = vst [vmem:[#allocation5 + $0xf0] sm:$0xff] 0.0
      %63 = vst [vmem:[#allocation5 + $0xf8] sm:$0xff] 0.0
      %64 = vst [vmem:[#allocation5 + $0x100] sm:$0xff] 0.0
      %65 = vst [vmem:[#allocation5 + $0x108] sm:$0xff] 0.0
      %66 = vst [vmem:[#allocation5 + $0x110] sm:$0xff] 0.0
      %67 = vst [vmem:[#allocation5 + $0x118] sm:$0xff] 0.0
      %68 = vst [vmem:[#allocation5 + $0x120] sm:$0xff] 0.0
      %69 = vst [vmem:[#allocation5 + $0x128] sm:$0xff] 0.0
      %70 = vst [vmem:[#allocation5 + $0x130] sm:$0xff] 0.0
      %71 = vst [vmem:[#allocation5 + $0x138] sm:$0xff] 0.0
      %72 = vst [vmem:[#allocation5 + $0x140] sm:$0xff] 0.0
      %73 = vst [vmem:[#allocation5 + $0x148] sm:$0xff] 0.0
      %74 = vst [vmem:[#allocation5 + $0x150] sm:$0xff] 0.0
      %75 = vst [vmem:[#allocation5 + $0x158] sm:$0xff] 0.0
      %76 = vst [vmem:[#allocation5 + $0x160] sm:$0xff] 0.0
      %77 = vst [vmem:[#allocation5 + $0x168] sm:$0xff] 0.0
      %78 = vst [vmem:[#allocation5 + $0x170] sm:$0xff] 0.0
      %79 = vst [vmem:[#allocation5 + $0x178] sm:$0xff] 0.0
      %80 = vst [vmem:[#allocation5 + $0x180] sm:$0xff] 0.0
      %81 = vst [vmem:[#allocation5 + $0x188] sm:$0xff] 0.0
      %82 = vst [vmem:[#allocation5 + $0x190] sm:$0xff] 0.0
      %83 = vst [vmem:[#allocation5 + $0x198] sm:$0xff] 0.0
      %84 = vst [vmem:[#allocation5 + $0x1a0] sm:$0xff] 0.0
      %85 = vst [vmem:[#allocation5 + $0x1a8] sm:$0xff] 0.0
      %86 = vst [vmem:[#allocation5 + $0x1b0] sm:$0xff] 0.0
      %87 = vst [vmem:[#allocation5 + $0x1b8] sm:$0xff] 0.0
      %88 = vst [vmem:[#allocation5 + $0x1c0] sm:$0xff] 0.0
      %89 = vst [vmem:[#allocation5 + $0x1c8] sm:$0xff] 0.0
      %90 = vst [vmem:[#allocation5 + $0x1d0] sm:$0xff] 0.0
      %91 = vst [vmem:[#allocation5 + $0x1d8] sm:$0xff] 0.0
      %92 = vst [vmem:[#allocation5 + $0x1e0] sm:$0xff] 0.0
      %93 = vst [vmem:[#allocation5 + $0x1e8] sm:$0xff] 0.0
      %94 = vst [vmem:[#allocation5 + $0x1f0] sm:$0xff] 0.0
      %95 = vst [vmem:[#allocation5 + $0x1f8] sm:$0xff] 0.0
    $region17: #{gcn_forward_padded.7} parent=1 // pred_fallthru
      _
    %s96 = smul.u32 0, 512
    %v97 = vld [vmem:[#allocation5] sm:$0xff]
    %v98 = vld [vmem:[#allocation5 + $0x8] sm:$0xff]
    %v99 = vld [vmem:[#allocation5 + $0x10] sm:$0xff]
    %v100 = vld [vmem:[#allocation5 + $0x18] sm:$0xff]
    %v101 = vld [vmem:[#allocation5 + $0x20] sm:$0xff]
    %v102 = vld [vmem:[#allocation5 + $0x28] sm:$0xff]
    %v103 = vld [vmem:[#allocation5 + $0x30] sm:$0xff]
    %v104 = vld [vmem:[#allocation5 + $0x38] sm:$0xff]
    %v105 = vld [vmem:[#allocation5 + $0x40] sm:$0xff]
    %v106 = vld [vmem:[#allocation5 + $0x48] sm:$0xff]
    %v107 = vld [vmem:[#allocation5 + $0x50] sm:$0xff]
    %v108 = vld [vmem:[#allocation5 + $0x58] sm:$0xff]
    %v109 = vld [vmem:[#allocation5 + $0x60] sm:$0xff]
    %v110 = vld [vmem:[#allocation5 + $0x68] sm:$0xff]
    %v111 = vld [vmem:[#allocation5 + $0x70] sm:$0xff]
    %v112 = vld [vmem:[#allocation5 + $0x78] sm:$0xff]
    %v113 = vld [vmem:[#allocation5 + $0x80] sm:$0xff]
    %v114 = vld [vmem:[#allocation5 + $0x88] sm:$0xff]
    %v115 = vld [vmem:[#allocation5 + $0x90] sm:$0xff]
    %v116 = vld [vmem:[#allocation5 + $0x98] sm:$0xff]
    %v117 = vld [vmem:[#allocation5 + $0xa0] sm:$0xff]
    %v118 = vld [vmem:[#allocation5 + $0xa8] sm:$0xff]
    %v119 = vld [vmem:[#allocation5 + $0xb0] sm:$0xff]
    %v120 = vld [vmem:[#allocation5 + $0xb8] sm:$0xff]
    %v121 = vld [vmem:[#allocation5 + $0xc0] sm:$0xff]
    %v122 = vld [vmem:[#allocation5 + $0xc8] sm:$0xff]
    %v123 = vld [vmem:[#allocation5 + $0xd0] sm:$0xff]
    %v124 = vld [vmem:[#allocation5 + $0xd8] sm:$0xff]
    %v125 = vld [vmem:[#allocation5 + $0xe0] sm:$0xff]
    %v126 = vld [vmem:[#allocation5 + $0xe8] sm:$0xff]
    %v127 = vld [vmem:[#allocation5 + $0xf0] sm:$0xff]
    %v128 = vld [vmem:[#allocation5 + $0xf8] sm:$0xff]
    %v129 = vld [vmem:[#allocation5 + $0x100] sm:$0xff]
    %v130 = vld [vmem:[#allocation5 + $0x108] sm:$0xff]
    %v131 = vld [vmem:[#allocation5 + $0x110] sm:$0xff]
    %v132 = vld [vmem:[#allocation5 + $0x118] sm:$0xff]
    %v133 = vld [vmem:[#allocation5 + $0x120] sm:$0xff]
    %v134 = vld [vmem:[#allocation5 + $0x128] sm:$0xff]
    %v135 = vld [vmem:[#allocation5 + $0x130] sm:$0xff]
    %v136 = vld [vmem:[#allocation5 + $0x138] sm:$0xff]
    %v137 = vld [vmem:[#allocation5 + $0x140] sm:$0xff]
    %v138 = vld [vmem:[#allocation5 + $0x148] sm:$0xff]
    %v139 = vld [vmem:[#allocation5 + $0x150] sm:$0xff]
    %v140 = vld [vmem:[#allocation5 + $0x158] sm:$0xff]
    %v141 = vld [vmem:[#allocation5 + $0x160] sm:$0xff]
    %v142 = vld [vmem:[#allocation5 + $0x168] sm:$0xff]
    %v143 = vld [vmem:[#allocation5 + $0x170] sm:$0xff]
    %v144 = vld [vmem:[#allocation5 + $0x178] sm:$0xff]
    %v145 = vld [vmem:[#allocation5 + $0x180] sm:$0xff]
    %v146 = vld [vmem:[#allocation5 + $0x188] sm:$0xff]
    %v147 = vld [vmem:[#allocation5 + $0x190] sm:$0xff]
    %v148 = vld [vmem:[#allocation5 + $0x198] sm:$0xff]
    %v149 = vld [vmem:[#allocation5 + $0x1a0] sm:$0xff]
    %v150 = vld [vmem:[#allocation5 + $0x1a8] sm:$0xff]
    %v151 = vld [vmem:[#allocation5 + $0x1b0] sm:$0xff]
    %v152 = vld [vmem:[#allocation5 + $0x1b8] sm:$0xff]
    %v153 = vld [vmem:[#allocation5 + $0x1c0] sm:$0xff]
    %v154 = vld [vmem:[#allocation5 + $0x1c8] sm:$0xff]
    %v155 = vld [vmem:[#allocation5 + $0x1d0] sm:$0xff]
    %v156 = vld [vmem:[#allocation5 + $0x1d8] sm:$0xff]
    %v157 = vld [vmem:[#allocation5 + $0x1e0] sm:$0xff]
    %v158 = vld [vmem:[#allocation5 + $0x1e8] sm:$0xff]
    %v159 = vld [vmem:[#allocation5 + $0x1f0] sm:$0xff]
    %v160 = vld [vmem:[#allocation5 + $0x1f8] sm:$0xff]
    %v161 = vld [vmem:[#allocation2] sm:$0xff]
    %v162 = vld [vmem:[#allocation2 + $0x8] sm:$0xff]
    %v163 = vld [vmem:[#allocation2 + $0x10] sm:$0xff]
    %v164 = vld [vmem:[#allocation2 + $0x18] sm:$0xff]
    %v165 = vld [vmem:[#allocation2 + $0x20] sm:$0xff]
    %v166 = vld [vmem:[#allocation2 + $0x28] sm:$0xff]
    %v167 = vld [vmem:[#allocation2 + $0x30] sm:$0xff]
    %v168 = vld [vmem:[#allocation2 + $0x38] sm:$0xff]
    %v169 = vld [vmem:[#allocation2 + $0x40] sm:$0xff]
    %v170 = vld [vmem:[#allocation2 + $0x48] sm:$0xff]
    %v171 = vld [vmem:[#allocation2 + $0x50] sm:$0xff]
    %v172 = vld [vmem:[#allocation2 + $0x58] sm:$0xff]
    %v173 = vld [vmem:[#allocation2 + $0x60] sm:$0xff]
    %v174 = vld [vmem:[#allocation2 + $0x68] sm:$0xff]
    %v175 = vld [vmem:[#allocation2 + $0x70] sm:$0xff]
    %v176 = vld [vmem:[#allocation2 + $0x78] sm:$0xff]
    %v177 = vld [vmem:[#allocation2 + $0x80] sm:$0xff]
    %v178 = vld [vmem:[#allocation2 + $0x88] sm:$0xff]
    %v179 = vld [vmem:[#allocation2 + $0x90] sm:$0xff]
    %v180 = vld [vmem:[#allocation2 + $0x98] sm:$0xff]
    %v181 = vld [vmem:[#allocation2 + $0xa0] sm:$0xff]
    %v182 = vld [vmem:[#allocation2 + $0xa8] sm:$0xff]
    %v183 = vld [vmem:[#allocation2 + $0xb0] sm:$0xff]
    %v184 = vld [vmem:[#allocation2 + $0xb8] sm:$0xff]
    %v185 = vld [vmem:[#allocation2 + $0xc0] sm:$0xff]
    %v186 = vld [vmem:[#allocation2 + $0xc8] sm:$0xff]
    %v187 = vld [vmem:[#allocation2 + $0xd0] sm:$0xff]
    %v188 = vld [vmem:[#allocation2 + $0xd8] sm:$0xff]
    %v189 = vld [vmem:[#allocation2 + $0xe0] sm:$0xff]
    %v190 = vld [vmem:[#allocation2 + $0xe8] sm:$0xff]
    %v191 = vld [vmem:[#allocation2 + $0xf0] sm:$0xff]
    %v192 = vld [vmem:[#allocation2 + $0xf8] sm:$0xff]
    %v193 = vld [vmem:[#allocation2 + $0x100] sm:$0xff]
    %v194 = vld [vmem:[#allocation2 + $0x108] sm:$0xff]
    %v195 = vld [vmem:[#allocation2 + $0x110] sm:$0xff]
    %v196 = vld [vmem:[#allocation2 + $0x118] sm:$0xff]
    %v197 = vld [vmem:[#allocation2 + $0x120] sm:$0xff]
    %v198 = vld [vmem:[#allocation2 + $0x128] sm:$0xff]
    %v199 = vld [vmem:[#allocation2 + $0x130] sm:$0xff]
    %v200 = vld [vmem:[#allocation2 + $0x138] sm:$0xff]
    %v201 = vld [vmem:[#allocation2 + $0x140] sm:$0xff]
    %v202 = vld [vmem:[#allocation2 + $0x148] sm:$0xff]
    %v203 = vld [vmem:[#allocation2 + $0x150] sm:$0xff]
    %v204 = vld [vmem:[#allocation2 + $0x158] sm:$0xff]
    %v205 = vld [vmem:[#allocation2 + $0x160] sm:$0xff]
    %v206 = vld [vmem:[#allocation2 + $0x168] sm:$0xff]
    %v207 = vld [vmem:[#allocation2 + $0x170] sm:$0xff]
    %v208 = vld [vmem:[#allocation2 + $0x178] sm:$0xff]
    %v209 = vld [vmem:[#allocation2 + $0x180] sm:$0xff]
    %v210 = vld [vmem:[#allocation2 + $0x188] sm:$0xff]
    %v211 = vld [vmem:[#allocation2 + $0x190] sm:$0xff]
    %v212 = vld [vmem:[#allocation2 + $0x198] sm:$0xff]
    %v213 = vld [vmem:[#allocation2 + $0x1a0] sm:$0xff]
    %v214 = vld [vmem:[#allocation2 + $0x1a8] sm:$0xff]
    %v215 = vld [vmem:[#allocation2 + $0x1b0] sm:$0xff]
    %v216 = vld [vmem:[#allocation2 + $0x1b8] sm:$0xff]
    %v217 = vld [vmem:[#allocation2 + $0x1c0] sm:$0xff]
    %v218 = vld [vmem:[#allocation2 + $0x1c8] sm:$0xff]
    %v219 = vld [vmem:[#allocation2 + $0x1d0] sm:$0xff]
    %v220 = vld [vmem:[#allocation2 + $0x1d8] sm:$0xff]
    %v221 = vld [vmem:[#allocation2 + $0x1e0] sm:$0xff]
    %v222 = vld [vmem:[#allocation2 + $0x1e8] sm:$0xff]
    %v223 = vld [vmem:[#allocation2 + $0x1f0] sm:$0xff]
    %v224 = vld [vmem:[#allocation2 + $0x1f8] sm:$0xff]
    %v225 = vld [vmem:[#allocation2 + $0x200] sm:$0xff]
    %v226 = vld [vmem:[#allocation2 + $0x208] sm:$0xff]
    %v227 = vld [vmem:[#allocation2 + $0x210] sm:$0xff]
    %v228 = vld [vmem:[#allocation2 + $0x218] sm:$0xff]
    %v229 = vld [vmem:[#allocation2 + $0x220] sm:$0xff]
    %v230 = vld [vmem:[#allocation2 + $0x228] sm:$0xff]
    %v231 = vld [vmem:[#allocation2 + $0x230] sm:$0xff]
    %v232 = vld [vmem:[#allocation2 + $0x238] sm:$0xff]
    %v233 = vld [vmem:[#allocation2 + $0x240] sm:$0xff]
    %v234 = vld [vmem:[#allocation2 + $0x248] sm:$0xff]
    %v235 = vld [vmem:[#allocation2 + $0x250] sm:$0xff]
    %v236 = vld [vmem:[#allocation2 + $0x258] sm:$0xff]
    %v237 = vld [vmem:[#allocation2 + $0x260] sm:$0xff]
    %v238 = vld [vmem:[#allocation2 + $0x268] sm:$0xff]
    %v239 = vld [vmem:[#allocation2 + $0x270] sm:$0xff]
    %v240 = vld [vmem:[#allocation2 + $0x278] sm:$0xff]
    %v241 = vld [vmem:[#allocation2 + $0x280] sm:$0xff]
    %v242 = vld [vmem:[#allocation2 + $0x288] sm:$0xff]
    %v243 = vld [vmem:[#allocation2 + $0x290] sm:$0xff]
    %v244 = vld [vmem:[#allocation2 + $0x298] sm:$0xff]
    %v245 = vld [vmem:[#allocation2 + $0x2a0] sm:$0xff]
    %v246 = vld [vmem:[#allocation2 + $0x2a8] sm:$0xff]
    %v247 = vld [vmem:[#allocation2 + $0x2b0] sm:$0xff]
    %v248 = vld [vmem:[#allocation2 + $0x2b8] sm:$0xff]
    %v249 = vld [vmem:[#allocation2 + $0x2c0] sm:$0xff]
    %v250 = vld [vmem:[#allocation2 + $0x2c8] sm:$0xff]
    %v251 = vld [vmem:[#allocation2 + $0x2d0] sm:$0xff]
    %v252 = vld [vmem:[#allocation2 + $0x2d8] sm:$0xff]
    %v253 = vld [vmem:[#allocation2 + $0x2e0] sm:$0xff]
    %v254 = vld [vmem:[#allocation2 + $0x2e8] sm:$0xff]
    %v255 = vld [vmem:[#allocation2 + $0x2f0] sm:$0xff]
    %v256 = vld [vmem:[#allocation2 + $0x2f8] sm:$0xff]
    %v257 = vld [vmem:[#allocation2 + $0x300] sm:$0xff]
    %v258 = vld [vmem:[#allocation2 + $0x308] sm:$0xff]
    %v259 = vld [vmem:[#allocation2 + $0x310] sm:$0xff]
    %v260 = vld [vmem:[#allocation2 + $0x318] sm:$0xff]
    %v261 = vld [vmem:[#allocation2 + $0x320] sm:$0xff]
    %v262 = vld [vmem:[#allocation2 + $0x328] sm:$0xff]
    %v263 = vld [vmem:[#allocation2 + $0x330] sm:$0xff]
    %v264 = vld [vmem:[#allocation2 + $0x338] sm:$0xff]
    %v265 = vld [vmem:[#allocation2 + $0x340] sm:$0xff]
    %v266 = vld [vmem:[#allocation2 + $0x348] sm:$0xff]
    %v267 = vld [vmem:[#allocation2 + $0x350] sm:$0xff]
    %v268 = vld [vmem:[#allocation2 + $0x358] sm:$0xff]
    %v269 = vld [vmem:[#allocation2 + $0x360] sm:$0xff]
    %v270 = vld [vmem:[#allocation2 + $0x368] sm:$0xff]
    %v271 = vld [vmem:[#allocation2 + $0x370] sm:$0xff]
    %v272 = vld [vmem:[#allocation2 + $0x378] sm:$0xff]
    %v273 = vld [vmem:[#allocation2 + $0x380] sm:$0xff]
    %v274 = vld [vmem:[#allocation2 + $0x388] sm:$0xff]
    %v275 = vld [vmem:[#allocation2 + $0x390] sm:$0xff]
    %v276 = vld [vmem:[#allocation2 + $0x398] sm:$0xff]
    %v277 = vld [vmem:[#allocation2 + $0x3a0] sm:$0xff]
    %v278 = vld [vmem:[#allocation2 + $0x3a8] sm:$0xff]
    %v279 = vld [vmem:[#allocation2 + $0x3b0] sm:$0xff]
    %v280 = vld [vmem:[#allocation2 + $0x3b8] sm:$0xff]
    %v281 = vld [vmem:[#allocation2 + $0x3c0] sm:$0xff]
    %v282 = vld [vmem:[#allocation2 + $0x3c8] sm:$0xff]
    %v283 = vld [vmem:[#allocation2 + $0x3d0] sm:$0xff]
    %v284 = vld [vmem:[#allocation2 + $0x3d8] sm:$0xff]
    %v285 = vld [vmem:[#allocation2 + $0x3e0] sm:$0xff]
    %v286 = vld [vmem:[#allocation2 + $0x3e8] sm:$0xff]
    %v287 = vld [vmem:[#allocation2 + $0x3f0] sm:$0xff]
    %v288 = vld [vmem:[#allocation2 + $0x3f8] sm:$0xff]
    %s289 = sshra.s32 %s96, 3
    %s290 = sand.u32 %s96, 7
    %s291 = smul.addr %s289, 4
    %s292 = scalar_lea.vmem %s1, %s291
    %v293 = vld [vmem:[%s292] sm:$0xf]
    %v294 = vld [vmem:[%s292 + $0x4] sm:$0xf]
    %v295 = vld [vmem:[%s292 + $0x8] sm:$0xf]
    %v296 = vld [vmem:[%s292 + $0xc] sm:$0xf]
    %v297 = vld [vmem:[%s292 + $0x10] sm:$0xf]
    %v298 = vld [vmem:[%s292 + $0x14] sm:$0xf]
    %v299 = vld [vmem:[%s292 + $0x18] sm:$0xf]
    %v300 = vld [vmem:[%s292 + $0x1c] sm:$0xf]
    %v301 = vld [vmem:[%s292 + $0x20] sm:$0xf]
    %v302 = vld [vmem:[%s292 + $0x24] sm:$0xf]
    %v303 = vld [vmem:[%s292 + $0x28] sm:$0xf]
    %v304 = vld [vmem:[%s292 + $0x2c] sm:$0xf]
    %v305 = vld [vmem:[%s292 + $0x30] sm:$0xf]
    %v306 = vld [vmem:[%s292 + $0x34] sm:$0xf]
    %v307 = vld [vmem:[%s292 + $0x38] sm:$0xf]
    %v308 = vld [vmem:[%s292 + $0x3c] sm:$0xf]
    %v309 = vld [vmem:[%s292 + $0x40] sm:$0xf]
    %v310 = vld [vmem:[%s292 + $0x44] sm:$0xf]
    %v311 = vld [vmem:[%s292 + $0x48] sm:$0xf]
    %v312 = vld [vmem:[%s292 + $0x4c] sm:$0xf]
    %v313 = vld [vmem:[%s292 + $0x50] sm:$0xf]
    %v314 = vld [vmem:[%s292 + $0x54] sm:$0xf]
    %v315 = vld [vmem:[%s292 + $0x58] sm:$0xf]
    %v316 = vld [vmem:[%s292 + $0x5c] sm:$0xf]
    %v317 = vld [vmem:[%s292 + $0x60] sm:$0xf]
    %v318 = vld [vmem:[%s292 + $0x64] sm:$0xf]
    %v319 = vld [vmem:[%s292 + $0x68] sm:$0xf]
    %v320 = vld [vmem:[%s292 + $0x6c] sm:$0xf]
    %v321 = vld [vmem:[%s292 + $0x70] sm:$0xf]
    %v322 = vld [vmem:[%s292 + $0x74] sm:$0xf]
    %v323 = vld [vmem:[%s292 + $0x78] sm:$0xf]
    %v324 = vld [vmem:[%s292 + $0x7c] sm:$0xf]
    %v325 = vld [vmem:[%s292 + $0x80] sm:$0xf]
    %v326 = vld [vmem:[%s292 + $0x84] sm:$0xf]
    %v327 = vld [vmem:[%s292 + $0x88] sm:$0xf]
    %v328 = vld [vmem:[%s292 + $0x8c] sm:$0xf]
    %v329 = vld [vmem:[%s292 + $0x90] sm:$0xf]
    %v330 = vld [vmem:[%s292 + $0x94] sm:$0xf]
    %v331 = vld [vmem:[%s292 + $0x98] sm:$0xf]
    %v332 = vld [vmem:[%s292 + $0x9c] sm:$0xf]
    %v333 = vld [vmem:[%s292 + $0xa0] sm:$0xf]
    %v334 = vld [vmem:[%s292 + $0xa4] sm:$0xf]
    %v335 = vld [vmem:[%s292 + $0xa8] sm:$0xf]
    %v336 = vld [vmem:[%s292 + $0xac] sm:$0xf]
    %v337 = vld [vmem:[%s292 + $0xb0] sm:$0xf]
    %v338 = vld [vmem:[%s292 + $0xb4] sm:$0xf]
    %v339 = vld [vmem:[%s292 + $0xb8] sm:$0xf]
    %v340 = vld [vmem:[%s292 + $0xbc] sm:$0xf]
    %v341 = vld [vmem:[%s292 + $0xc0] sm:$0xf]
    %v342 = vld [vmem:[%s292 + $0xc4] sm:$0xf]
    %v343 = vld [vmem:[%s292 + $0xc8] sm:$0xf]
    %v344 = vld [vmem:[%s292 + $0xcc] sm:$0xf]
    %v345 = vld [vmem:[%s292 + $0xd0] sm:$0xf]
    %v346 = vld [vmem:[%s292 + $0xd4] sm:$0xf]
    %v347 = vld [vmem:[%s292 + $0xd8] sm:$0xf]
    %v348 = vld [vmem:[%s292 + $0xdc] sm:$0xf]
    %v349 = vld [vmem:[%s292 + $0xe0] sm:$0xf]
    %v350 = vld [vmem:[%s292 + $0xe4] sm:$0xf]
    %v351 = vld [vmem:[%s292 + $0xe8] sm:$0xf]
    %v352 = vld [vmem:[%s292 + $0xec] sm:$0xf]
    %v353 = vld [vmem:[%s292 + $0xf0] sm:$0xf]
    %v354 = vld [vmem:[%s292 + $0xf4] sm:$0xf]
    %v355 = vld [vmem:[%s292 + $0xf8] sm:$0xf]
    %v356 = vld [vmem:[%s292 + $0xfc] sm:$0xf]
    %v485 = vunpack.c.l.b16 %v161
    %v486 = vunpack.c.h.b16 %v161
    %v487 = vunpack.c.l.b16 %v162
    %v488 = vunpack.c.h.b16 %v162
    %v489 = vunpack.c.l.b16 %v163
    %v490 = vunpack.c.h.b16 %v163
    %v491 = vunpack.c.l.b16 %v164
    %v492 = vunpack.c.h.b16 %v164
    %v493 = vunpack.c.l.b16 %v165
    %v494 = vunpack.c.h.b16 %v165
    %v495 = vunpack.c.l.b16 %v166
    %v496 = vunpack.c.h.b16 %v166
    %v497 = vunpack.c.l.b16 %v167
    %v498 = vunpack.c.h.b16 %v167
    %v499 = vunpack.c.l.b16 %v168
    %v500 = vunpack.c.h.b16 %v168
    %v501 = vunpack.c.l.b16 %v169
    %v502 = vunpack.c.h.b16 %v169
    %v503 = vunpack.c.l.b16 %v170
    %v504 = vunpack.c.h.b16 %v170
    %v505 = vunpack.c.l.b16 %v171
    %v506 = vunpack.c.h.b16 %v171
    %v507 = vunpack.c.l.b16 %v172
    %v508 = vunpack.c.h.b16 %v172
    %v509 = vunpack.c.l.b16 %v173
    %v510 = vunpack.c.h.b16 %v173
    %v511 = vunpack.c.l.b16 %v174
    %v512 = vunpack.c.h.b16 %v174
    %v513 = vunpack.c.l.b16 %v175
    %v514 = vunpack.c.h.b16 %v175
    %v515 = vunpack.c.l.b16 %v176
    %v516 = vunpack.c.h.b16 %v176
    %v517 = vunpack.c.l.b16 %v177
    %v518 = vunpack.c.h.b16 %v177
    %v519 = vunpack.c.l.b16 %v178
    %v520 = vunpack.c.h.b16 %v178
    %v521 = vunpack.c.l.b16 %v179
    %v522 = vunpack.c.h.b16 %v179
    %v523 = vunpack.c.l.b16 %v180
    %v524 = vunpack.c.h.b16 %v180
    %v525 = vunpack.c.l.b16 %v181
    %v526 = vunpack.c.h.b16 %v181
    %v527 = vunpack.c.l.b16 %v182
    %v528 = vunpack.c.h.b16 %v182
    %v529 = vunpack.c.l.b16 %v183
    %v530 = vunpack.c.h.b16 %v183
    %v531 = vunpack.c.l.b16 %v184
    %v532 = vunpack.c.h.b16 %v184
    %v533 = vunpack.c.l.b16 %v185
    %v534 = vunpack.c.h.b16 %v185
    %v535 = vunpack.c.l.b16 %v186
    %v536 = vunpack.c.h.b16 %v186
    %v537 = vunpack.c.l.b16 %v187
    %v538 = vunpack.c.h.b16 %v187
    %v539 = vunpack.c.l.b16 %v188
    %v540 = vunpack.c.h.b16 %v188
    %v541 = vunpack.c.l.b16 %v189
    %v542 = vunpack.c.h.b16 %v189
    %v543 = vunpack.c.l.b16 %v190
    %v544 = vunpack.c.h.b16 %v190
    %v545 = vunpack.c.l.b16 %v191
    %v546 = vunpack.c.h.b16 %v191
    %v547 = vunpack.c.l.b16 %v192
    %v548 = vunpack.c.h.b16 %v192
    %v549 = vunpack.c.l.b16 %v193
    %v550 = vunpack.c.h.b16 %v193
    %v551 = vunpack.c.l.b16 %v194
    %v552 = vunpack.c.h.b16 %v194
    %v553 = vunpack.c.l.b16 %v195
    %v554 = vunpack.c.h.b16 %v195
    %v555 = vunpack.c.l.b16 %v196
    %v556 = vunpack.c.h.b16 %v196
    %v557 = vunpack.c.l.b16 %v197
    %v558 = vunpack.c.h.b16 %v197
    %v559 = vunpack.c.l.b16 %v198
    %v560 = vunpack.c.h.b16 %v198
    %v561 = vunpack.c.l.b16 %v199
    %v562 = vunpack.c.h.b16 %v199
    %v563 = vunpack.c.l.b16 %v200
    %v564 = vunpack.c.h.b16 %v200
    %v565 = vunpack.c.l.b16 %v201
    %v566 = vunpack.c.h.b16 %v201
    %v567 = vunpack.c.l.b16 %v202
    %v568 = vunpack.c.h.b16 %v202
    %v569 = vunpack.c.l.b16 %v203
    %v570 = vunpack.c.h.b16 %v203
    %v571 = vunpack.c.l.b16 %v204
    %v572 = vunpack.c.h.b16 %v204
    %v573 = vunpack.c.l.b16 %v205
    %v574 = vunpack.c.h.b16 %v205
    %v575 = vunpack.c.l.b16 %v206
    %v576 = vunpack.c.h.b16 %v206
    %v577 = vunpack.c.l.b16 %v207
    %v578 = vunpack.c.h.b16 %v207
    %v579 = vunpack.c.l.b16 %v208
    %v580 = vunpack.c.h.b16 %v208
    %v581 = vunpack.c.l.b16 %v209
    %v582 = vunpack.c.h.b16 %v209
    %v583 = vunpack.c.l.b16 %v210
    %v584 = vunpack.c.h.b16 %v210
    %v585 = vunpack.c.l.b16 %v211
    %v586 = vunpack.c.h.b16 %v211
    %v587 = vunpack.c.l.b16 %v212
    %v588 = vunpack.c.h.b16 %v212
    %v589 = vunpack.c.l.b16 %v213
    %v590 = vunpack.c.h.b16 %v213
    %v591 = vunpack.c.l.b16 %v214
    %v592 = vunpack.c.h.b16 %v214
    %v593 = vunpack.c.l.b16 %v215
    %v594 = vunpack.c.h.b16 %v215
    %v595 = vunpack.c.l.b16 %v216
    %v596 = vunpack.c.h.b16 %v216
    %v597 = vunpack.c.l.b16 %v217
    %v598 = vunpack.c.h.b16 %v217
    %v599 = vunpack.c.l.b16 %v218
    %v600 = vunpack.c.h.b16 %v218
    %v601 = vunpack.c.l.b16 %v219
    %v602 = vunpack.c.h.b16 %v219
    %v603 = vunpack.c.l.b16 %v220
    %v604 = vunpack.c.h.b16 %v220
    %v605 = vunpack.c.l.b16 %v221
    %v606 = vunpack.c.h.b16 %v221
    %v607 = vunpack.c.l.b16 %v222
    %v608 = vunpack.c.h.b16 %v222
    %v609 = vunpack.c.l.b16 %v223
    %v610 = vunpack.c.h.b16 %v223
    %v611 = vunpack.c.l.b16 %v224
    %v612 = vunpack.c.h.b16 %v224
    %v613 = vunpack.c.l.b16 %v225
    %v614 = vunpack.c.h.b16 %v225
    %v615 = vunpack.c.l.b16 %v226
    %v616 = vunpack.c.h.b16 %v226
    %v617 = vunpack.c.l.b16 %v227
    %v618 = vunpack.c.h.b16 %v227
    %v619 = vunpack.c.l.b16 %v228
    %v620 = vunpack.c.h.b16 %v228
    %v621 = vunpack.c.l.b16 %v229
    %v622 = vunpack.c.h.b16 %v229
    %v623 = vunpack.c.l.b16 %v230
    %v624 = vunpack.c.h.b16 %v230
    %v625 = vunpack.c.l.b16 %v231
    %v626 = vunpack.c.h.b16 %v231
    %v627 = vunpack.c.l.b16 %v232
    %v628 = vunpack.c.h.b16 %v232
    %v629 = vunpack.c.l.b16 %v233
    %v630 = vunpack.c.h.b16 %v233
    %v631 = vunpack.c.l.b16 %v234
    %v632 = vunpack.c.h.b16 %v234
    %v633 = vunpack.c.l.b16 %v235
    %v634 = vunpack.c.h.b16 %v235
    %v635 = vunpack.c.l.b16 %v236
    %v636 = vunpack.c.h.b16 %v236
    %v637 = vunpack.c.l.b16 %v237
    %v638 = vunpack.c.h.b16 %v237
    %v639 = vunpack.c.l.b16 %v238
    %v640 = vunpack.c.h.b16 %v238
    %v641 = vunpack.c.l.b16 %v239
    %v642 = vunpack.c.h.b16 %v239
    %v643 = vunpack.c.l.b16 %v240
    %v644 = vunpack.c.h.b16 %v240
    %v645 = vunpack.c.l.b16 %v241
    %v646 = vunpack.c.h.b16 %v241
    %v647 = vunpack.c.l.b16 %v242
    %v648 = vunpack.c.h.b16 %v242
    %v649 = vunpack.c.l.b16 %v243
    %v650 = vunpack.c.h.b16 %v243
    %v651 = vunpack.c.l.b16 %v244
    %v652 = vunpack.c.h.b16 %v244
    %v653 = vunpack.c.l.b16 %v245
    %v654 = vunpack.c.h.b16 %v245
    %v655 = vunpack.c.l.b16 %v246
    %v656 = vunpack.c.h.b16 %v246
    %v657 = vunpack.c.l.b16 %v247
    %v658 = vunpack.c.h.b16 %v247
    %v659 = vunpack.c.l.b16 %v248
    %v660 = vunpack.c.h.b16 %v248
    %v661 = vunpack.c.l.b16 %v249
    %v662 = vunpack.c.h.b16 %v249
    %v663 = vunpack.c.l.b16 %v250
    %v664 = vunpack.c.h.b16 %v250
    %v665 = vunpack.c.l.b16 %v251
    %v666 = vunpack.c.h.b16 %v251
    %v667 = vunpack.c.l.b16 %v252
    %v668 = vunpack.c.h.b16 %v252
    %v669 = vunpack.c.l.b16 %v253
    %v670 = vunpack.c.h.b16 %v253
    %v671 = vunpack.c.l.b16 %v254
    %v672 = vunpack.c.h.b16 %v254
    %v673 = vunpack.c.l.b16 %v255
    %v674 = vunpack.c.h.b16 %v255
    %v675 = vunpack.c.l.b16 %v256
    %v676 = vunpack.c.h.b16 %v256
    %v677 = vunpack.c.l.b16 %v257
    %v678 = vunpack.c.h.b16 %v257
    %v679 = vunpack.c.l.b16 %v258
    %v680 = vunpack.c.h.b16 %v258
    %v681 = vunpack.c.l.b16 %v259
    %v682 = vunpack.c.h.b16 %v259
    %v683 = vunpack.c.l.b16 %v260
    %v684 = vunpack.c.h.b16 %v260
    %v685 = vunpack.c.l.b16 %v261
    %v686 = vunpack.c.h.b16 %v261
    %v687 = vunpack.c.l.b16 %v262
    %v688 = vunpack.c.h.b16 %v262
    %v689 = vunpack.c.l.b16 %v263
    %v690 = vunpack.c.h.b16 %v263
    %v691 = vunpack.c.l.b16 %v264
    %v692 = vunpack.c.h.b16 %v264
    %v693 = vunpack.c.l.b16 %v265
    %v694 = vunpack.c.h.b16 %v265
    %v695 = vunpack.c.l.b16 %v266
    %v696 = vunpack.c.h.b16 %v266
    %v697 = vunpack.c.l.b16 %v267
    %v698 = vunpack.c.h.b16 %v267
    %v699 = vunpack.c.l.b16 %v268
    %v700 = vunpack.c.h.b16 %v268
    %v701 = vunpack.c.l.b16 %v269
    %v702 = vunpack.c.h.b16 %v269
    %v703 = vunpack.c.l.b16 %v270
    %v704 = vunpack.c.h.b16 %v270
    %v705 = vunpack.c.l.b16 %v271
    %v706 = vunpack.c.h.b16 %v271
    %v707 = vunpack.c.l.b16 %v272
    %v708 = vunpack.c.h.b16 %v272
    %v709 = vunpack.c.l.b16 %v273
    %v710 = vunpack.c.h.b16 %v273
    %v711 = vunpack.c.l.b16 %v274
    %v712 = vunpack.c.h.b16 %v274
    %v713 = vunpack.c.l.b16 %v275
    %v714 = vunpack.c.h.b16 %v275
    %v715 = vunpack.c.l.b16 %v276
    %v716 = vunpack.c.h.b16 %v276
    %v717 = vunpack.c.l.b16 %v277
    %v718 = vunpack.c.h.b16 %v277
    %v719 = vunpack.c.l.b16 %v278
    %v720 = vunpack.c.h.b16 %v278
    %v721 = vunpack.c.l.b16 %v279
    %v722 = vunpack.c.h.b16 %v279
    %v723 = vunpack.c.l.b16 %v280
    %v724 = vunpack.c.h.b16 %v280
    %v725 = vunpack.c.l.b16 %v281
    %v726 = vunpack.c.h.b16 %v281
    %v727 = vunpack.c.l.b16 %v282
    %v728 = vunpack.c.h.b16 %v282
    %v729 = vunpack.c.l.b16 %v283
    %v730 = vunpack.c.h.b16 %v283
    %v731 = vunpack.c.l.b16 %v284
    %v732 = vunpack.c.h.b16 %v284
    %v733 = vunpack.c.l.b16 %v285
    %v734 = vunpack.c.h.b16 %v285
    %v735 = vunpack.c.l.b16 %v286
    %v736 = vunpack.c.h.b16 %v286
    %v737 = vunpack.c.l.b16 %v287
    %v738 = vunpack.c.h.b16 %v287
    %v739 = vunpack.c.l.b16 %v288
    %v740 = vunpack.c.h.b16 %v288
    %v741 = vpack.c.b16 %v489, %v485
    %v742 = vpack.c.b16 %v490, %v486
    %v743 = vpack.c.b16 %v491, %v487
    %v744 = vpack.c.b16 %v492, %v488
    %v745 = vpack.c.b16 %v497, %v493
    %v746 = vpack.c.b16 %v498, %v494
    %v747 = vpack.c.b16 %v499, %v495
    %v748 = vpack.c.b16 %v500, %v496
    %v749 = vpack.c.b16 %v505, %v501
    %v750 = vpack.c.b16 %v506, %v502
    %v751 = vpack.c.b16 %v507, %v503
    %v752 = vpack.c.b16 %v508, %v504
    %v753 = vpack.c.b16 %v513, %v509
    %v754 = vpack.c.b16 %v514, %v510
    %v755 = vpack.c.b16 %v515, %v511
    %v756 = vpack.c.b16 %v516, %v512
    %v757 = vpack.c.b16 %v521, %v517
    %v758 = vpack.c.b16 %v522, %v518
    %v759 = vpack.c.b16 %v523, %v519
    %v760 = vpack.c.b16 %v524, %v520
    %v761 = vpack.c.b16 %v529, %v525
    %v762 = vpack.c.b16 %v530, %v526
    %v763 = vpack.c.b16 %v531, %v527
    %v764 = vpack.c.b16 %v532, %v528
    %v765 = vpack.c.b16 %v537, %v533
    %v766 = vpack.c.b16 %v538, %v534
    %v767 = vpack.c.b16 %v539, %v535
    %v768 = vpack.c.b16 %v540, %v536
    %v769 = vpack.c.b16 %v545, %v541
    %v770 = vpack.c.b16 %v546, %v542
    %v771 = vpack.c.b16 %v547, %v543
    %v772 = vpack.c.b16 %v548, %v544
    %v773 = vpack.c.b16 %v553, %v549
    %v774 = vpack.c.b16 %v554, %v550
    %v775 = vpack.c.b16 %v555, %v551
    %v776 = vpack.c.b16 %v556, %v552
    %v777 = vpack.c.b16 %v561, %v557
    %v778 = vpack.c.b16 %v562, %v558
    %v779 = vpack.c.b16 %v563, %v559
    %v780 = vpack.c.b16 %v564, %v560
    %v781 = vpack.c.b16 %v569, %v565
    %v782 = vpack.c.b16 %v570, %v566
    %v783 = vpack.c.b16 %v571, %v567
    %v784 = vpack.c.b16 %v572, %v568
    %v785 = vpack.c.b16 %v577, %v573
    %v786 = vpack.c.b16 %v578, %v574
    %v787 = vpack.c.b16 %v579, %v575
    %v788 = vpack.c.b16 %v580, %v576
    %v789 = vpack.c.b16 %v585, %v581
    %v790 = vpack.c.b16 %v586, %v582
    %v791 = vpack.c.b16 %v587, %v583
    %v792 = vpack.c.b16 %v588, %v584
    %v793 = vpack.c.b16 %v593, %v589
    %v794 = vpack.c.b16 %v594, %v590
    %v795 = vpack.c.b16 %v595, %v591
    %v796 = vpack.c.b16 %v596, %v592
    %v797 = vpack.c.b16 %v601, %v597
    %v798 = vpack.c.b16 %v602, %v598
    %v799 = vpack.c.b16 %v603, %v599
    %v800 = vpack.c.b16 %v604, %v600
    %v801 = vpack.c.b16 %v609, %v605
    %v802 = vpack.c.b16 %v610, %v606
    %v803 = vpack.c.b16 %v611, %v607
    %v804 = vpack.c.b16 %v612, %v608
    %v805 = vpack.c.b16 %v617, %v613
    %v806 = vpack.c.b16 %v618, %v614
    %v807 = vpack.c.b16 %v619, %v615
    %v808 = vpack.c.b16 %v620, %v616
    %v809 = vpack.c.b16 %v625, %v621
    %v810 = vpack.c.b16 %v626, %v622
    %v811 = vpack.c.b16 %v627, %v623
    %v812 = vpack.c.b16 %v628, %v624
    %v813 = vpack.c.b16 %v633, %v629
    %v814 = vpack.c.b16 %v634, %v630
    %v815 = vpack.c.b16 %v635, %v631
    %v816 = vpack.c.b16 %v636, %v632
    %v817 = vpack.c.b16 %v641, %v637
    %v818 = vpack.c.b16 %v642, %v638
    %v819 = vpack.c.b16 %v643, %v639
    %v820 = vpack.c.b16 %v644, %v640
    %v821 = vpack.c.b16 %v649, %v645
    %v822 = vpack.c.b16 %v650, %v646
    %v823 = vpack.c.b16 %v651, %v647
    %v824 = vpack.c.b16 %v652, %v648
    %v825 = vpack.c.b16 %v657, %v653
    %v826 = vpack.c.b16 %v658, %v654
    %v827 = vpack.c.b16 %v659, %v655
    %v828 = vpack.c.b16 %v660, %v656
    %v829 = vpack.c.b16 %v665, %v661
    %v830 = vpack.c.b16 %v666, %v662
    %v831 = vpack.c.b16 %v667, %v663
    %v832 = vpack.c.b16 %v668, %v664
    %v833 = vpack.c.b16 %v673, %v669
    %v834 = vpack.c.b16 %v674, %v670
    %v835 = vpack.c.b16 %v675, %v671
    %v836 = vpack.c.b16 %v676, %v672
    %v837 = vpack.c.b16 %v681, %v677
    %v838 = vpack.c.b16 %v682, %v678
    %v839 = vpack.c.b16 %v683, %v679
    %v840 = vpack.c.b16 %v684, %v680
    %v841 = vpack.c.b16 %v689, %v685
    %v842 = vpack.c.b16 %v690, %v686
    %v843 = vpack.c.b16 %v691, %v687
    %v844 = vpack.c.b16 %v692, %v688
    %v845 = vpack.c.b16 %v697, %v693
    %v846 = vpack.c.b16 %v698, %v694
    %v847 = vpack.c.b16 %v699, %v695
    %v848 = vpack.c.b16 %v700, %v696
    %v849 = vpack.c.b16 %v705, %v701
    %v850 = vpack.c.b16 %v706, %v702
    %v851 = vpack.c.b16 %v707, %v703
    %v852 = vpack.c.b16 %v708, %v704
    %v853 = vpack.c.b16 %v713, %v709
    %v854 = vpack.c.b16 %v714, %v710
    %v855 = vpack.c.b16 %v715, %v711
    %v856 = vpack.c.b16 %v716, %v712
    %v857 = vpack.c.b16 %v721, %v717
    %v858 = vpack.c.b16 %v722, %v718
    %v859 = vpack.c.b16 %v723, %v719
    %v860 = vpack.c.b16 %v724, %v720
    %v861 = vpack.c.b16 %v729, %v725
    %v862 = vpack.c.b16 %v730, %v726
    %v863 = vpack.c.b16 %v731, %v727
    %v864 = vpack.c.b16 %v732, %v728
    %v865 = vpack.c.b16 %v737, %v733
    %v866 = vpack.c.b16 %v738, %v734
    %v867 = vpack.c.b16 %v739, %v735
    %v868 = vpack.c.b16 %v740, %v736
    %v1061 = vunpack.c.l.b16 %v293
    %v1062 = vunpack.c.l.b16 %v294
    %v1063 = vunpack.c.l.b16 %v295
    %v1064 = vunpack.c.l.b16 %v296
    %v1065 = vunpack.c.l.b16 %v297
    %v1066 = vunpack.c.l.b16 %v298
    %v1067 = vunpack.c.l.b16 %v299
    %v1068 = vunpack.c.l.b16 %v300
    %v1069 = vunpack.c.l.b16 %v301
    %v1070 = vunpack.c.l.b16 %v302
    %v1071 = vunpack.c.l.b16 %v303
    %v1072 = vunpack.c.l.b16 %v304
    %v1073 = vunpack.c.l.b16 %v305
    %v1074 = vunpack.c.l.b16 %v306
    %v1075 = vunpack.c.l.b16 %v307
    %v1076 = vunpack.c.l.b16 %v308
    %v1077 = vunpack.c.l.b16 %v309
    %v1078 = vunpack.c.l.b16 %v310
    %v1079 = vunpack.c.l.b16 %v311
    %v1080 = vunpack.c.l.b16 %v312
    %v1081 = vunpack.c.l.b16 %v313
    %v1082 = vunpack.c.l.b16 %v314
    %v1083 = vunpack.c.l.b16 %v315
    %v1084 = vunpack.c.l.b16 %v316
    %v1085 = vunpack.c.l.b16 %v317
    %v1086 = vunpack.c.l.b16 %v318
    %v1087 = vunpack.c.l.b16 %v319
    %v1088 = vunpack.c.l.b16 %v320
    %v1089 = vunpack.c.l.b16 %v321
    %v1090 = vunpack.c.l.b16 %v322
    %v1091 = vunpack.c.l.b16 %v323
    %v1092 = vunpack.c.l.b16 %v324
    %v1093 = vunpack.c.l.b16 %v325
    %v1094 = vunpack.c.l.b16 %v326
    %v1095 = vunpack.c.l.b16 %v327
    %v1096 = vunpack.c.l.b16 %v328
    %v1097 = vunpack.c.l.b16 %v329
    %v1098 = vunpack.c.l.b16 %v330
    %v1099 = vunpack.c.l.b16 %v331
    %v1100 = vunpack.c.l.b16 %v332
    %v1101 = vunpack.c.l.b16 %v333
    %v1102 = vunpack.c.l.b16 %v334
    %v1103 = vunpack.c.l.b16 %v335
    %v1104 = vunpack.c.l.b16 %v336
    %v1105 = vunpack.c.l.b16 %v337
    %v1106 = vunpack.c.l.b16 %v338
    %v1107 = vunpack.c.l.b16 %v339
    %v1108 = vunpack.c.l.b16 %v340
    %v1109 = vunpack.c.l.b16 %v341
    %v1110 = vunpack.c.l.b16 %v342
    %v1111 = vunpack.c.l.b16 %v343
    %v1112 = vunpack.c.l.b16 %v344
    %v1113 = vunpack.c.l.b16 %v345
    %v1114 = vunpack.c.l.b16 %v346
    %v1115 = vunpack.c.l.b16 %v347
    %v1116 = vunpack.c.l.b16 %v348
    %v1117 = vunpack.c.l.b16 %v349
    %v1118 = vunpack.c.l.b16 %v350
    %v1119 = vunpack.c.l.b16 %v351
    %v1120 = vunpack.c.l.b16 %v352
    %v1121 = vunpack.c.l.b16 %v353
    %v1122 = vunpack.c.l.b16 %v354
    %v1123 = vunpack.c.l.b16 %v355
    %v1124 = vunpack.c.l.b16 %v356
    %v1125 = vpack.c.b16 %v1062, %v1061
    %v1126 = vpack.c.b16 %v1064, %v1063
    %v1127 = vpack.c.b16 %v1066, %v1065
    %v1128 = vpack.c.b16 %v1068, %v1067
    %v1129 = vpack.c.b16 %v1070, %v1069
    %v1130 = vpack.c.b16 %v1072, %v1071
    %v1131 = vpack.c.b16 %v1074, %v1073
    %v1132 = vpack.c.b16 %v1076, %v1075
    %v1133 = vpack.c.b16 %v1078, %v1077
    %v1134 = vpack.c.b16 %v1080, %v1079
    %v1135 = vpack.c.b16 %v1082, %v1081
    %v1136 = vpack.c.b16 %v1084, %v1083
    %v1137 = vpack.c.b16 %v1086, %v1085
    %v1138 = vpack.c.b16 %v1088, %v1087
    %v1139 = vpack.c.b16 %v1090, %v1089
    %v1140 = vpack.c.b16 %v1092, %v1091
    %v1141 = vpack.c.b16 %v1094, %v1093
    %v1142 = vpack.c.b16 %v1096, %v1095
    %v1143 = vpack.c.b16 %v1098, %v1097
    %v1144 = vpack.c.b16 %v1100, %v1099
    %v1145 = vpack.c.b16 %v1102, %v1101
    %v1146 = vpack.c.b16 %v1104, %v1103
    %v1147 = vpack.c.b16 %v1106, %v1105
    %v1148 = vpack.c.b16 %v1108, %v1107
    %v1149 = vpack.c.b16 %v1110, %v1109
    %v1150 = vpack.c.b16 %v1112, %v1111
    %v1151 = vpack.c.b16 %v1114, %v1113
    %v1152 = vpack.c.b16 %v1116, %v1115
    %v1153 = vpack.c.b16 %v1118, %v1117
    %v1154 = vpack.c.b16 %v1120, %v1119
    %v1155 = vpack.c.b16 %v1122, %v1121
    %v1156 = vpack.c.b16 %v1124, %v1123
    %1189 = vmatpush.bf16.msra.mxu0 %v1132
    %1190 = vmatpush.bf16.msra.mxu0 %v1131
    %1191 = vmatpush.bf16.msra.mxu0 %v1130
    %1192 = vmatpush.bf16.msra.mxu0 %v1129
    %1193 = vmatpush.bf16.msra.mxu0 %v1128
    %1194 = vmatpush.bf16.msra.mxu0 %v1127
    %1195 = vmatpush.bf16.msra.mxu0 %v1126
    %1196 = vmatpush.bf16.msra.mxu0 %v1125
    %1197 = vmatmul.bf16.gmra.mxu0 %v741
    %v1198 = vpop.f32.mrf.mxu0
    %v1199 = vadd.f32 0.0, %v1198
    %v1200 = vpop.f32.mrf.mxu0
    %v1201 = vadd.f32 0.0, %v1200
    %1202 = vmatmul.bf16.gmra.mxu0 %v745
    %v1203 = vpop.f32.mrf.mxu0
    %v1204 = vadd.f32 0.0, %v1203
    %v1205 = vpop.f32.mrf.mxu0
    %v1206 = vadd.f32 0.0, %v1205
    %1207 = vmatmul.bf16.gmra.mxu0 %v749
    %v1208 = vpop.f32.mrf.mxu0
    %v1209 = vadd.f32 0.0, %v1208
    %v1210 = vpop.f32.mrf.mxu0
    %v1211 = vadd.f32 0.0, %v1210
    %1212 = vmatmul.bf16.gmra.mxu0 %v753
    %v1213 = vpop.f32.mrf.mxu0
    %v1214 = vadd.f32 0.0, %v1213
    %v1215 = vpop.f32.mrf.mxu0
    %v1216 = vadd.f32 0.0, %v1215
    %1217 = vmatmul.bf16.gmra.mxu0 %v757
    %v1218 = vpop.f32.mrf.mxu0
    %v1219 = vadd.f32 0.0, %v1218
    %v1220 = vpop.f32.mrf.mxu0
    %v1221 = vadd.f32 0.0, %v1220
    %1222 = vmatmul.bf16.gmra.mxu0 %v761
    %v1223 = vpop.f32.mrf.mxu0
    %v1224 = vadd.f32 0.0, %v1223
    %v1225 = vpop.f32.mrf.mxu0
    %v1226 = vadd.f32 0.0, %v1225
    %1227 = vmatmul.bf16.gmra.mxu0 %v765
    %v1228 = vpop.f32.mrf.mxu0
    %v1229 = vadd.f32 0.0, %v1228
    %v1230 = vpop.f32.mrf.mxu0
    %v1231 = vadd.f32 0.0, %v1230
    %1232 = vmatmul.bf16.gmra.mxu0 %v769
    %v1233 = vpop.f32.mrf.mxu0
    %v1234 = vadd.f32 0.0, %v1233
    %v1235 = vpop.f32.mrf.mxu0
    %v1236 = vadd.f32 0.0, %v1235
    %1237 = vmatmul.bf16.gmra.mxu0 %v773
    %v1238 = vpop.f32.mrf.mxu0
    %v1239 = vadd.f32 0.0, %v1238
    %v1240 = vpop.f32.mrf.mxu0
    %v1241 = vadd.f32 0.0, %v1240
    %1242 = vmatmul.bf16.gmra.mxu0 %v777
    %v1243 = vpop.f32.mrf.mxu0
    %v1244 = vadd.f32 0.0, %v1243
    %v1245 = vpop.f32.mrf.mxu0
    %v1246 = vadd.f32 0.0, %v1245
    %1247 = vmatmul.bf16.gmra.mxu0 %v781
    %v1248 = vpop.f32.mrf.mxu0
    %v1249 = vadd.f32 0.0, %v1248
    %v1250 = vpop.f32.mrf.mxu0
    %v1251 = vadd.f32 0.0, %v1250
    %1252 = vmatmul.bf16.gmra.mxu0 %v785
    %v1253 = vpop.f32.mrf.mxu0
    %v1254 = vadd.f32 0.0, %v1253
    %v1255 = vpop.f32.mrf.mxu0
    %v1256 = vadd.f32 0.0, %v1255
    %1257 = vmatmul.bf16.gmra.mxu0 %v789
    %v1258 = vpop.f32.mrf.mxu0
    %v1259 = vadd.f32 0.0, %v1258
    %v1260 = vpop.f32.mrf.mxu0
    %v1261 = vadd.f32 0.0, %v1260
    %1262 = vmatmul.bf16.gmra.mxu0 %v793
    %v1263 = vpop.f32.mrf.mxu0
    %v1264 = vadd.f32 0.0, %v1263
    %v1265 = vpop.f32.mrf.mxu0
    %v1266 = vadd.f32 0.0, %v1265
    %1267 = vmatmul.bf16.gmra.mxu0 %v797
    %v1268 = vpop.f32.mrf.mxu0
    %v1269 = vadd.f32 0.0, %v1268
    %v1270 = vpop.f32.mrf.mxu0
    %v1271 = vadd.f32 0.0, %v1270
    %1272 = vmatmul.bf16.gmra.mxu0 %v801
    %v1273 = vpop.f32.mrf.mxu0
    %v1274 = vadd.f32 0.0, %v1273
    %v1275 = vpop.f32.mrf.mxu0
    %v1276 = vadd.f32 0.0, %v1275
    %1277 = vmatmul.bf16.gmra.mxu0 %v805
    %v1278 = vpop.f32.mrf.mxu0
    %v1279 = vadd.f32 0.0, %v1278
    %v1280 = vpop.f32.mrf.mxu0
    %v1281 = vadd.f32 0.0, %v1280
    %1282 = vmatmul.bf16.gmra.mxu0 %v809
    %v1283 = vpop.f32.mrf.mxu0
    %v1284 = vadd.f32 0.0, %v1283
    %v1285 = vpop.f32.mrf.mxu0
    %v1286 = vadd.f32 0.0, %v1285
    %1287 = vmatmul.bf16.gmra.mxu0 %v813
    %v1288 = vpop.f32.mrf.mxu0
    %v1289 = vadd.f32 0.0, %v1288
    %v1290 = vpop.f32.mrf.mxu0
    %v1291 = vadd.f32 0.0, %v1290
    %1292 = vmatmul.bf16.gmra.mxu0 %v817
    %v1293 = vpop.f32.mrf.mxu0
    %v1294 = vadd.f32 0.0, %v1293
    %v1295 = vpop.f32.mrf.mxu0
    %v1296 = vadd.f32 0.0, %v1295
    %1297 = vmatmul.bf16.gmra.mxu0 %v821
    %v1298 = vpop.f32.mrf.mxu0
    %v1299 = vadd.f32 0.0, %v1298
    %v1300 = vpop.f32.mrf.mxu0
    %v1301 = vadd.f32 0.0, %v1300
    %1302 = vmatmul.bf16.gmra.mxu0 %v825
    %v1303 = vpop.f32.mrf.mxu0
    %v1304 = vadd.f32 0.0, %v1303
    %v1305 = vpop.f32.mrf.mxu0
    %v1306 = vadd.f32 0.0, %v1305
    %1307 = vmatmul.bf16.gmra.mxu0 %v829
    %v1308 = vpop.f32.mrf.mxu0
    %v1309 = vadd.f32 0.0, %v1308
    %v1310 = vpop.f32.mrf.mxu0
    %v1311 = vadd.f32 0.0, %v1310
    %1312 = vmatmul.bf16.gmra.mxu0 %v833
    %v1313 = vpop.f32.mrf.mxu0
    %v1314 = vadd.f32 0.0, %v1313
    %v1315 = vpop.f32.mrf.mxu0
    %v1316 = vadd.f32 0.0, %v1315
    %1317 = vmatmul.bf16.gmra.mxu0 %v837
    %v1318 = vpop.f32.mrf.mxu0
    %v1319 = vadd.f32 0.0, %v1318
    %v1320 = vpop.f32.mrf.mxu0
    %v1321 = vadd.f32 0.0, %v1320
    %1322 = vmatmul.bf16.gmra.mxu0 %v841
    %v1323 = vpop.f32.mrf.mxu0
    %v1324 = vadd.f32 0.0, %v1323
    %v1325 = vpop.f32.mrf.mxu0
    %v1326 = vadd.f32 0.0, %v1325
    %1327 = vmatmul.bf16.gmra.mxu0 %v845
    %v1328 = vpop.f32.mrf.mxu0
    %v1329 = vadd.f32 0.0, %v1328
    %v1330 = vpop.f32.mrf.mxu0
    %v1331 = vadd.f32 0.0, %v1330
    %1332 = vmatmul.bf16.gmra.mxu0 %v849
    %v1333 = vpop.f32.mrf.mxu0
    %v1334 = vadd.f32 0.0, %v1333
    %v1335 = vpop.f32.mrf.mxu0
    %v1336 = vadd.f32 0.0, %v1335
    %1337 = vmatmul.bf16.gmra.mxu0 %v853
    %v1338 = vpop.f32.mrf.mxu0
    %v1339 = vadd.f32 0.0, %v1338
    %v1340 = vpop.f32.mrf.mxu0
    %v1341 = vadd.f32 0.0, %v1340
    %1342 = vmatmul.bf16.gmra.mxu0 %v857
    %v1343 = vpop.f32.mrf.mxu0
    %v1344 = vadd.f32 0.0, %v1343
    %v1345 = vpop.f32.mrf.mxu0
    %v1346 = vadd.f32 0.0, %v1345
    %1347 = vmatmul.bf16.gmra.mxu0 %v861
    %v1348 = vpop.f32.mrf.mxu0
    %v1349 = vadd.f32 0.0, %v1348
    %v1350 = vpop.f32.mrf.mxu0
    %v1351 = vadd.f32 0.0, %v1350
    %1352 = vmatmul.bf16.gmra.mxu0 %v865
    %v1353 = vpop.f32.mrf.mxu0
    %v1354 = vadd.f32 0.0, %v1353
    %v1355 = vpop.f32.mrf.mxu0
    %v1356 = vadd.f32 0.0, %v1355
    %1357 = vdwg.mxu0
    %1358 = vmatpush.bf16.msra.mxu0 %v1140
    %1359 = vmatpush.bf16.msra.mxu0 %v1139
    %1360 = vmatpush.bf16.msra.mxu0 %v1138
    %1361 = vmatpush.bf16.msra.mxu0 %v1137
    %1362 = vmatpush.bf16.msra.mxu0 %v1136
    %1363 = vmatpush.bf16.msra.mxu0 %v1135
    %1364 = vmatpush.bf16.msra.mxu0 %v1134
    %1365 = vmatpush.bf16.msra.mxu0 %v1133
    %1366 = vmatmul.bf16.gmra.mxu0 %v742
    %v1367 = vpop.f32.mrf.mxu0
    %v1368 = vadd.f32 %v1199, %v1367
    %v1369 = vpop.f32.mrf.mxu0
    %v1370 = vadd.f32 %v1201, %v1369
    %1371 = vmatmul.bf16.gmra.mxu0 %v746
    %v1372 = vpop.f32.mrf.mxu0
    %v1373 = vadd.f32 %v1204, %v1372
    %v1374 = vpop.f32.mrf.mxu0
    %v1375 = vadd.f32 %v1206, %v1374
    %1376 = vmatmul.bf16.gmra.mxu0 %v750
    %v1377 = vpop.f32.mrf.mxu0
    %v1378 = vadd.f32 %v1209, %v1377
    %v1379 = vpop.f32.mrf.mxu0
    %v1380 = vadd.f32 %v1211, %v1379
    %1381 = vmatmul.bf16.gmra.mxu0 %v754
    %v1382 = vpop.f32.mrf.mxu0
    %v1383 = vadd.f32 %v1214, %v1382
    %v1384 = vpop.f32.mrf.mxu0
    %v1385 = vadd.f32 %v1216, %v1384
    %1386 = vmatmul.bf16.gmra.mxu0 %v758
    %v1387 = vpop.f32.mrf.mxu0
    %v1388 = vadd.f32 %v1219, %v1387
    %v1389 = vpop.f32.mrf.mxu0
    %v1390 = vadd.f32 %v1221, %v1389
    %1391 = vmatmul.bf16.gmra.mxu0 %v762
    %v1392 = vpop.f32.mrf.mxu0
    %v1393 = vadd.f32 %v1224, %v1392
    %v1394 = vpop.f32.mrf.mxu0
    %v1395 = vadd.f32 %v1226, %v1394
    %1396 = vmatmul.bf16.gmra.mxu0 %v766
    %v1397 = vpop.f32.mrf.mxu0
    %v1398 = vadd.f32 %v1229, %v1397
    %v1399 = vpop.f32.mrf.mxu0
    %v1400 = vadd.f32 %v1231, %v1399
    %1401 = vmatmul.bf16.gmra.mxu0 %v770
    %v1402 = vpop.f32.mrf.mxu0
    %v1403 = vadd.f32 %v1234, %v1402
    %v1404 = vpop.f32.mrf.mxu0
    %v1405 = vadd.f32 %v1236, %v1404
    %1406 = vmatmul.bf16.gmra.mxu0 %v774
    %v1407 = vpop.f32.mrf.mxu0
    %v1408 = vadd.f32 %v1239, %v1407
    %v1409 = vpop.f32.mrf.mxu0
    %v1410 = vadd.f32 %v1241, %v1409
    %1411 = vmatmul.bf16.gmra.mxu0 %v778
    %v1412 = vpop.f32.mrf.mxu0
    %v1413 = vadd.f32 %v1244, %v1412
    %v1414 = vpop.f32.mrf.mxu0
    %v1415 = vadd.f32 %v1246, %v1414
    %1416 = vmatmul.bf16.gmra.mxu0 %v782
    %v1417 = vpop.f32.mrf.mxu0
    %v1418 = vadd.f32 %v1249, %v1417
    %v1419 = vpop.f32.mrf.mxu0
    %v1420 = vadd.f32 %v1251, %v1419
    %1421 = vmatmul.bf16.gmra.mxu0 %v786
    %v1422 = vpop.f32.mrf.mxu0
    %v1423 = vadd.f32 %v1254, %v1422
    %v1424 = vpop.f32.mrf.mxu0
    %v1425 = vadd.f32 %v1256, %v1424
    %1426 = vmatmul.bf16.gmra.mxu0 %v790
    %v1427 = vpop.f32.mrf.mxu0
    %v1428 = vadd.f32 %v1259, %v1427
    %v1429 = vpop.f32.mrf.mxu0
    %v1430 = vadd.f32 %v1261, %v1429
    %1431 = vmatmul.bf16.gmra.mxu0 %v794
    %v1432 = vpop.f32.mrf.mxu0
    %v1433 = vadd.f32 %v1264, %v1432
    %v1434 = vpop.f32.mrf.mxu0
    %v1435 = vadd.f32 %v1266, %v1434
    %1436 = vmatmul.bf16.gmra.mxu0 %v798
    %v1437 = vpop.f32.mrf.mxu0
    %v1438 = vadd.f32 %v1269, %v1437
    %v1439 = vpop.f32.mrf.mxu0
    %v1440 = vadd.f32 %v1271, %v1439
    %1441 = vmatmul.bf16.gmra.mxu0 %v802
    %v1442 = vpop.f32.mrf.mxu0
    %v1443 = vadd.f32 %v1274, %v1442
    %v1444 = vpop.f32.mrf.mxu0
    %v1445 = vadd.f32 %v1276, %v1444
    %1446 = vmatmul.bf16.gmra.mxu0 %v806
    %v1447 = vpop.f32.mrf.mxu0
    %v1448 = vadd.f32 %v1279, %v1447
    %v1449 = vpop.f32.mrf.mxu0
    %v1450 = vadd.f32 %v1281, %v1449
    %1451 = vmatmul.bf16.gmra.mxu0 %v810
    %v1452 = vpop.f32.mrf.mxu0
    %v1453 = vadd.f32 %v1284, %v1452
    %v1454 = vpop.f32.mrf.mxu0
    %v1455 = vadd.f32 %v1286, %v1454
    %1456 = vmatmul.bf16.gmra.mxu0 %v814
    %v1457 = vpop.f32.mrf.mxu0
    %v1458 = vadd.f32 %v1289, %v1457
    %v1459 = vpop.f32.mrf.mxu0
    %v1460 = vadd.f32 %v1291, %v1459
    %1461 = vmatmul.bf16.gmra.mxu0 %v818
    %v1462 = vpop.f32.mrf.mxu0
    %v1463 = vadd.f32 %v1294, %v1462
    %v1464 = vpop.f32.mrf.mxu0
    %v1465 = vadd.f32 %v1296, %v1464
    %1466 = vmatmul.bf16.gmra.mxu0 %v822
    %v1467 = vpop.f32.mrf.mxu0
    %v1468 = vadd.f32 %v1299, %v1467
    %v1469 = vpop.f32.mrf.mxu0
    %v1470 = vadd.f32 %v1301, %v1469
    %1471 = vmatmul.bf16.gmra.mxu0 %v826
    %v1472 = vpop.f32.mrf.mxu0
    %v1473 = vadd.f32 %v1304, %v1472
    %v1474 = vpop.f32.mrf.mxu0
    %v1475 = vadd.f32 %v1306, %v1474
    %1476 = vmatmul.bf16.gmra.mxu0 %v830
    %v1477 = vpop.f32.mrf.mxu0
    %v1478 = vadd.f32 %v1309, %v1477
    %v1479 = vpop.f32.mrf.mxu0
    %v1480 = vadd.f32 %v1311, %v1479
    %1481 = vmatmul.bf16.gmra.mxu0 %v834
    %v1482 = vpop.f32.mrf.mxu0
    %v1483 = vadd.f32 %v1314, %v1482
    %v1484 = vpop.f32.mrf.mxu0
    %v1485 = vadd.f32 %v1316, %v1484
    %1486 = vmatmul.bf16.gmra.mxu0 %v838
    %v1487 = vpop.f32.mrf.mxu0
    %v1488 = vadd.f32 %v1319, %v1487
    %v1489 = vpop.f32.mrf.mxu0
    %v1490 = vadd.f32 %v1321, %v1489
    %1491 = vmatmul.bf16.gmra.mxu0 %v842
    %v1492 = vpop.f32.mrf.mxu0
    %v1493 = vadd.f32 %v1324, %v1492
    %v1494 = vpop.f32.mrf.mxu0
    %v1495 = vadd.f32 %v1326, %v1494
    %1496 = vmatmul.bf16.gmra.mxu0 %v846
    %v1497 = vpop.f32.mrf.mxu0
    %v1498 = vadd.f32 %v1329, %v1497
    %v1499 = vpop.f32.mrf.mxu0
    %v1500 = vadd.f32 %v1331, %v1499
    %1501 = vmatmul.bf16.gmra.mxu0 %v850
    %v1502 = vpop.f32.mrf.mxu0
    %v1503 = vadd.f32 %v1334, %v1502
    %v1504 = vpop.f32.mrf.mxu0
    %v1505 = vadd.f32 %v1336, %v1504
    %1506 = vmatmul.bf16.gmra.mxu0 %v854
    %v1507 = vpop.f32.mrf.mxu0
    %v1508 = vadd.f32 %v1339, %v1507
    %v1509 = vpop.f32.mrf.mxu0
    %v1510 = vadd.f32 %v1341, %v1509
    %1511 = vmatmul.bf16.gmra.mxu0 %v858
    %v1512 = vpop.f32.mrf.mxu0
    %v1513 = vadd.f32 %v1344, %v1512
    %v1514 = vpop.f32.mrf.mxu0
    %v1515 = vadd.f32 %v1346, %v1514
    %1516 = vmatmul.bf16.gmra.mxu0 %v862
    %v1517 = vpop.f32.mrf.mxu0
    %v1518 = vadd.f32 %v1349, %v1517
    %v1519 = vpop.f32.mrf.mxu0
    %v1520 = vadd.f32 %v1351, %v1519
    %1521 = vmatmul.bf16.gmra.mxu0 %v866
    %v1522 = vpop.f32.mrf.mxu0
    %v1523 = vadd.f32 %v1354, %v1522
    %v1524 = vpop.f32.mrf.mxu0
    %v1525 = vadd.f32 %v1356, %v1524
    %1526 = vdwg.mxu0
    %1527 = vmatpush.bf16.msra.mxu0 %v1148
    %1528 = vmatpush.bf16.msra.mxu0 %v1147
    %1529 = vmatpush.bf16.msra.mxu0 %v1146
    %1530 = vmatpush.bf16.msra.mxu0 %v1145
    %1531 = vmatpush.bf16.msra.mxu0 %v1144
    %1532 = vmatpush.bf16.msra.mxu0 %v1143
    %1533 = vmatpush.bf16.msra.mxu0 %v1142
    %1534 = vmatpush.bf16.msra.mxu0 %v1141
    %1535 = vmatmul.bf16.gmra.mxu0 %v743
    %v1536 = vpop.f32.mrf.mxu0
    %v1537 = vadd.f32 %v1368, %v1536
    %v1538 = vpop.f32.mrf.mxu0
    %v1539 = vadd.f32 %v1370, %v1538
    %1540 = vmatmul.bf16.gmra.mxu0 %v747
    %v1541 = vpop.f32.mrf.mxu0
    %v1542 = vadd.f32 %v1373, %v1541
    %v1543 = vpop.f32.mrf.mxu0
    %v1544 = vadd.f32 %v1375, %v1543
    %1545 = vmatmul.bf16.gmra.mxu0 %v751
    %v1546 = vpop.f32.mrf.mxu0
    %v1547 = vadd.f32 %v1378, %v1546
    %v1548 = vpop.f32.mrf.mxu0
    %v1549 = vadd.f32 %v1380, %v1548
    %1550 = vmatmul.bf16.gmra.mxu0 %v755
    %v1551 = vpop.f32.mrf.mxu0
    %v1552 = vadd.f32 %v1383, %v1551
    %v1553 = vpop.f32.mrf.mxu0
    %v1554 = vadd.f32 %v1385, %v1553
    %1555 = vmatmul.bf16.gmra.mxu0 %v759
    %v1556 = vpop.f32.mrf.mxu0
    %v1557 = vadd.f32 %v1388, %v1556
    %v1558 = vpop.f32.mrf.mxu0
    %v1559 = vadd.f32 %v1390, %v1558
    %1560 = vmatmul.bf16.gmra.mxu0 %v763
    %v1561 = vpop.f32.mrf.mxu0
    %v1562 = vadd.f32 %v1393, %v1561
    %v1563 = vpop.f32.mrf.mxu0
    %v1564 = vadd.f32 %v1395, %v1563
    %1565 = vmatmul.bf16.gmra.mxu0 %v767
    %v1566 = vpop.f32.mrf.mxu0
    %v1567 = vadd.f32 %v1398, %v1566
    %v1568 = vpop.f32.mrf.mxu0
    %v1569 = vadd.f32 %v1400, %v1568
    %1570 = vmatmul.bf16.gmra.mxu0 %v771
    %v1571 = vpop.f32.mrf.mxu0
    %v1572 = vadd.f32 %v1403, %v1571
    %v1573 = vpop.f32.mrf.mxu0
    %v1574 = vadd.f32 %v1405, %v1573
    %1575 = vmatmul.bf16.gmra.mxu0 %v775
    %v1576 = vpop.f32.mrf.mxu0
    %v1577 = vadd.f32 %v1408, %v1576
    %v1578 = vpop.f32.mrf.mxu0
    %v1579 = vadd.f32 %v1410, %v1578
    %1580 = vmatmul.bf16.gmra.mxu0 %v779
    %v1581 = vpop.f32.mrf.mxu0
    %v1582 = vadd.f32 %v1413, %v1581
    %v1583 = vpop.f32.mrf.mxu0
    %v1584 = vadd.f32 %v1415, %v1583
    %1585 = vmatmul.bf16.gmra.mxu0 %v783
    %v1586 = vpop.f32.mrf.mxu0
    %v1587 = vadd.f32 %v1418, %v1586
    %v1588 = vpop.f32.mrf.mxu0
    %v1589 = vadd.f32 %v1420, %v1588
    %1590 = vmatmul.bf16.gmra.mxu0 %v787
    %v1591 = vpop.f32.mrf.mxu0
    %v1592 = vadd.f32 %v1423, %v1591
    %v1593 = vpop.f32.mrf.mxu0
    %v1594 = vadd.f32 %v1425, %v1593
    %1595 = vmatmul.bf16.gmra.mxu0 %v791
    %v1596 = vpop.f32.mrf.mxu0
    %v1597 = vadd.f32 %v1428, %v1596
    %v1598 = vpop.f32.mrf.mxu0
    %v1599 = vadd.f32 %v1430, %v1598
    %1600 = vmatmul.bf16.gmra.mxu0 %v795
    %v1601 = vpop.f32.mrf.mxu0
    %v1602 = vadd.f32 %v1433, %v1601
    %v1603 = vpop.f32.mrf.mxu0
    %v1604 = vadd.f32 %v1435, %v1603
    %1605 = vmatmul.bf16.gmra.mxu0 %v799
    %v1606 = vpop.f32.mrf.mxu0
    %v1607 = vadd.f32 %v1438, %v1606
    %v1608 = vpop.f32.mrf.mxu0
    %v1609 = vadd.f32 %v1440, %v1608
    %1610 = vmatmul.bf16.gmra.mxu0 %v803
    %v1611 = vpop.f32.mrf.mxu0
    %v1612 = vadd.f32 %v1443, %v1611
    %v1613 = vpop.f32.mrf.mxu0
    %v1614 = vadd.f32 %v1445, %v1613
    %1615 = vmatmul.bf16.gmra.mxu0 %v807
    %v1616 = vpop.f32.mrf.mxu0
    %v1617 = vadd.f32 %v1448, %v1616
    %v1618 = vpop.f32.mrf.mxu0
    %v1619 = vadd.f32 %v1450, %v1618
    %1620 = vmatmul.bf16.gmra.mxu0 %v811
    %v1621 = vpop.f32.mrf.mxu0
    %v1622 = vadd.f32 %v1453, %v1621
    %v1623 = vpop.f32.mrf.mxu0
    %v1624 = vadd.f32 %v1455, %v1623
    %1625 = vmatmul.bf16.gmra.mxu0 %v815
    %v1626 = vpop.f32.mrf.mxu0
    %v1627 = vadd.f32 %v1458, %v1626
    %v1628 = vpop.f32.mrf.mxu0
    %v1629 = vadd.f32 %v1460, %v1628
    %1630 = vmatmul.bf16.gmra.mxu0 %v819
    %v1631 = vpop.f32.mrf.mxu0
    %v1632 = vadd.f32 %v1463, %v1631
    %v1633 = vpop.f32.mrf.mxu0
    %v1634 = vadd.f32 %v1465, %v1633
    %1635 = vmatmul.bf16.gmra.mxu0 %v823
    %v1636 = vpop.f32.mrf.mxu0
    %v1637 = vadd.f32 %v1468, %v1636
    %v1638 = vpop.f32.mrf.mxu0
    %v1639 = vadd.f32 %v1470, %v1638
    %1640 = vmatmul.bf16.gmra.mxu0 %v827
    %v1641 = vpop.f32.mrf.mxu0
    %v1642 = vadd.f32 %v1473, %v1641
    %v1643 = vpop.f32.mrf.mxu0
    %v1644 = vadd.f32 %v1475, %v1643
    %1645 = vmatmul.bf16.gmra.mxu0 %v831
    %v1646 = vpop.f32.mrf.mxu0
    %v1647 = vadd.f32 %v1478, %v1646
    %v1648 = vpop.f32.mrf.mxu0
    %v1649 = vadd.f32 %v1480, %v1648
    %1650 = vmatmul.bf16.gmra.mxu0 %v835
    %v1651 = vpop.f32.mrf.mxu0
    %v1652 = vadd.f32 %v1483, %v1651
    %v1653 = vpop.f32.mrf.mxu0
    %v1654 = vadd.f32 %v1485, %v1653
    %1655 = vmatmul.bf16.gmra.mxu0 %v839
    %v1656 = vpop.f32.mrf.mxu0
    %v1657 = vadd.f32 %v1488, %v1656
    %v1658 = vpop.f32.mrf.mxu0
    %v1659 = vadd.f32 %v1490, %v1658
    %1660 = vmatmul.bf16.gmra.mxu0 %v843
    %v1661 = vpop.f32.mrf.mxu0
    %v1662 = vadd.f32 %v1493, %v1661
    %v1663 = vpop.f32.mrf.mxu0
    %v1664 = vadd.f32 %v1495, %v1663
    %1665 = vmatmul.bf16.gmra.mxu0 %v847
    %v1666 = vpop.f32.mrf.mxu0
    %v1667 = vadd.f32 %v1498, %v1666
    %v1668 = vpop.f32.mrf.mxu0
    %v1669 = vadd.f32 %v1500, %v1668
    %1670 = vmatmul.bf16.gmra.mxu0 %v851
    %v1671 = vpop.f32.mrf.mxu0
    %v1672 = vadd.f32 %v1503, %v1671
    %v1673 = vpop.f32.mrf.mxu0
    %v1674 = vadd.f32 %v1505, %v1673
    %1675 = vmatmul.bf16.gmra.mxu0 %v855
    %v1676 = vpop.f32.mrf.mxu0
    %v1677 = vadd.f32 %v1508, %v1676
    %v1678 = vpop.f32.mrf.mxu0
    %v1679 = vadd.f32 %v1510, %v1678
    %1680 = vmatmul.bf16.gmra.mxu0 %v859
    %v1681 = vpop.f32.mrf.mxu0
    %v1682 = vadd.f32 %v1513, %v1681
    %v1683 = vpop.f32.mrf.mxu0
    %v1684 = vadd.f32 %v1515, %v1683
    %1685 = vmatmul.bf16.gmra.mxu0 %v863
    %v1686 = vpop.f32.mrf.mxu0
    %v1687 = vadd.f32 %v1518, %v1686
    %v1688 = vpop.f32.mrf.mxu0
    %v1689 = vadd.f32 %v1520, %v1688
    %1690 = vmatmul.bf16.gmra.mxu0 %v867
    %v1691 = vpop.f32.mrf.mxu0
    %v1692 = vadd.f32 %v1523, %v1691
    %v1693 = vpop.f32.mrf.mxu0
    %v1694 = vadd.f32 %v1525, %v1693
    %1695 = vdwg.mxu0
    %1696 = vmatpush.bf16.msra.mxu0 %v1156
    %1697 = vmatpush.bf16.msra.mxu0 %v1155
    %1698 = vmatpush.bf16.msra.mxu0 %v1154
    %1699 = vmatpush.bf16.msra.mxu0 %v1153
    %1700 = vmatpush.bf16.msra.mxu0 %v1152
    %1701 = vmatpush.bf16.msra.mxu0 %v1151
    %1702 = vmatpush.bf16.msra.mxu0 %v1150
    %1703 = vmatpush.bf16.msra.mxu0 %v1149
    %1704 = vmatmul.bf16.gmra.mxu0 %v744
    %v1705 = vpop.f32.mrf.mxu0
    %v1706 = vadd.f32 %v1537, %v1705
    %v1707 = vpop.f32.mrf.mxu0
    %v1708 = vadd.f32 %v1539, %v1707
    %1709 = vmatmul.bf16.gmra.mxu0 %v748
    %v1710 = vpop.f32.mrf.mxu0
    %v1711 = vadd.f32 %v1542, %v1710
    %v1712 = vpop.f32.mrf.mxu0
    %v1713 = vadd.f32 %v1544, %v1712
    %1714 = vmatmul.bf16.gmra.mxu0 %v752
    %v1715 = vpop.f32.mrf.mxu0
    %v1716 = vadd.f32 %v1547, %v1715
    %v1717 = vpop.f32.mrf.mxu0
    %v1718 = vadd.f32 %v1549, %v1717
    %1719 = vmatmul.bf16.gmra.mxu0 %v756
    %v1720 = vpop.f32.mrf.mxu0
    %v1721 = vadd.f32 %v1552, %v1720
    %v1722 = vpop.f32.mrf.mxu0
    %v1723 = vadd.f32 %v1554, %v1722
    %1724 = vmatmul.bf16.gmra.mxu0 %v760
    %v1725 = vpop.f32.mrf.mxu0
    %v1726 = vadd.f32 %v1557, %v1725
    %v1727 = vpop.f32.mrf.mxu0
    %v1728 = vadd.f32 %v1559, %v1727
    %1729 = vmatmul.bf16.gmra.mxu0 %v764
    %v1730 = vpop.f32.mrf.mxu0
    %v1731 = vadd.f32 %v1562, %v1730
    %v1732 = vpop.f32.mrf.mxu0
    %v1733 = vadd.f32 %v1564, %v1732
    %1734 = vmatmul.bf16.gmra.mxu0 %v768
    %v1735 = vpop.f32.mrf.mxu0
    %v1736 = vadd.f32 %v1567, %v1735
    %v1737 = vpop.f32.mrf.mxu0
    %v1738 = vadd.f32 %v1569, %v1737
    %1739 = vmatmul.bf16.gmra.mxu0 %v772
    %v1740 = vpop.f32.mrf.mxu0
    %v1741 = vadd.f32 %v1572, %v1740
    %v1742 = vpop.f32.mrf.mxu0
    %v1743 = vadd.f32 %v1574, %v1742
    %1744 = vmatmul.bf16.gmra.mxu0 %v776
    %v1745 = vpop.f32.mrf.mxu0
    %v1746 = vadd.f32 %v1577, %v1745
    %v1747 = vpop.f32.mrf.mxu0
    %v1748 = vadd.f32 %v1579, %v1747
    %1749 = vmatmul.bf16.gmra.mxu0 %v780
    %v1750 = vpop.f32.mrf.mxu0
    %v1751 = vadd.f32 %v1582, %v1750
    %v1752 = vpop.f32.mrf.mxu0
    %v1753 = vadd.f32 %v1584, %v1752
    %1754 = vmatmul.bf16.gmra.mxu0 %v784
    %v1755 = vpop.f32.mrf.mxu0
    %v1756 = vadd.f32 %v1587, %v1755
    %v1757 = vpop.f32.mrf.mxu0
    %v1758 = vadd.f32 %v1589, %v1757
    %1759 = vmatmul.bf16.gmra.mxu0 %v788
    %v1760 = vpop.f32.mrf.mxu0
    %v1761 = vadd.f32 %v1592, %v1760
    %v1762 = vpop.f32.mrf.mxu0
    %v1763 = vadd.f32 %v1594, %v1762
    %1764 = vmatmul.bf16.gmra.mxu0 %v792
    %v1765 = vpop.f32.mrf.mxu0
    %v1766 = vadd.f32 %v1597, %v1765
    %v1767 = vpop.f32.mrf.mxu0
    %v1768 = vadd.f32 %v1599, %v1767
    %1769 = vmatmul.bf16.gmra.mxu0 %v796
    %v1770 = vpop.f32.mrf.mxu0
    %v1771 = vadd.f32 %v1602, %v1770
    %v1772 = vpop.f32.mrf.mxu0
    %v1773 = vadd.f32 %v1604, %v1772
    %1774 = vmatmul.bf16.gmra.mxu0 %v800
    %v1775 = vpop.f32.mrf.mxu0
    %v1776 = vadd.f32 %v1607, %v1775
    %v1777 = vpop.f32.mrf.mxu0
    %v1778 = vadd.f32 %v1609, %v1777
    %1779 = vmatmul.bf16.gmra.mxu0 %v804
    %v1780 = vpop.f32.mrf.mxu0
    %v1781 = vadd.f32 %v1612, %v1780
    %v1782 = vpop.f32.mrf.mxu0
    %v1783 = vadd.f32 %v1614, %v1782
    %1784 = vmatmul.bf16.gmra.mxu0 %v808
    %v1785 = vpop.f32.mrf.mxu0
    %v1786 = vadd.f32 %v1617, %v1785
    %v1787 = vpop.f32.mrf.mxu0
    %v1788 = vadd.f32 %v1619, %v1787
    %1789 = vmatmul.bf16.gmra.mxu0 %v812
    %v1790 = vpop.f32.mrf.mxu0
    %v1791 = vadd.f32 %v1622, %v1790
    %v1792 = vpop.f32.mrf.mxu0
    %v1793 = vadd.f32 %v1624, %v1792
    %1794 = vmatmul.bf16.gmra.mxu0 %v816
    %v1795 = vpop.f32.mrf.mxu0
    %v1796 = vadd.f32 %v1627, %v1795
    %v1797 = vpop.f32.mrf.mxu0
    %v1798 = vadd.f32 %v1629, %v1797
    %1799 = vmatmul.bf16.gmra.mxu0 %v820
    %v1800 = vpop.f32.mrf.mxu0
    %v1801 = vadd.f32 %v1632, %v1800
    %v1802 = vpop.f32.mrf.mxu0
    %v1803 = vadd.f32 %v1634, %v1802
    %1804 = vmatmul.bf16.gmra.mxu0 %v824
    %v1805 = vpop.f32.mrf.mxu0
    %v1806 = vadd.f32 %v1637, %v1805
    %v1807 = vpop.f32.mrf.mxu0
    %v1808 = vadd.f32 %v1639, %v1807
    %1809 = vmatmul.bf16.gmra.mxu0 %v828
    %v1810 = vpop.f32.mrf.mxu0
    %v1811 = vadd.f32 %v1642, %v1810
    %v1812 = vpop.f32.mrf.mxu0
    %v1813 = vadd.f32 %v1644, %v1812
    %1814 = vmatmul.bf16.gmra.mxu0 %v832
    %v1815 = vpop.f32.mrf.mxu0
    %v1816 = vadd.f32 %v1647, %v1815
    %v1817 = vpop.f32.mrf.mxu0
    %v1818 = vadd.f32 %v1649, %v1817
    %1819 = vmatmul.bf16.gmra.mxu0 %v836
    %v1820 = vpop.f32.mrf.mxu0
    %v1821 = vadd.f32 %v1652, %v1820
    %v1822 = vpop.f32.mrf.mxu0
    %v1823 = vadd.f32 %v1654, %v1822
    %1824 = vmatmul.bf16.gmra.mxu0 %v840
    %v1825 = vpop.f32.mrf.mxu0
    %v1826 = vadd.f32 %v1657, %v1825
    %v1827 = vpop.f32.mrf.mxu0
    %v1828 = vadd.f32 %v1659, %v1827
    %1829 = vmatmul.bf16.gmra.mxu0 %v844
    %v1830 = vpop.f32.mrf.mxu0
    %v1831 = vadd.f32 %v1662, %v1830
    %v1832 = vpop.f32.mrf.mxu0
    %v1833 = vadd.f32 %v1664, %v1832
    %1834 = vmatmul.bf16.gmra.mxu0 %v848
    %v1835 = vpop.f32.mrf.mxu0
    %v1836 = vadd.f32 %v1667, %v1835
    %v1837 = vpop.f32.mrf.mxu0
    %v1838 = vadd.f32 %v1669, %v1837
    %1839 = vmatmul.bf16.gmra.mxu0 %v852
    %v1840 = vpop.f32.mrf.mxu0
    %v1841 = vadd.f32 %v1672, %v1840
    %v1842 = vpop.f32.mrf.mxu0
    %v1843 = vadd.f32 %v1674, %v1842
    %1844 = vmatmul.bf16.gmra.mxu0 %v856
    %v1845 = vpop.f32.mrf.mxu0
    %v1846 = vadd.f32 %v1677, %v1845
    %v1847 = vpop.f32.mrf.mxu0
    %v1848 = vadd.f32 %v1679, %v1847
    %1849 = vmatmul.bf16.gmra.mxu0 %v860
    %v1850 = vpop.f32.mrf.mxu0
    %v1851 = vadd.f32 %v1682, %v1850
    %v1852 = vpop.f32.mrf.mxu0
    %v1853 = vadd.f32 %v1684, %v1852
    %1854 = vmatmul.bf16.gmra.mxu0 %v864
    %v1855 = vpop.f32.mrf.mxu0
    %v1856 = vadd.f32 %v1687, %v1855
    %v1857 = vpop.f32.mrf.mxu0
    %v1858 = vadd.f32 %v1689, %v1857
    %1859 = vmatmul.bf16.gmra.mxu0 %v868
    %v1860 = vpop.f32.mrf.mxu0
    %v1861 = vadd.f32 %v1692, %v1860
    %v1862 = vpop.f32.mrf.mxu0
    %v1863 = vadd.f32 %v1694, %v1862
    %1864 = vdwg.mxu0
    %v1865 = vadd.f32 %v97, %v1706
    %v1866 = vadd.f32 %v98, %v1708
    %v1867 = vadd.f32 %v99, %v1711
    %v1868 = vadd.f32 %v100, %v1713
    %v1869 = vadd.f32 %v101, %v1716
    %v1870 = vadd.f32 %v102, %v1718
    %v1871 = vadd.f32 %v103, %v1721
    %v1872 = vadd.f32 %v104, %v1723
    %v1873 = vadd.f32 %v105, %v1726
    %v1874 = vadd.f32 %v106, %v1728
    %v1875 = vadd.f32 %v107, %v1731
    %v1876 = vadd.f32 %v108, %v1733
    %v1877 = vadd.f32 %v109, %v1736
    %v1878 = vadd.f32 %v110, %v1738
    %v1879 = vadd.f32 %v111, %v1741
    %v1880 = vadd.f32 %v112, %v1743
    %v1881 = vadd.f32 %v113, %v1746
    %v1882 = vadd.f32 %v114, %v1748
    %v1883 = vadd.f32 %v115, %v1751
    %v1884 = vadd.f32 %v116, %v1753
    %v1885 = vadd.f32 %v117, %v1756
    %v1886 = vadd.f32 %v118, %v1758
    %v1887 = vadd.f32 %v119, %v1761
    %v1888 = vadd.f32 %v120, %v1763
    %v1889 = vadd.f32 %v121, %v1766
    %v1890 = vadd.f32 %v122, %v1768
    %v1891 = vadd.f32 %v123, %v1771
    %v1892 = vadd.f32 %v124, %v1773
    %v1893 = vadd.f32 %v125, %v1776
    %v1894 = vadd.f32 %v126, %v1778
    %v1895 = vadd.f32 %v127, %v1781
    %v1896 = vadd.f32 %v128, %v1783
    %v1897 = vadd.f32 %v129, %v1786
    %v1898 = vadd.f32 %v130, %v1788
    %v1899 = vadd.f32 %v131, %v1791
    %v1900 = vadd.f32 %v132, %v1793
    %v1901 = vadd.f32 %v133, %v1796
    %v1902 = vadd.f32 %v134, %v1798
    %v1903 = vadd.f32 %v135, %v1801
    %v1904 = vadd.f32 %v136, %v1803
    %v1905 = vadd.f32 %v137, %v1806
    %v1906 = vadd.f32 %v138, %v1808
    %v1907 = vadd.f32 %v139, %v1811
    %v1908 = vadd.f32 %v140, %v1813
    %v1909 = vadd.f32 %v141, %v1816
    %v1910 = vadd.f32 %v142, %v1818
    %v1911 = vadd.f32 %v143, %v1821
    %v1912 = vadd.f32 %v144, %v1823
    %v1913 = vadd.f32 %v145, %v1826
    %v1914 = vadd.f32 %v146, %v1828
    %v1915 = vadd.f32 %v147, %v1831
    %v1916 = vadd.f32 %v148, %v1833
    %v1917 = vadd.f32 %v149, %v1836
    %v1918 = vadd.f32 %v150, %v1838
    %v1919 = vadd.f32 %v151, %v1841
    %v1920 = vadd.f32 %v152, %v1843
    %v1921 = vadd.f32 %v153, %v1846
    %v1922 = vadd.f32 %v154, %v1848
    %v1923 = vadd.f32 %v155, %v1851
    %v1924 = vadd.f32 %v156, %v1853
    %v1925 = vadd.f32 %v157, %v1856
    %v1926 = vadd.f32 %v158, %v1858
    %v1927 = vadd.f32 %v159, %v1861
    %v1928 = vadd.f32 %v160, %v1863
    %1929 = vst [vmem:[#allocation5] sm:$0xff] %v1865
    %1930 = vst [vmem:[#allocation5 + $0x8] sm:$0xff] %v1866
    %1931 = vst [vmem:[#allocation5 + $0x10] sm:$0xff] %v1867
    %1932 = vst [vmem:[#allocation5 + $0x18] sm:$0xff] %v1868
    %1933 = vst [vmem:[#allocation5 + $0x20] sm:$0xff] %v1869
    %1934 = vst [vmem:[#allocation5 + $0x28] sm:$0xff] %v1870
    %1935 = vst [vmem:[#allocation5 + $0x30] sm:$0xff] %v1871
    %1936 = vst [vmem:[#allocation5 + $0x38] sm:$0xff] %v1872
    %1937 = vst [vmem:[#allocation5 + $0x40] sm:$0xff] %v1873
    %1938 = vst [vmem:[#allocation5 + $0x48] sm:$0xff] %v1874
    %1939 = vst [vmem:[#allocation5 + $0x50] sm:$0xff] %v1875
    %1940 = vst [vmem:[#allocation5 + $0x58] sm:$0xff] %v1876
    %1941 = vst [vmem:[#allocation5 + $0x60] sm:$0xff] %v1877
    %1942 = vst [vmem:[#allocation5 + $0x68] sm:$0xff] %v1878
    %1943 = vst [vmem:[#allocation5 + $0x70] sm:$0xff] %v1879
    %1944 = vst [vmem:[#allocation5 + $0x78] sm:$0xff] %v1880
    %1945 = vst [vmem:[#allocation5 + $0x80] sm:$0xff] %v1881
    %1946 = vst [vmem:[#allocation5 + $0x88] sm:$0xff] %v1882
    %1947 = vst [vmem:[#allocation5 + $0x90] sm:$0xff] %v1883
    %1948 = vst [vmem:[#allocation5 + $0x98] sm:$0xff] %v1884
    %1949 = vst [vmem:[#allocation5 + $0xa0] sm:$0xff] %v1885
    %1950 = vst [vmem:[#allocation5 + $0xa8] sm:$0xff] %v1886
    %1951 = vst [vmem:[#allocation5 + $0xb0] sm:$0xff] %v1887
    %1952 = vst [vmem:[#allocation5 + $0xb8] sm:$0xff] %v1888
    %1953 = vst [vmem:[#allocation5 + $0xc0] sm:$0xff] %v1889
    %1954 = vst [vmem:[#allocation5 + $0xc8] sm:$0xff] %v1890
    %1955 = vst [vmem:[#allocation5 + $0xd0] sm:$0xff] %v1891
    %1956 = vst [vmem:[#allocation5 + $0xd8] sm:$0xff] %v1892
    %1957 = vst [vmem:[#allocation5 + $0xe0] sm:$0xff] %v1893
    %1958 = vst [vmem:[#allocation5 + $0xe8] sm:$0xff] %v1894
    %1959 = vst [vmem:[#allocation5 + $0xf0] sm:$0xff] %v1895
    %1960 = vst [vmem:[#allocation5 + $0xf8] sm:$0xff] %v1896
    %1961 = vst [vmem:[#allocation5 + $0x100] sm:$0xff] %v1897
    %1962 = vst [vmem:[#allocation5 + $0x108] sm:$0xff] %v1898
    %1963 = vst [vmem:[#allocation5 + $0x110] sm:$0xff] %v1899
    %1964 = vst [vmem:[#allocation5 + $0x118] sm:$0xff] %v1900
    %1965 = vst [vmem:[#allocation5 + $0x120] sm:$0xff] %v1901
    %1966 = vst [vmem:[#allocation5 + $0x128] sm:$0xff] %v1902
    %1967 = vst [vmem:[#allocation5 + $0x130] sm:$0xff] %v1903
    %1968 = vst [vmem:[#allocation5 + $0x138] sm:$0xff] %v1904
    %1969 = vst [vmem:[#allocation5 + $0x140] sm:$0xff] %v1905
    %1970 = vst [vmem:[#allocation5 + $0x148] sm:$0xff] %v1906
    %1971 = vst [vmem:[#allocation5 + $0x150] sm:$0xff] %v1907
    %1972 = vst [vmem:[#allocation5 + $0x158] sm:$0xff] %v1908
    %1973 = vst [vmem:[#allocation5 + $0x160] sm:$0xff] %v1909
    %1974 = vst [vmem:[#allocation5 + $0x168] sm:$0xff] %v1910
    %1975 = vst [vmem:[#allocation5 + $0x170] sm:$0xff] %v1911
    %1976 = vst [vmem:[#allocation5 + $0x178] sm:$0xff] %v1912
    %1977 = vst [vmem:[#allocation5 + $0x180] sm:$0xff] %v1913
    %1978 = vst [vmem:[#allocation5 + $0x188] sm:$0xff] %v1914
    %1979 = vst [vmem:[#allocation5 + $0x190] sm:$0xff] %v1915
    %1980 = vst [vmem:[#allocation5 + $0x198] sm:$0xff] %v1916
    %1981 = vst [vmem:[#allocation5 + $0x1a0] sm:$0xff] %v1917
    %1982 = vst [vmem:[#allocation5 + $0x1a8] sm:$0xff] %v1918
    %1983 = vst [vmem:[#allocation5 + $0x1b0] sm:$0xff] %v1919
    %1984 = vst [vmem:[#allocation5 + $0x1b8] sm:$0xff] %v1920
    %1985 = vst [vmem:[#allocation5 + $0x1c0] sm:$0xff] %v1921
    %1986 = vst [vmem:[#allocation5 + $0x1c8] sm:$0xff] %v1922
    %1987 = vst [vmem:[#allocation5 + $0x1d0] sm:$0xff] %v1923
    %1988 = vst [vmem:[#allocation5 + $0x1d8] sm:$0xff] %v1924
    %1989 = vst [vmem:[#allocation5 + $0x1e0] sm:$0xff] %v1925
    %1990 = vst [vmem:[#allocation5 + $0x1e8] sm:$0xff] %v1926
    %1991 = vst [vmem:[#allocation5 + $0x1f0] sm:$0xff] %v1927
    %1992 = vst [vmem:[#allocation5 + $0x1f8] sm:$0xff] %v1928
    // Predicated region
    $region18: #{gcn_forward_padded.7} parent=1 // pred_check
      %p1993 = pneg %p28
    $region19: #{gcn_forward_padded.7} parent=1 // pred_check_branch
      %1995 = sbr.rel (%p1993) target = $region21
    $region20: #{gcn_forward_padded.7} parent=1 // pred_region
      %v1996 = vld [vmem:[#allocation5] sm:$0xff]
      %v1997 = vld [vmem:[#allocation5 + $0x8] sm:$0xff]
      %v1998 = vld [vmem:[#allocation5 + $0x10] sm:$0xff]
      %v1999 = vld [vmem:[#allocation5 + $0x18] sm:$0xff]
      %v2000 = vld [vmem:[#allocation5 + $0x20] sm:$0xff]
      %v2001 = vld [vmem:[#allocation5 + $0x28] sm:$0xff]
      %v2002 = vld [vmem:[#allocation5 + $0x30] sm:$0xff]
      %v2003 = vld [vmem:[#allocation5 + $0x38] sm:$0xff]
      %v2004 = vld [vmem:[#allocation5 + $0x40] sm:$0xff]
      %v2005 = vld [vmem:[#allocation5 + $0x48] sm:$0xff]
      %v2006 = vld [vmem:[#allocation5 + $0x50] sm:$0xff]
      %v2007 = vld [vmem:[#allocation5 + $0x58] sm:$0xff]
      %v2008 = vld [vmem:[#allocation5 + $0x60] sm:$0xff]
      %v2009 = vld [vmem:[#allocation5 + $0x68] sm:$0xff]
      %v2010 = vld [vmem:[#allocation5 + $0x70] sm:$0xff]
      %v2011 = vld [vmem:[#allocation5 + $0x78] sm:$0xff]
      %v2012 = vld [vmem:[#allocation5 + $0x80] sm:$0xff]
      %v2013 = vld [vmem:[#allocation5 + $0x88] sm:$0xff]
      %v2014 = vld [vmem:[#allocation5 + $0x90] sm:$0xff]
      %v2015 = vld [vmem:[#allocation5 + $0x98] sm:$0xff]
      %v2016 = vld [vmem:[#allocation5 + $0xa0] sm:$0xff]
      %v2017 = vld [vmem:[#allocation5 + $0xa8] sm:$0xff]
      %v2018 = vld [vmem:[#allocation5 + $0xb0] sm:$0xff]
      %v2019 = vld [vmem:[#allocation5 + $0xb8] sm:$0xff]
      %v2020 = vld [vmem:[#allocation5 + $0xc0] sm:$0xff]
      %v2021 = vld [vmem:[#allocation5 + $0xc8] sm:$0xff]
      %v2022 = vld [vmem:[#allocation5 + $0xd0] sm:$0xff]
      %v2023 = vld [vmem:[#allocation5 + $0xd8] sm:$0xff]
      %v2024 = vld [vmem:[#allocation5 + $0xe0] sm:$0xff]
      %v2025 = vld [vmem:[#allocation5 + $0xe8] sm:$0xff]
      %v2026 = vld [vmem:[#allocation5 + $0xf0] sm:$0xff]
      %v2027 = vld [vmem:[#allocation5 + $0xf8] sm:$0xff]
      %v2028 = vld [vmem:[#allocation5 + $0x100] sm:$0xff]
      %v2029 = vld [vmem:[#allocation5 + $0x108] sm:$0xff]
      %v2030 = vld [vmem:[#allocation5 + $0x110] sm:$0xff]
      %v2031 = vld [vmem:[#allocation5 + $0x118] sm:$0xff]
      %v2032 = vld [vmem:[#allocation5 + $0x120] sm:$0xff]
      %v2033 = vld [vmem:[#allocation5 + $0x128] sm:$0xff]
      %v2034 = vld [vmem:[#allocation5 + $0x130] sm:$0xff]
      %v2035 = vld [vmem:[#allocation5 + $0x138] sm:$0xff]
      %v2036 = vld [vmem:[#allocation5 + $0x140] sm:$0xff]
      %v2037 = vld [vmem:[#allocation5 + $0x148] sm:$0xff]
      %v2038 = vld [vmem:[#allocation5 + $0x150] sm:$0xff]
      %v2039 = vld [vmem:[#allocation5 + $0x158] sm:$0xff]
      %v2040 = vld [vmem:[#allocation5 + $0x160] sm:$0xff]
      %v2041 = vld [vmem:[#allocation5 + $0x168] sm:$0xff]
      %v2042 = vld [vmem:[#allocation5 + $0x170] sm:$0xff]
      %v2043 = vld [vmem:[#allocation5 + $0x178] sm:$0xff]
      %v2044 = vld [vmem:[#allocation5 + $0x180] sm:$0xff]
      %v2045 = vld [vmem:[#allocation5 + $0x188] sm:$0xff]
      %v2046 = vld [vmem:[#allocation5 + $0x190] sm:$0xff]
      %v2047 = vld [vmem:[#allocation5 + $0x198] sm:$0xff]
      %v2048 = vld [vmem:[#allocation5 + $0x1a0] sm:$0xff]
      %v2049 = vld [vmem:[#allocation5 + $0x1a8] sm:$0xff]
      %v2050 = vld [vmem:[#allocation5 + $0x1b0] sm:$0xff]
      %v2051 = vld [vmem:[#allocation5 + $0x1b8] sm:$0xff]
      %v2052 = vld [vmem:[#allocation5 + $0x1c0] sm:$0xff]
      %v2053 = vld [vmem:[#allocation5 + $0x1c8] sm:$0xff]
      %v2054 = vld [vmem:[#allocation5 + $0x1d0] sm:$0xff]
      %v2055 = vld [vmem:[#allocation5 + $0x1d8] sm:$0xff]
      %v2056 = vld [vmem:[#allocation5 + $0x1e0] sm:$0xff]
      %v2057 = vld [vmem:[#allocation5 + $0x1e8] sm:$0xff]
      %v2058 = vld [vmem:[#allocation5 + $0x1f0] sm:$0xff]
      %v2059 = vld [vmem:[#allocation5 + $0x1f8] sm:$0xff]
      %2060 = vst [vmem:[#allocation5] sm:$0xff] %v1996
      %2061 = vst [vmem:[#allocation5 + $0x8] sm:$0xff] %v1997
      %2062 = vst [vmem:[#allocation5 + $0x10] sm:$0xff] %v1998
      %2063 = vst [vmem:[#allocation5 + $0x18] sm:$0xff] %v1999
      %2064 = vst [vmem:[#allocation5 + $0x20] sm:$0xff] %v2000
      %2065 = vst [vmem:[#allocation5 + $0x28] sm:$0xff] %v2001
      %2066 = vst [vmem:[#allocation5 + $0x30] sm:$0xff] %v2002
      %2067 = vst [vmem:[#allocation5 + $0x38] sm:$0xff] %v2003
      %2068 = vst [vmem:[#allocation5 + $0x40] sm:$0xff] %v2004
      %2069 = vst [vmem:[#allocation5 + $0x48] sm:$0xff] %v2005
      %2070 = vst [vmem:[#allocation5 + $0x50] sm:$0xff] %v2006
      %2071 = vst [vmem:[#allocation5 + $0x58] sm:$0xff] %v2007
      %2072 = vst [vmem:[#allocation5 + $0x60] sm:$0xff] %v2008
      %2073 = vst [vmem:[#allocation5 + $0x68] sm:$0xff] %v2009
      %2074 = vst [vmem:[#allocation5 + $0x70] sm:$0xff] %v2010
      %2075 = vst [vmem:[#allocation5 + $0x78] sm:$0xff] %v2011
      %2076 = vst [vmem:[#allocation5 + $0x80] sm:$0xff] %v2012
      %2077 = vst [vmem:[#allocation5 + $0x88] sm:$0xff] %v2013
      %2078 = vst [vmem:[#allocation5 + $0x90] sm:$0xff] %v2014
      %2079 = vst [vmem:[#allocation5 + $0x98] sm:$0xff] %v2015
      %2080 = vst [vmem:[#allocation5 + $0xa0] sm:$0xff] %v2016
      %2081 = vst [vmem:[#allocation5 + $0xa8] sm:$0xff] %v2017
      %2082 = vst [vmem:[#allocation5 + $0xb0] sm:$0xff] %v2018
      %2083 = vst [vmem:[#allocation5 + $0xb8] sm:$0xff] %v2019
      %2084 = vst [vmem:[#allocation5 + $0xc0] sm:$0xff] %v2020
      %2085 = vst [vmem:[#allocation5 + $0xc8] sm:$0xff] %v2021
      %2086 = vst [vmem:[#allocation5 + $0xd0] sm:$0xff] %v2022
      %2087 = vst [vmem:[#allocation5 + $0xd8] sm:$0xff] %v2023
      %2088 = vst [vmem:[#allocation5 + $0xe0] sm:$0xff] %v2024
      %2089 = vst [vmem:[#allocation5 + $0xe8] sm:$0xff] %v2025
      %2090 = vst [vmem:[#allocation5 + $0xf0] sm:$0xff] %v2026
      %2091 = vst [vmem:[#allocation5 + $0xf8] sm:$0xff] %v2027
      %2092 = vst [vmem:[#allocation5 + $0x100] sm:$0xff] %v2028
      %2093 = vst [vmem:[#allocation5 + $0x108] sm:$0xff] %v2029
      %2094 = vst [vmem:[#allocation5 + $0x110] sm:$0xff] %v2030
      %2095 = vst [vmem:[#allocation5 + $0x118] sm:$0xff] %v2031
      %2096 = vst [vmem:[#allocation5 + $0x120] sm:$0xff] %v2032
      %2097 = vst [vmem:[#allocation5 + $0x128] sm:$0xff] %v2033
      %2098 = vst [vmem:[#allocation5 + $0x130] sm:$0xff] %v2034
      %2099 = vst [vmem:[#allocation5 + $0x138] sm:$0xff] %v2035
      %2100 = vst [vmem:[#allocation5 + $0x140] sm:$0xff] %v2036
      %2101 = vst [vmem:[#allocation5 + $0x148] sm:$0xff] %v2037
      %2102 = vst [vmem:[#allocation5 + $0x150] sm:$0xff] %v2038
      %2103 = vst [vmem:[#allocation5 + $0x158] sm:$0xff] %v2039
      %2104 = vst [vmem:[#allocation5 + $0x160] sm:$0xff] %v2040
      %2105 = vst [vmem:[#allocation5 + $0x168] sm:$0xff] %v2041
      %2106 = vst [vmem:[#allocation5 + $0x170] sm:$0xff] %v2042
      %2107 = vst [vmem:[#allocation5 + $0x178] sm:$0xff] %v2043
      %2108 = vst [vmem:[#allocation5 + $0x180] sm:$0xff] %v2044
      %2109 = vst [vmem:[#allocation5 + $0x188] sm:$0xff] %v2045
      %2110 = vst [vmem:[#allocation5 + $0x190] sm:$0xff] %v2046
      %2111 = vst [vmem:[#allocation5 + $0x198] sm:$0xff] %v2047
      %2112 = vst [vmem:[#allocation5 + $0x1a0] sm:$0xff] %v2048
      %2113 = vst [vmem:[#allocation5 + $0x1a8] sm:$0xff] %v2049
      %2114 = vst [vmem:[#allocation5 + $0x1b0] sm:$0xff] %v2050
      %2115 = vst [vmem:[#allocation5 + $0x1b8] sm:$0xff] %v2051
      %2116 = vst [vmem:[#allocation5 + $0x1c0] sm:$0xff] %v2052
      %2117 = vst [vmem:[#allocation5 + $0x1c8] sm:$0xff] %v2053
      %2118 = vst [vmem:[#allocation5 + $0x1d0] sm:$0xff] %v2054
      %2119 = vst [vmem:[#allocation5 + $0x1d8] sm:$0xff] %v2055
      %2120 = vst [vmem:[#allocation5 + $0x1e0] sm:$0xff] %v2056
      %2121 = vst [vmem:[#allocation5 + $0x1e8] sm:$0xff] %v2057
      %2122 = vst [vmem:[#allocation5 + $0x1f0] sm:$0xff] %v2058
      %2123 = vst [vmem:[#allocation5 + $0x1f8] sm:$0xff] %v2059
    $region21: #{gcn_forward_padded.7} parent=1 // pred_fallthru
      _
    // Predicated region
    $region22: #{gcn_forward_padded.7} parent=1 // pred_check
      _
    $region23: #{gcn_forward_padded.7} parent=1 // pred_check_branch
      %2125 = sbr.rel (0) target = $region25
    $region24: #{gcn_forward_padded.7} parent=1 // pred_region
      %2127 = vsyncadd [#allocation4], 0
      %s2128 = sshll.u32 [#allocation5], 4
      %s2129 = int_to_ptr.vmem [resolvable:$true] %s2128
      %s2130 = sshll.u32 %s2, 4
      %s2131 = int_to_ptr.hbm [resolvable:$true] %s2130
      %2136 = dma.vmem_to_hbm [thread:$0]  %s2129, 8192, %s2131, [#allocation4], 128, 128, 8
    $region25: #{gcn_forward_padded.7} parent=1 // pred_fallthru
      _
    // Predicated region
    $region26: #{gcn_forward_padded.7} parent=1 // pred_check
      _
    $region27: #{gcn_forward_padded.7} parent=1 // pred_check_branch
      %2138 = sbr.rel (0) target = $region29
    $region28: #{gcn_forward_padded.7} parent=1 // pred_region
      %2140 = dma.done [#allocation4], 8192
    $region29: #{gcn_forward_padded.7} parent=1 // pred_fallthru
      _
    %2141 = vsyncpa [#allocation3], 1
    %2142 = vsyncpa [#allocation4], 1

// kernel: gcn_forward_padded.5
$region0: #{gcn_forward_padded.5}
  #allocation0 [shape = 'u32[]', space=smem, size = 0x4, offset = 0x4, fixed_abs, tag = 'smem constant byte address 0x4 - core index']
  #allocation1 [shape = 'u32[72,128]{1,0:T(1,128)}', space=vmem, size = 0x9000, scoped, tag = 'internal scratch']
  #allocation2 [shape = 'f32[512,128]{1,0:T(8,128)}', space=vmem, size = 0x40000, scoped, tag = 'scratch operand']
  %s0 = inlined_call_operand.hbm [shape: bf16[512,512], index: 0, kind: input, shape index: {}]
  %s1 = inlined_call_operand.vmem [shape: bf16[512,128], index: 1, kind: input, shape index: {}]
  %s2 = inlined_call_operand.vmem [shape: bf16[512,128], index: 2, kind: output, shape index: {}]
  %s3 = sld [smem:[#allocation0]]
  $region30: #{gcn_forward_padded.5} parent=0
    _
  %s5 = ssub.s32 1, %s3
  %s6 = scalar_select 0, %s5, %s3
  $region1: #{gcn_forward_padded.5} parent=0
    #allocation3 [shape = 'u8[524288]{0}', space=vmem, size = 0x80000, scoped, tag = 'input window, operand 0, single buffered']
    #allocation4 [shape = 's32[1]{0}', space=sflag, size = 0x4, scoped, tag = 'scoped memory for gcn_forward_padded.5']
    %7 = vsyncpa [#allocation4], 0
    // Predicated region
    $region2: #{gcn_forward_padded.5} parent=1 // pred_check
      _
    $region3: #{gcn_forward_padded.5} parent=1 // pred_check_branch
      %9 = sbr.rel (0) target = $region5
    $region4: #{gcn_forward_padded.5} parent=1 // pred_region
      %11 = vsyncadd [#allocation4], 0
      %s12 = sshll.u32 %s0, 4
      %s13 = int_to_ptr.hbm [resolvable:$true] %s12
      %s14 = sshll.u32 [#allocation3], 4
      %s15 = int_to_ptr.vmem [resolvable:$true] %s14
      %20 = dma.hbm_to_vmem [thread:$0]  %s13, 16384, %s15, [#allocation4], 256, 256, 16
    $region5: #{gcn_forward_padded.5} parent=1 // pred_fallthru
      _
    // Predicated region
    $region6: #{gcn_forward_padded.5} parent=1 // pred_check
      _
    $region7: #{gcn_forward_padded.5} parent=1 // pred_check_branch
      %22 = sbr.rel (0) target = $region9
    $region8: #{gcn_forward_padded.5} parent=1 // pred_region
      _
    $region9: #{gcn_forward_padded.5} parent=1 // pred_fallthru
      _
    // Predicated region
    $region10: #{gcn_forward_padded.5} parent=1 // pred_check
      _
    $region11: #{gcn_forward_padded.5} parent=1 // pred_check_branch
      %24 = sbr.rel (0) target = $region13
    $region12: #{gcn_forward_padded.5} parent=1 // pred_region
      %26 = dma.done [#allocation4], 16384
    $region13: #{gcn_forward_padded.5} parent=1 // pred_fallthru
      _
    %p27 = scmp.eq.s32.totalorder 0, 0
    // Predicated region
    $region14: #{gcn_forward_padded.5} parent=1 // pred_check
      %p28 = pneg %p27
    $region15: #{gcn_forward_padded.5} parent=1 // pred_check_branch
      %30 = sbr.rel (%p28) target = $region17
    $region16: #{gcn_forward_padded.5} parent=1 // pred_region
      %31 = vst [vmem:[#allocation2] sm:$0xff] 0.0
      %32 = vst [vmem:[#allocation2 + $0x8] sm:$0xff] 0.0
      %33 = vst [vmem:[#allocation2 + $0x10] sm:$0xff] 0.0
      %34 = vst [vmem:[#allocation2 + $0x18] sm:$0xff] 0.0
      %35 = vst [vmem:[#allocation2 + $0x20] sm:$0xff] 0.0
      %36 = vst [vmem:[#allocation2 + $0x28] sm:$0xff] 0.0
      %37 = vst [vmem:[#allocation2 + $0x30] sm:$0xff] 0.0
      %38 = vst [vmem:[#allocation2 + $0x38] sm:$0xff] 0.0
      %39 = vst [vmem:[#allocation2 + $0x40] sm:$0xff] 0.0
      %40 = vst [vmem:[#allocation2 + $0x48] sm:$0xff] 0.0
      %41 = vst [vmem:[#allocation2 + $0x50] sm:$0xff] 0.0
      %42 = vst [vmem:[#allocation2 + $0x58] sm:$0xff] 0.0
      %43 = vst [vmem:[#allocation2 + $0x60] sm:$0xff] 0.0
      %44 = vst [vmem:[#allocation2 + $0x68] sm:$0xff] 0.0
      %45 = vst [vmem:[#allocation2 + $0x70] sm:$0xff] 0.0
      %46 = vst [vmem:[#allocation2 + $0x78] sm:$0xff] 0.0
      %47 = vst [vmem:[#allocation2 + $0x80] sm:$0xff] 0.0
      %48 = vst [vmem:[#allocation2 + $0x88] sm:$0xff] 0.0
      %49 = vst [vmem:[#allocation2 + $0x90] sm:$0xff] 0.0
      %50 = vst [vmem:[#allocation2 + $0x98] sm:$0xff] 0.0
      %51 = vst [vmem:[#allocation2 + $0xa0] sm:$0xff] 0.0
      %52 = vst [vmem:[#allocation2 + $0xa8] sm:$0xff] 0.0
      %53 = vst [vmem:[#allocation2 + $0xb0] sm:$0xff] 0.0
      %54 = vst [vmem:[#allocation2 + $0xb8] sm:$0xff] 0.0
      %55 = vst [vmem:[#allocation2 + $0xc0] sm:$0xff] 0.0
      %56 = vst [vmem:[#allocation2 + $0xc8] sm:$0xff] 0.0
      %57 = vst [vmem:[#allocation2 + $0xd0] sm:$0xff] 0.0
      %58 = vst [vmem:[#allocation2 + $0xd8] sm:$0xff] 0.0
      %59 = vst [vmem:[#allocation2 + $0xe0] sm:$0xff] 0.0
      %60 = vst [vmem:[#allocation2 + $0xe8] sm:$0xff] 0.0
      %61 = vst [vmem:[#allocation2 + $0xf0] sm:$0xff] 0.0
      %62 = vst [vmem:[#allocation2 + $0xf8] sm:$0xff] 0.0
      %63 = vst [vmem:[#allocation2 + $0x100] sm:$0xff] 0.0
      %64 = vst [vmem:[#allocation2 + $0x108] sm:$0xff] 0.0
      %65 = vst [vmem:[#allocation2 + $0x110] sm:$0xff] 0.0
      %66 = vst [vmem:[#allocation2 + $0x118] sm:$0xff] 0.0
      %67 = vst [vmem:[#allocation2 + $0x120] sm:$0xff] 0.0
      %68 = vst [vmem:[#allocation2 + $0x128] sm:$0xff] 0.0
      %69 = vst [vmem:[#allocation2 + $0x130] sm:$0xff] 0.0
      %70 = vst [vmem:[#allocation2 + $0x138] sm:$0xff] 0.0
      %71 = vst [vmem:[#allocation2 + $0x140] sm:$0xff] 0.0
      %72 = vst [vmem:[#allocation2 + $0x148] sm:$0xff] 0.0
      %73 = vst [vmem:[#allocation2 + $0x150] sm:$0xff] 0.0
      %74 = vst [vmem:[#allocation2 + $0x158] sm:$0xff] 0.0
      %75 = vst [vmem:[#allocation2 + $0x160] sm:$0xff] 0.0
      %76 = vst [vmem:[#allocation2 + $0x168] sm:$0xff] 0.0
      %77 = vst [vmem:[#allocation2 + $0x170] sm:$0xff] 0.0
      %78 = vst [vmem:[#allocation2 + $0x178] sm:$0xff] 0.0
      %79 = vst [vmem:[#allocation2 + $0x180] sm:$0xff] 0.0
      %80 = vst [vmem:[#allocation2 + $0x188] sm:$0xff] 0.0
      %81 = vst [vmem:[#allocation2 + $0x190] sm:$0xff] 0.0
      %82 = vst [vmem:[#allocation2 + $0x198] sm:$0xff] 0.0
      %83 = vst [vmem:[#allocation2 + $0x1a0] sm:$0xff] 0.0
      %84 = vst [vmem:[#allocation2 + $0x1a8] sm:$0xff] 0.0
      %85 = vst [vmem:[#allocation2 + $0x1b0] sm:$0xff] 0.0
      %86 = vst [vmem:[#allocation2 + $0x1b8] sm:$0xff] 0.0
      %87 = vst [vmem:[#allocation2 + $0x1c0] sm:$0xff] 0.0
      %88 = vst [vmem:[#allocation2 + $0x1c8] sm:$0xff] 0.0
      %89 = vst [vmem:[#allocation2 + $0x1d0] sm:$0xff] 0.0
      %90 = vst [vmem:[#allocation2 + $0x1d8] sm:$0xff] 0.0
      %91 = vst [vmem:[#allocation2 + $0x1e0] sm:$0xff] 0.0
      %92 = vst [vmem:[#allocation2 + $0x1e8] sm:$0xff] 0.0
      %93 = vst [vmem:[#allocation2 + $0x1f0] sm:$0xff] 0.0
      %94 = vst [vmem:[#allocation2 + $0x1f8] sm:$0xff] 0.0
    $region17: #{gcn_forward_padded.5} parent=1 // pred_fallthru
      _
    %s95 = smul.u32 0, 512
    %v96 = vld [vmem:[#allocation2] sm:$0xff]
    %v97 = vld [vmem:[#allocation2 + $0x8] sm:$0xff]
    %v98 = vld [vmem:[#allocation2 + $0x10] sm:$0xff]
    %v99 = vld [vmem:[#allocation2 + $0x18] sm:$0xff]
    %v100 = vld [vmem:[#allocation2 + $0x20] sm:$0xff]
    %v101 = vld [vmem:[#allocation2 + $0x28] sm:$0xff]
    %v102 = vld [vmem:[#allocation2 + $0x30] sm:$0xff]
    %v103 = vld [vmem:[#allocation2 + $0x38] sm:$0xff]
    %v104 = vld [vmem:[#allocation2 + $0x40] sm:$0xff]
    %v105 = vld [vmem:[#allocation2 + $0x48] sm:$0xff]
    %v106 = vld [vmem:[#allocation2 + $0x50] sm:$0xff]
    %v107 = vld [vmem:[#allocation2 + $0x58] sm:$0xff]
    %v108 = vld [vmem:[#allocation2 + $0x60] sm:$0xff]
    %v109 = vld [vmem:[#allocation2 + $0x68] sm:$0xff]
    %v110 = vld [vmem:[#allocation2 + $0x70] sm:$0xff]
    %v111 = vld [vmem:[#allocation2 + $0x78] sm:$0xff]
    %v112 = vld [vmem:[#allocation2 + $0x80] sm:$0xff]
    %v113 = vld [vmem:[#allocation2 + $0x88] sm:$0xff]
    %v114 = vld [vmem:[#allocation2 + $0x90] sm:$0xff]
    %v115 = vld [vmem:[#allocation2 + $0x98] sm:$0xff]
    %v116 = vld [vmem:[#allocation2 + $0xa0] sm:$0xff]
    %v117 = vld [vmem:[#allocation2 + $0xa8] sm:$0xff]
    %v118 = vld [vmem:[#allocation2 + $0xb0] sm:$0xff]
    %v119 = vld [vmem:[#allocation2 + $0xb8] sm:$0xff]
    %v120 = vld [vmem:[#allocation2 + $0xc0] sm:$0xff]
    %v121 = vld [vmem:[#allocation2 + $0xc8] sm:$0xff]
    %v122 = vld [vmem:[#allocation2 + $0xd0] sm:$0xff]
    %v123 = vld [vmem:[#allocation2 + $0xd8] sm:$0xff]
    %v124 = vld [vmem:[#allocation2 + $0xe0] sm:$0xff]
    %v125 = vld [vmem:[#allocation2 + $0xe8] sm:$0xff]
    %v126 = vld [vmem:[#allocation2 + $0xf0] sm:$0xff]
    %v127 = vld [vmem:[#allocation2 + $0xf8] sm:$0xff]
    %v128 = vld [vmem:[#allocation2 + $0x100] sm:$0xff]
    %v129 = vld [vmem:[#allocation2 + $0x108] sm:$0xff]
    %v130 = vld [vmem:[#allocation2 + $0x110] sm:$0xff]
    %v131 = vld [vmem:[#allocation2 + $0x118] sm:$0xff]
    %v132 = vld [vmem:[#allocation2 + $0x120] sm:$0xff]
    %v133 = vld [vmem:[#allocation2 + $0x128] sm:$0xff]
    %v134 = vld [vmem:[#allocation2 + $0x130] sm:$0xff]
    %v135 = vld [vmem:[#allocation2 + $0x138] sm:$0xff]
    %v136 = vld [vmem:[#allocation2 + $0x140] sm:$0xff]
    %v137 = vld [vmem:[#allocation2 + $0x148] sm:$0xff]
    %v138 = vld [vmem:[#allocation2 + $0x150] sm:$0xff]
    %v139 = vld [vmem:[#allocation2 + $0x158] sm:$0xff]
    %v140 = vld [vmem:[#allocation2 + $0x160] sm:$0xff]
    %v141 = vld [vmem:[#allocation2 + $0x168] sm:$0xff]
    %v142 = vld [vmem:[#allocation2 + $0x170] sm:$0xff]
    %v143 = vld [vmem:[#allocation2 + $0x178] sm:$0xff]
    %v144 = vld [vmem:[#allocation2 + $0x180] sm:$0xff]
    %v145 = vld [vmem:[#allocation2 + $0x188] sm:$0xff]
    %v146 = vld [vmem:[#allocation2 + $0x190] sm:$0xff]
    %v147 = vld [vmem:[#allocation2 + $0x198] sm:$0xff]
    %v148 = vld [vmem:[#allocation2 + $0x1a0] sm:$0xff]
    %v149 = vld [vmem:[#allocation2 + $0x1a8] sm:$0xff]
    %v150 = vld [vmem:[#allocation2 + $0x1b0] sm:$0xff]
    %v151 = vld [vmem:[#allocation2 + $0x1b8] sm:$0xff]
    %v152 = vld [vmem:[#allocation2 + $0x1c0] sm:$0xff]
    %v153 = vld [vmem:[#allocation2 + $0x1c8] sm:$0xff]
    %v154 = vld [vmem:[#allocation2 + $0x1d0] sm:$0xff]
    %v155 = vld [vmem:[#allocation2 + $0x1d8] sm:$0xff]
    %v156 = vld [vmem:[#allocation2 + $0x1e0] sm:$0xff]
    %v157 = vld [vmem:[#allocation2 + $0x1e8] sm:$0xff]
    %v158 = vld [vmem:[#allocation2 + $0x1f0] sm:$0xff]
    %v159 = vld [vmem:[#allocation2 + $0x1f8] sm:$0xff]
    %v160 = vld [vmem:[#allocation3] sm:$0xff]
    %v161 = vld [vmem:[#allocation3 + $0x8] sm:$0xff]
    %v162 = vld [vmem:[#allocation3 + $0x10] sm:$0xff]
    %v163 = vld [vmem:[#allocation3 + $0x18] sm:$0xff]
    %v164 = vld [vmem:[#allocation3 + $0x20] sm:$0xff]
    %v165 = vld [vmem:[#allocation3 + $0x28] sm:$0xff]
    %v166 = vld [vmem:[#allocation3 + $0x30] sm:$0xff]
    %v167 = vld [vmem:[#allocation3 + $0x38] sm:$0xff]
    %v168 = vld [vmem:[#allocation3 + $0x40] sm:$0xff]
    %v169 = vld [vmem:[#allocation3 + $0x48] sm:$0xff]
    %v170 = vld [vmem:[#allocation3 + $0x50] sm:$0xff]
    %v171 = vld [vmem:[#allocation3 + $0x58] sm:$0xff]
    %v172 = vld [vmem:[#allocation3 + $0x60] sm:$0xff]
    %v173 = vld [vmem:[#allocation3 + $0x68] sm:$0xff]
    %v174 = vld [vmem:[#allocation3 + $0x70] sm:$0xff]
    %v175 = vld [vmem:[#allocation3 + $0x78] sm:$0xff]
    %v176 = vld [vmem:[#allocation3 + $0x80] sm:$0xff]
    %v177 = vld [vmem:[#allocation3 + $0x88] sm:$0xff]
    %v178 = vld [vmem:[#allocation3 + $0x90] sm:$0xff]
    %v179 = vld [vmem:[#allocation3 + $0x98] sm:$0xff]
    %v180 = vld [vmem:[#allocation3 + $0xa0] sm:$0xff]
    %v181 = vld [vmem:[#allocation3 + $0xa8] sm:$0xff]
    %v182 = vld [vmem:[#allocation3 + $0xb0] sm:$0xff]
    %v183 = vld [vmem:[#allocation3 + $0xb8] sm:$0xff]
    %v184 = vld [vmem:[#allocation3 + $0xc0] sm:$0xff]
    %v185 = vld [vmem:[#allocation3 + $0xc8] sm:$0xff]
    %v186 = vld [vmem:[#allocation3 + $0xd0] sm:$0xff]
    %v187 = vld [vmem:[#allocation3 + $0xd8] sm:$0xff]
    %v188 = vld [vmem:[#allocation3 + $0xe0] sm:$0xff]
    %v189 = vld [vmem:[#allocation3 + $0xe8] sm:$0xff]
    %v190 = vld [vmem:[#allocation3 + $0xf0] sm:$0xff]
    %v191 = vld [vmem:[#allocation3 + $0xf8] sm:$0xff]
    %v192 = vld [vmem:[#allocation3 + $0x100] sm:$0xff]
    %v193 = vld [vmem:[#allocation3 + $0x108] sm:$0xff]
    %v194 = vld [vmem:[#allocation3 + $0x110] sm:$0xff]
    %v195 = vld [vmem:[#allocation3 + $0x118] sm:$0xff]
    %v196 = vld [vmem:[#allocation3 + $0x120] sm:$0xff]
    %v197 = vld [vmem:[#allocation3 + $0x128] sm:$0xff]
    %v198 = vld [vmem:[#allocation3 + $0x130] sm:$0xff]
    %v199 = vld [vmem:[#allocation3 + $0x138] sm:$0xff]
    %v200 = vld [vmem:[#allocation3 + $0x140] sm:$0xff]
    %v201 = vld [vmem:[#allocation3 + $0x148] sm:$0xff]
    %v202 = vld [vmem:[#allocation3 + $0x150] sm:$0xff]
    %v203 = vld [vmem:[#allocation3 + $0x158] sm:$0xff]
    %v204 = vld [vmem:[#allocation3 + $0x160] sm:$0xff]
    %v205 = vld [vmem:[#allocation3 + $0x168] sm:$0xff]
    %v206 = vld [vmem:[#allocation3 + $0x170] sm:$0xff]
    %v207 = vld [vmem:[#allocation3 + $0x178] sm:$0xff]
    %v208 = vld [vmem:[#allocation3 + $0x180] sm:$0xff]
    %v209 = vld [vmem:[#allocation3 + $0x188] sm:$0xff]
    %v210 = vld [vmem:[#allocation3 + $0x190] sm:$0xff]
    %v211 = vld [vmem:[#allocation3 + $0x198] sm:$0xff]
    %v212 = vld [vmem:[#allocation3 + $0x1a0] sm:$0xff]
    %v213 = vld [vmem:[#allocation3 + $0x1a8] sm:$0xff]
    %v214 = vld [vmem:[#allocation3 + $0x1b0] sm:$0xff]
    %v215 = vld [vmem:[#allocation3 + $0x1b8] sm:$0xff]
    %v216 = vld [vmem:[#allocation3 + $0x1c0] sm:$0xff]
    %v217 = vld [vmem:[#allocation3 + $0x1c8] sm:$0xff]
    %v218 = vld [vmem:[#allocation3 + $0x1d0] sm:$0xff]
    %v219 = vld [vmem:[#allocation3 + $0x1d8] sm:$0xff]
    %v220 = vld [vmem:[#allocation3 + $0x1e0] sm:$0xff]
    %v221 = vld [vmem:[#allocation3 + $0x1e8] sm:$0xff]
    %v222 = vld [vmem:[#allocation3 + $0x1f0] sm:$0xff]
    %v223 = vld [vmem:[#allocation3 + $0x1f8] sm:$0xff]
    %v224 = vld [vmem:[#allocation3 + $0x200] sm:$0xff]
    %v225 = vld [vmem:[#allocation3 + $0x208] sm:$0xff]
    %v226 = vld [vmem:[#allocation3 + $0x210] sm:$0xff]
    %v227 = vld [vmem:[#allocation3 + $0x218] sm:$0xff]
    %v228 = vld [vmem:[#allocation3 + $0x220] sm:$0xff]
    %v229 = vld [vmem:[#allocation3 + $0x228] sm:$0xff]
    %v230 = vld [vmem:[#allocation3 + $0x230] sm:$0xff]
    %v231 = vld [vmem:[#allocation3 + $0x238] sm:$0xff]
    %v232 = vld [vmem:[#allocation3 + $0x240] sm:$0xff]
    %v233 = vld [vmem:[#allocation3 + $0x248] sm:$0xff]
    %v234 = vld [vmem:[#allocation3 + $0x250] sm:$0xff]
    %v235 = vld [vmem:[#allocation3 + $0x258] sm:$0xff]
    %v236 = vld [vmem:[#allocation3 + $0x260] sm:$0xff]
    %v237 = vld [vmem:[#allocation3 + $0x268] sm:$0xff]
    %v238 = vld [vmem:[#allocation3 + $0x270] sm:$0xff]
    %v239 = vld [vmem:[#allocation3 + $0x278] sm:$0xff]
    %v240 = vld [vmem:[#allocation3 + $0x280] sm:$0xff]
    %v241 = vld [vmem:[#allocation3 + $0x288] sm:$0xff]
    %v242 = vld [vmem:[#allocation3 + $0x290] sm:$0xff]
    %v243 = vld [vmem:[#allocation3 + $0x298] sm:$0xff]
    %v244 = vld [vmem:[#allocation3 + $0x2a0] sm:$0xff]
    %v245 = vld [vmem:[#allocation3 + $0x2a8] sm:$0xff]
    %v246 = vld [vmem:[#allocation3 + $0x2b0] sm:$0xff]
    %v247 = vld [vmem:[#allocation3 + $0x2b8] sm:$0xff]
    %v248 = vld [vmem:[#allocation3 + $0x2c0] sm:$0xff]
    %v249 = vld [vmem:[#allocation3 + $0x2c8] sm:$0xff]
    %v250 = vld [vmem:[#allocation3 + $0x2d0] sm:$0xff]
    %v251 = vld [vmem:[#allocation3 + $0x2d8] sm:$0xff]
    %v252 = vld [vmem:[#allocation3 + $0x2e0] sm:$0xff]
    %v253 = vld [vmem:[#allocation3 + $0x2e8] sm:$0xff]
    %v254 = vld [vmem:[#allocation3 + $0x2f0] sm:$0xff]
    %v255 = vld [vmem:[#allocation3 + $0x2f8] sm:$0xff]
    %v256 = vld [vmem:[#allocation3 + $0x300] sm:$0xff]
    %v257 = vld [vmem:[#allocation3 + $0x308] sm:$0xff]
    %v258 = vld [vmem:[#allocation3 + $0x310] sm:$0xff]
    %v259 = vld [vmem:[#allocation3 + $0x318] sm:$0xff]
    %v260 = vld [vmem:[#allocation3 + $0x320] sm:$0xff]
    %v261 = vld [vmem:[#allocation3 + $0x328] sm:$0xff]
    %v262 = vld [vmem:[#allocation3 + $0x330] sm:$0xff]
    %v263 = vld [vmem:[#allocation3 + $0x338] sm:$0xff]
    %v264 = vld [vmem:[#allocation3 + $0x340] sm:$0xff]
    %v265 = vld [vmem:[#allocation3 + $0x348] sm:$0xff]
    %v266 = vld [vmem:[#allocation3 + $0x350] sm:$0xff]
    %v267 = vld [vmem:[#allocation3 + $0x358] sm:$0xff]
    %v268 = vld [vmem:[#allocation3 + $0x360] sm:$0xff]
    %v269 = vld [vmem:[#allocation3 + $0x368] sm:$0xff]
    %v270 = vld [vmem:[#allocation3 + $0x370] sm:$0xff]
    %v271 = vld [vmem:[#allocation3 + $0x378] sm:$0xff]
    %v272 = vld [vmem:[#allocation3 + $0x380] sm:$0xff]
    %v273 = vld [vmem:[#allocation3 + $0x388] sm:$0xff]
    %v274 = vld [vmem:[#allocation3 + $0x390] sm:$0xff]
    %v275 = vld [vmem:[#allocation3 + $0x398] sm:$0xff]
    %v276 = vld [vmem:[#allocation3 + $0x3a0] sm:$0xff]
    %v277 = vld [vmem:[#allocation3 + $0x3a8] sm:$0xff]
    %v278 = vld [vmem:[#allocation3 + $0x3b0] sm:$0xff]
    %v279 = vld [vmem:[#allocation3 + $0x3b8] sm:$0xff]
    %v280 = vld [vmem:[#allocation3 + $0x3c0] sm:$0xff]
    %v281 = vld [vmem:[#allocation3 + $0x3c8] sm:$0xff]
    %v282 = vld [vmem:[#allocation3 + $0x3d0] sm:$0xff]
    %v283 = vld [vmem:[#allocation3 + $0x3d8] sm:$0xff]
    %v284 = vld [vmem:[#allocation3 + $0x3e0] sm:$0xff]
    %v285 = vld [vmem:[#allocation3 + $0x3e8] sm:$0xff]
    %v286 = vld [vmem:[#allocation3 + $0x3f0] sm:$0xff]
    %v287 = vld [vmem:[#allocation3 + $0x3f8] sm:$0xff]
    %s288 = sshra.s32 %s95, 3
    %s289 = sand.u32 %s95, 7
    %s290 = smul.addr %s288, 4
    %s291 = scalar_lea.vmem %s1, %s290
    %v292 = vld [vmem:[%s291] sm:$0xf]
    %v293 = vld [vmem:[%s291 + $0x4] sm:$0xf]
    %v294 = vld [vmem:[%s291 + $0x8] sm:$0xf]
    %v295 = vld [vmem:[%s291 + $0xc] sm:$0xf]
    %v296 = vld [vmem:[%s291 + $0x10] sm:$0xf]
    %v297 = vld [vmem:[%s291 + $0x14] sm:$0xf]
    %v298 = vld [vmem:[%s291 + $0x18] sm:$0xf]
    %v299 = vld [vmem:[%s291 + $0x1c] sm:$0xf]
    %v300 = vld [vmem:[%s291 + $0x20] sm:$0xf]
    %v301 = vld [vmem:[%s291 + $0x24] sm:$0xf]
    %v302 = vld [vmem:[%s291 + $0x28] sm:$0xf]
    %v303 = vld [vmem:[%s291 + $0x2c] sm:$0xf]
    %v304 = vld [vmem:[%s291 + $0x30] sm:$0xf]
    %v305 = vld [vmem:[%s291 + $0x34] sm:$0xf]
    %v306 = vld [vmem:[%s291 + $0x38] sm:$0xf]
    %v307 = vld [vmem:[%s291 + $0x3c] sm:$0xf]
    %v308 = vld [vmem:[%s291 + $0x40] sm:$0xf]
    %v309 = vld [vmem:[%s291 + $0x44] sm:$0xf]
    %v310 = vld [vmem:[%s291 + $0x48] sm:$0xf]
    %v311 = vld [vmem:[%s291 + $0x4c] sm:$0xf]
    %v312 = vld [vmem:[%s291 + $0x50] sm:$0xf]
    %v313 = vld [vmem:[%s291 + $0x54] sm:$0xf]
    %v314 = vld [vmem:[%s291 + $0x58] sm:$0xf]
    %v315 = vld [vmem:[%s291 + $0x5c] sm:$0xf]
    %v316 = vld [vmem:[%s291 + $0x60] sm:$0xf]
    %v317 = vld [vmem:[%s291 + $0x64] sm:$0xf]
    %v318 = vld [vmem:[%s291 + $0x68] sm:$0xf]
    %v319 = vld [vmem:[%s291 + $0x6c] sm:$0xf]
    %v320 = vld [vmem:[%s291 + $0x70] sm:$0xf]
    %v321 = vld [vmem:[%s291 + $0x74] sm:$0xf]
    %v322 = vld [vmem:[%s291 + $0x78] sm:$0xf]
    %v323 = vld [vmem:[%s291 + $0x7c] sm:$0xf]
    %v324 = vld [vmem:[%s291 + $0x80] sm:$0xf]
    %v325 = vld [vmem:[%s291 + $0x84] sm:$0xf]
    %v326 = vld [vmem:[%s291 + $0x88] sm:$0xf]
    %v327 = vld [vmem:[%s291 + $0x8c] sm:$0xf]
    %v328 = vld [vmem:[%s291 + $0x90] sm:$0xf]
    %v329 = vld [vmem:[%s291 + $0x94] sm:$0xf]
    %v330 = vld [vmem:[%s291 + $0x98] sm:$0xf]
    %v331 = vld [vmem:[%s291 + $0x9c] sm:$0xf]
    %v332 = vld [vmem:[%s291 + $0xa0] sm:$0xf]
    %v333 = vld [vmem:[%s291 + $0xa4] sm:$0xf]
    %v334 = vld [vmem:[%s291 + $0xa8] sm:$0xf]
    %v335 = vld [vmem:[%s291 + $0xac] sm:$0xf]
    %v336 = vld [vmem:[%s291 + $0xb0] sm:$0xf]
    %v337 = vld [vmem:[%s291 + $0xb4] sm:$0xf]
    %v338 = vld [vmem:[%s291 + $0xb8] sm:$0xf]
    %v339 = vld [vmem:[%s291 + $0xbc] sm:$0xf]
    %v340 = vld [vmem:[%s291 + $0xc0] sm:$0xf]
    %v341 = vld [vmem:[%s291 + $0xc4] sm:$0xf]
    %v342 = vld [vmem:[%s291 + $0xc8] sm:$0xf]
    %v343 = vld [vmem:[%s291 + $0xcc] sm:$0xf]
    %v344 = vld [vmem:[%s291 + $0xd0] sm:$0xf]
    %v345 = vld [vmem:[%s291 + $0xd4] sm:$0xf]
    %v346 = vld [vmem:[%s291 + $0xd8] sm:$0xf]
    %v347 = vld [vmem:[%s291 + $0xdc] sm:$0xf]
    %v348 = vld [vmem:[%s291 + $0xe0] sm:$0xf]
    %v349 = vld [vmem:[%s291 + $0xe4] sm:$0xf]
    %v350 = vld [vmem:[%s291 + $0xe8] sm:$0xf]
    %v351 = vld [vmem:[%s291 + $0xec] sm:$0xf]
    %v352 = vld [vmem:[%s291 + $0xf0] sm:$0xf]
    %v353 = vld [vmem:[%s291 + $0xf4] sm:$0xf]
    %v354 = vld [vmem:[%s291 + $0xf8] sm:$0xf]
    %v355 = vld [vmem:[%s291 + $0xfc] sm:$0xf]
    %v484 = vunpack.c.l.b16 %v160
    %v485 = vunpack.c.h.b16 %v160
    %v486 = vunpack.c.l.b16 %v161
    %v487 = vunpack.c.h.b16 %v161
    %v488 = vunpack.c.l.b16 %v162
    %v489 = vunpack.c.h.b16 %v162
    %v490 = vunpack.c.l.b16 %v163
    %v491 = vunpack.c.h.b16 %v163
    %v492 = vunpack.c.l.b16 %v164
    %v493 = vunpack.c.h.b16 %v164
    %v494 = vunpack.c.l.b16 %v165
    %v495 = vunpack.c.h.b16 %v165
    %v496 = vunpack.c.l.b16 %v166
    %v497 = vunpack.c.h.b16 %v166
    %v498 = vunpack.c.l.b16 %v167
    %v499 = vunpack.c.h.b16 %v167
    %v500 = vunpack.c.l.b16 %v168
    %v501 = vunpack.c.h.b16 %v168
    %v502 = vunpack.c.l.b16 %v169
    %v503 = vunpack.c.h.b16 %v169
    %v504 = vunpack.c.l.b16 %v170
    %v505 = vunpack.c.h.b16 %v170
    %v506 = vunpack.c.l.b16 %v171
    %v507 = vunpack.c.h.b16 %v171
    %v508 = vunpack.c.l.b16 %v172
    %v509 = vunpack.c.h.b16 %v172
    %v510 = vunpack.c.l.b16 %v173
    %v511 = vunpack.c.h.b16 %v173
    %v512 = vunpack.c.l.b16 %v174
    %v513 = vunpack.c.h.b16 %v174
    %v514 = vunpack.c.l.b16 %v175
    %v515 = vunpack.c.h.b16 %v175
    %v516 = vunpack.c.l.b16 %v176
    %v517 = vunpack.c.h.b16 %v176
    %v518 = vunpack.c.l.b16 %v177
    %v519 = vunpack.c.h.b16 %v177
    %v520 = vunpack.c.l.b16 %v178
    %v521 = vunpack.c.h.b16 %v178
    %v522 = vunpack.c.l.b16 %v179
    %v523 = vunpack.c.h.b16 %v179
    %v524 = vunpack.c.l.b16 %v180
    %v525 = vunpack.c.h.b16 %v180
    %v526 = vunpack.c.l.b16 %v181
    %v527 = vunpack.c.h.b16 %v181
    %v528 = vunpack.c.l.b16 %v182
    %v529 = vunpack.c.h.b16 %v182
    %v530 = vunpack.c.l.b16 %v183
    %v531 = vunpack.c.h.b16 %v183
    %v532 = vunpack.c.l.b16 %v184
    %v533 = vunpack.c.h.b16 %v184
    %v534 = vunpack.c.l.b16 %v185
    %v535 = vunpack.c.h.b16 %v185
    %v536 = vunpack.c.l.b16 %v186
    %v537 = vunpack.c.h.b16 %v186
    %v538 = vunpack.c.l.b16 %v187
    %v539 = vunpack.c.h.b16 %v187
    %v540 = vunpack.c.l.b16 %v188
    %v541 = vunpack.c.h.b16 %v188
    %v542 = vunpack.c.l.b16 %v189
    %v543 = vunpack.c.h.b16 %v189
    %v544 = vunpack.c.l.b16 %v190
    %v545 = vunpack.c.h.b16 %v190
    %v546 = vunpack.c.l.b16 %v191
    %v547 = vunpack.c.h.b16 %v191
    %v548 = vunpack.c.l.b16 %v192
    %v549 = vunpack.c.h.b16 %v192
    %v550 = vunpack.c.l.b16 %v193
    %v551 = vunpack.c.h.b16 %v193
    %v552 = vunpack.c.l.b16 %v194
    %v553 = vunpack.c.h.b16 %v194
    %v554 = vunpack.c.l.b16 %v195
    %v555 = vunpack.c.h.b16 %v195
    %v556 = vunpack.c.l.b16 %v196
    %v557 = vunpack.c.h.b16 %v196
    %v558 = vunpack.c.l.b16 %v197
    %v559 = vunpack.c.h.b16 %v197
    %v560 = vunpack.c.l.b16 %v198
    %v561 = vunpack.c.h.b16 %v198
    %v562 = vunpack.c.l.b16 %v199
    %v563 = vunpack.c.h.b16 %v199
    %v564 = vunpack.c.l.b16 %v200
    %v565 = vunpack.c.h.b16 %v200
    %v566 = vunpack.c.l.b16 %v201
    %v567 = vunpack.c.h.b16 %v201
    %v568 = vunpack.c.l.b16 %v202
    %v569 = vunpack.c.h.b16 %v202
    %v570 = vunpack.c.l.b16 %v203
    %v571 = vunpack.c.h.b16 %v203
    %v572 = vunpack.c.l.b16 %v204
    %v573 = vunpack.c.h.b16 %v204
    %v574 = vunpack.c.l.b16 %v205
    %v575 = vunpack.c.h.b16 %v205
    %v576 = vunpack.c.l.b16 %v206
    %v577 = vunpack.c.h.b16 %v206
    %v578 = vunpack.c.l.b16 %v207
    %v579 = vunpack.c.h.b16 %v207
    %v580 = vunpack.c.l.b16 %v208
    %v581 = vunpack.c.h.b16 %v208
    %v582 = vunpack.c.l.b16 %v209
    %v583 = vunpack.c.h.b16 %v209
    %v584 = vunpack.c.l.b16 %v210
    %v585 = vunpack.c.h.b16 %v210
    %v586 = vunpack.c.l.b16 %v211
    %v587 = vunpack.c.h.b16 %v211
    %v588 = vunpack.c.l.b16 %v212
    %v589 = vunpack.c.h.b16 %v212
    %v590 = vunpack.c.l.b16 %v213
    %v591 = vunpack.c.h.b16 %v213
    %v592 = vunpack.c.l.b16 %v214
    %v593 = vunpack.c.h.b16 %v214
    %v594 = vunpack.c.l.b16 %v215
    %v595 = vunpack.c.h.b16 %v215
    %v596 = vunpack.c.l.b16 %v216
    %v597 = vunpack.c.h.b16 %v216
    %v598 = vunpack.c.l.b16 %v217
    %v599 = vunpack.c.h.b16 %v217
    %v600 = vunpack.c.l.b16 %v218
    %v601 = vunpack.c.h.b16 %v218
    %v602 = vunpack.c.l.b16 %v219
    %v603 = vunpack.c.h.b16 %v219
    %v604 = vunpack.c.l.b16 %v220
    %v605 = vunpack.c.h.b16 %v220
    %v606 = vunpack.c.l.b16 %v221
    %v607 = vunpack.c.h.b16 %v221
    %v608 = vunpack.c.l.b16 %v222
    %v609 = vunpack.c.h.b16 %v222
    %v610 = vunpack.c.l.b16 %v223
    %v611 = vunpack.c.h.b16 %v223
    %v612 = vunpack.c.l.b16 %v224
    %v613 = vunpack.c.h.b16 %v224
    %v614 = vunpack.c.l.b16 %v225
    %v615 = vunpack.c.h.b16 %v225
    %v616 = vunpack.c.l.b16 %v226
    %v617 = vunpack.c.h.b16 %v226
    %v618 = vunpack.c.l.b16 %v227
    %v619 = vunpack.c.h.b16 %v227
    %v620 = vunpack.c.l.b16 %v228
    %v621 = vunpack.c.h.b16 %v228
    %v622 = vunpack.c.l.b16 %v229
    %v623 = vunpack.c.h.b16 %v229
    %v624 = vunpack.c.l.b16 %v230
    %v625 = vunpack.c.h.b16 %v230
    %v626 = vunpack.c.l.b16 %v231
    %v627 = vunpack.c.h.b16 %v231
    %v628 = vunpack.c.l.b16 %v232
    %v629 = vunpack.c.h.b16 %v232
    %v630 = vunpack.c.l.b16 %v233
    %v631 = vunpack.c.h.b16 %v233
    %v632 = vunpack.c.l.b16 %v234
    %v633 = vunpack.c.h.b16 %v234
    %v634 = vunpack.c.l.b16 %v235
    %v635 = vunpack.c.h.b16 %v235
    %v636 = vunpack.c.l.b16 %v236
    %v637 = vunpack.c.h.b16 %v236
    %v638 = vunpack.c.l.b16 %v237
    %v639 = vunpack.c.h.b16 %v237
    %v640 = vunpack.c.l.b16 %v238
    %v641 = vunpack.c.h.b16 %v238
    %v642 = vunpack.c.l.b16 %v239
    %v643 = vunpack.c.h.b16 %v239
    %v644 = vunpack.c.l.b16 %v240
    %v645 = vunpack.c.h.b16 %v240
    %v646 = vunpack.c.l.b16 %v241
    %v647 = vunpack.c.h.b16 %v241
    %v648 = vunpack.c.l.b16 %v242
    %v649 = vunpack.c.h.b16 %v242
    %v650 = vunpack.c.l.b16 %v243
    %v651 = vunpack.c.h.b16 %v243
    %v652 = vunpack.c.l.b16 %v244
    %v653 = vunpack.c.h.b16 %v244
    %v654 = vunpack.c.l.b16 %v245
    %v655 = vunpack.c.h.b16 %v245
    %v656 = vunpack.c.l.b16 %v246
    %v657 = vunpack.c.h.b16 %v246
    %v658 = vunpack.c.l.b16 %v247
    %v659 = vunpack.c.h.b16 %v247
    %v660 = vunpack.c.l.b16 %v248
    %v661 = vunpack.c.h.b16 %v248
    %v662 = vunpack.c.l.b16 %v249
    %v663 = vunpack.c.h.b16 %v249
    %v664 = vunpack.c.l.b16 %v250
    %v665 = vunpack.c.h.b16 %v250
    %v666 = vunpack.c.l.b16 %v251
    %v667 = vunpack.c.h.b16 %v251
    %v668 = vunpack.c.l.b16 %v252
    %v669 = vunpack.c.h.b16 %v252
    %v670 = vunpack.c.l.b16 %v253
    %v671 = vunpack.c.h.b16 %v253
    %v672 = vunpack.c.l.b16 %v254
    %v673 = vunpack.c.h.b16 %v254
    %v674 = vunpack.c.l.b16 %v255
    %v675 = vunpack.c.h.b16 %v255
    %v676 = vunpack.c.l.b16 %v256
    %v677 = vunpack.c.h.b16 %v256
    %v678 = vunpack.c.l.b16 %v257
    %v679 = vunpack.c.h.b16 %v257
    %v680 = vunpack.c.l.b16 %v258
    %v681 = vunpack.c.h.b16 %v258
    %v682 = vunpack.c.l.b16 %v259
    %v683 = vunpack.c.h.b16 %v259
    %v684 = vunpack.c.l.b16 %v260
    %v685 = vunpack.c.h.b16 %v260
    %v686 = vunpack.c.l.b16 %v261
    %v687 = vunpack.c.h.b16 %v261
    %v688 = vunpack.c.l.b16 %v262
    %v689 = vunpack.c.h.b16 %v262
    %v690 = vunpack.c.l.b16 %v263
    %v691 = vunpack.c.h.b16 %v263
    %v692 = vunpack.c.l.b16 %v264
    %v693 = vunpack.c.h.b16 %v264
    %v694 = vunpack.c.l.b16 %v265
    %v695 = vunpack.c.h.b16 %v265
    %v696 = vunpack.c.l.b16 %v266
    %v697 = vunpack.c.h.b16 %v266
    %v698 = vunpack.c.l.b16 %v267
    %v699 = vunpack.c.h.b16 %v267
    %v700 = vunpack.c.l.b16 %v268
    %v701 = vunpack.c.h.b16 %v268
    %v702 = vunpack.c.l.b16 %v269
    %v703 = vunpack.c.h.b16 %v269
    %v704 = vunpack.c.l.b16 %v270
    %v705 = vunpack.c.h.b16 %v270
    %v706 = vunpack.c.l.b16 %v271
    %v707 = vunpack.c.h.b16 %v271
    %v708 = vunpack.c.l.b16 %v272
    %v709 = vunpack.c.h.b16 %v272
    %v710 = vunpack.c.l.b16 %v273
    %v711 = vunpack.c.h.b16 %v273
    %v712 = vunpack.c.l.b16 %v274
    %v713 = vunpack.c.h.b16 %v274
    %v714 = vunpack.c.l.b16 %v275
    %v715 = vunpack.c.h.b16 %v275
    %v716 = vunpack.c.l.b16 %v276
    %v717 = vunpack.c.h.b16 %v276
    %v718 = vunpack.c.l.b16 %v277
    %v719 = vunpack.c.h.b16 %v277
    %v720 = vunpack.c.l.b16 %v278
    %v721 = vunpack.c.h.b16 %v278
    %v722 = vunpack.c.l.b16 %v279
    %v723 = vunpack.c.h.b16 %v279
    %v724 = vunpack.c.l.b16 %v280
    %v725 = vunpack.c.h.b16 %v280
    %v726 = vunpack.c.l.b16 %v281
    %v727 = vunpack.c.h.b16 %v281
    %v728 = vunpack.c.l.b16 %v282
    %v729 = vunpack.c.h.b16 %v282
    %v730 = vunpack.c.l.b16 %v283
    %v731 = vunpack.c.h.b16 %v283
    %v732 = vunpack.c.l.b16 %v284
    %v733 = vunpack.c.h.b16 %v284
    %v734 = vunpack.c.l.b16 %v285
    %v735 = vunpack.c.h.b16 %v285
    %v736 = vunpack.c.l.b16 %v286
    %v737 = vunpack.c.h.b16 %v286
    %v738 = vunpack.c.l.b16 %v287
    %v739 = vunpack.c.h.b16 %v287
    %v740 = vpack.c.b16 %v488, %v484
    %v741 = vpack.c.b16 %v489, %v485
    %v742 = vpack.c.b16 %v490, %v486
    %v743 = vpack.c.b16 %v491, %v487
    %v744 = vpack.c.b16 %v496, %v492
    %v745 = vpack.c.b16 %v497, %v493
    %v746 = vpack.c.b16 %v498, %v494
    %v747 = vpack.c.b16 %v499, %v495
    %v748 = vpack.c.b16 %v504, %v500
    %v749 = vpack.c.b16 %v505, %v501
    %v750 = vpack.c.b16 %v506, %v502
    %v751 = vpack.c.b16 %v507, %v503
    %v752 = vpack.c.b16 %v512, %v508
    %v753 = vpack.c.b16 %v513, %v509
    %v754 = vpack.c.b16 %v514, %v510
    %v755 = vpack.c.b16 %v515, %v511
    %v756 = vpack.c.b16 %v520, %v516
    %v757 = vpack.c.b16 %v521, %v517
    %v758 = vpack.c.b16 %v522, %v518
    %v759 = vpack.c.b16 %v523, %v519
    %v760 = vpack.c.b16 %v528, %v524
    %v761 = vpack.c.b16 %v529, %v525
    %v762 = vpack.c.b16 %v530, %v526
    %v763 = vpack.c.b16 %v531, %v527
    %v764 = vpack.c.b16 %v536, %v532
    %v765 = vpack.c.b16 %v537, %v533
    %v766 = vpack.c.b16 %v538, %v534
    %v767 = vpack.c.b16 %v539, %v535
    %v768 = vpack.c.b16 %v544, %v540
    %v769 = vpack.c.b16 %v545, %v541
    %v770 = vpack.c.b16 %v546, %v542
    %v771 = vpack.c.b16 %v547, %v543
    %v772 = vpack.c.b16 %v552, %v548
    %v773 = vpack.c.b16 %v553, %v549
    %v774 = vpack.c.b16 %v554, %v550
    %v775 = vpack.c.b16 %v555, %v551
    %v776 = vpack.c.b16 %v560, %v556
    %v777 = vpack.c.b16 %v561, %v557
    %v778 = vpack.c.b16 %v562, %v558
    %v779 = vpack.c.b16 %v563, %v559
    %v780 = vpack.c.b16 %v568, %v564
    %v781 = vpack.c.b16 %v569, %v565
    %v782 = vpack.c.b16 %v570, %v566
    %v783 = vpack.c.b16 %v571, %v567
    %v784 = vpack.c.b16 %v576, %v572
    %v785 = vpack.c.b16 %v577, %v573
    %v786 = vpack.c.b16 %v578, %v574
    %v787 = vpack.c.b16 %v579, %v575
    %v788 = vpack.c.b16 %v584, %v580
    %v789 = vpack.c.b16 %v585, %v581
    %v790 = vpack.c.b16 %v586, %v582
    %v791 = vpack.c.b16 %v587, %v583
    %v792 = vpack.c.b16 %v592, %v588
    %v793 = vpack.c.b16 %v593, %v589
    %v794 = vpack.c.b16 %v594, %v590
    %v795 = vpack.c.b16 %v595, %v591
    %v796 = vpack.c.b16 %v600, %v596
    %v797 = vpack.c.b16 %v601, %v597
    %v798 = vpack.c.b16 %v602, %v598
    %v799 = vpack.c.b16 %v603, %v599
    %v800 = vpack.c.b16 %v608, %v604
    %v801 = vpack.c.b16 %v609, %v605
    %v802 = vpack.c.b16 %v610, %v606
    %v803 = vpack.c.b16 %v611, %v607
    %v804 = vpack.c.b16 %v616, %v612
    %v805 = vpack.c.b16 %v617, %v613
    %v806 = vpack.c.b16 %v618, %v614
    %v807 = vpack.c.b16 %v619, %v615
    %v808 = vpack.c.b16 %v624, %v620
    %v809 = vpack.c.b16 %v625, %v621
    %v810 = vpack.c.b16 %v626, %v622
    %v811 = vpack.c.b16 %v627, %v623
    %v812 = vpack.c.b16 %v632, %v628
    %v813 = vpack.c.b16 %v633, %v629
    %v814 = vpack.c.b16 %v634, %v630
    %v815 = vpack.c.b16 %v635, %v631
    %v816 = vpack.c.b16 %v640, %v636
    %v817 = vpack.c.b16 %v641, %v637
    %v818 = vpack.c.b16 %v642, %v638
    %v819 = vpack.c.b16 %v643, %v639
    %v820 = vpack.c.b16 %v648, %v644
    %v821 = vpack.c.b16 %v649, %v645
    %v822 = vpack.c.b16 %v650, %v646
    %v823 = vpack.c.b16 %v651, %v647
    %v824 = vpack.c.b16 %v656, %v652
    %v825 = vpack.c.b16 %v657, %v653
    %v826 = vpack.c.b16 %v658, %v654
    %v827 = vpack.c.b16 %v659, %v655
    %v828 = vpack.c.b16 %v664, %v660
    %v829 = vpack.c.b16 %v665, %v661
    %v830 = vpack.c.b16 %v666, %v662
    %v831 = vpack.c.b16 %v667, %v663
    %v832 = vpack.c.b16 %v672, %v668
    %v833 = vpack.c.b16 %v673, %v669
    %v834 = vpack.c.b16 %v674, %v670
    %v835 = vpack.c.b16 %v675, %v671
    %v836 = vpack.c.b16 %v680, %v676
    %v837 = vpack.c.b16 %v681, %v677
    %v838 = vpack.c.b16 %v682, %v678
    %v839 = vpack.c.b16 %v683, %v679
    %v840 = vpack.c.b16 %v688, %v684
    %v841 = vpack.c.b16 %v689, %v685
    %v842 = vpack.c.b16 %v690, %v686
    %v843 = vpack.c.b16 %v691, %v687
    %v844 = vpack.c.b16 %v696, %v692
    %v845 = vpack.c.b16 %v697, %v693
    %v846 = vpack.c.b16 %v698, %v694
    %v847 = vpack.c.b16 %v699, %v695
    %v848 = vpack.c.b16 %v704, %v700
    %v849 = vpack.c.b16 %v705, %v701
    %v850 = vpack.c.b16 %v706, %v702
    %v851 = vpack.c.b16 %v707, %v703
    %v852 = vpack.c.b16 %v712, %v708
    %v853 = vpack.c.b16 %v713, %v709
    %v854 = vpack.c.b16 %v714, %v710
    %v855 = vpack.c.b16 %v715, %v711
    %v856 = vpack.c.b16 %v720, %v716
    %v857 = vpack.c.b16 %v721, %v717
    %v858 = vpack.c.b16 %v722, %v718
    %v859 = vpack.c.b16 %v723, %v719
    %v860 = vpack.c.b16 %v728, %v724
    %v861 = vpack.c.b16 %v729, %v725
    %v862 = vpack.c.b16 %v730, %v726
    %v863 = vpack.c.b16 %v731, %v727
    %v864 = vpack.c.b16 %v736, %v732
    %v865 = vpack.c.b16 %v737, %v733
    %v866 = vpack.c.b16 %v738, %v734
    %v867 = vpack.c.b16 %v739, %v735
    %v1060 = vunpack.c.l.b16 %v292
    %v1061 = vunpack.c.l.b16 %v293
    %v1062 = vunpack.c.l.b16 %v294
    %v1063 = vunpack.c.l.b16 %v295
    %v1064 = vunpack.c.l.b16 %v296
    %v1065 = vunpack.c.l.b16 %v297
    %v1066 = vunpack.c.l.b16 %v298
    %v1067 = vunpack.c.l.b16 %v299
    %v1068 = vunpack.c.l.b16 %v300
    %v1069 = vunpack.c.l.b16 %v301
    %v1070 = vunpack.c.l.b16 %v302
    %v1071 = vunpack.c.l.b16 %v303
    %v1072 = vunpack.c.l.b16 %v304
    %v1073 = vunpack.c.l.b16 %v305
    %v1074 = vunpack.c.l.b16 %v306
    %v1075 = vunpack.c.l.b16 %v307
    %v1076 = vunpack.c.l.b16 %v308
    %v1077 = vunpack.c.l.b16 %v309
    %v1078 = vunpack.c.l.b16 %v310
    %v1079 = vunpack.c.l.b16 %v311
    %v1080 = vunpack.c.l.b16 %v312
    %v1081 = vunpack.c.l.b16 %v313
    %v1082 = vunpack.c.l.b16 %v314
    %v1083 = vunpack.c.l.b16 %v315
    %v1084 = vunpack.c.l.b16 %v316
    %v1085 = vunpack.c.l.b16 %v317
    %v1086 = vunpack.c.l.b16 %v318
    %v1087 = vunpack.c.l.b16 %v319
    %v1088 = vunpack.c.l.b16 %v320
    %v1089 = vunpack.c.l.b16 %v321
    %v1090 = vunpack.c.l.b16 %v322
    %v1091 = vunpack.c.l.b16 %v323
    %v1092 = vunpack.c.l.b16 %v324
    %v1093 = vunpack.c.l.b16 %v325
    %v1094 = vunpack.c.l.b16 %v326
    %v1095 = vunpack.c.l.b16 %v327
    %v1096 = vunpack.c.l.b16 %v328
    %v1097 = vunpack.c.l.b16 %v329
    %v1098 = vunpack.c.l.b16 %v330
    %v1099 = vunpack.c.l.b16 %v331
    %v1100 = vunpack.c.l.b16 %v332
    %v1101 = vunpack.c.l.b16 %v333
    %v1102 = vunpack.c.l.b16 %v334
    %v1103 = vunpack.c.l.b16 %v335
    %v1104 = vunpack.c.l.b16 %v336
    %v1105 = vunpack.c.l.b16 %v337
    %v1106 = vunpack.c.l.b16 %v338
    %v1107 = vunpack.c.l.b16 %v339
    %v1108 = vunpack.c.l.b16 %v340
    %v1109 = vunpack.c.l.b16 %v341
    %v1110 = vunpack.c.l.b16 %v342
    %v1111 = vunpack.c.l.b16 %v343
    %v1112 = vunpack.c.l.b16 %v344
    %v1113 = vunpack.c.l.b16 %v345
    %v1114 = vunpack.c.l.b16 %v346
    %v1115 = vunpack.c.l.b16 %v347
    %v1116 = vunpack.c.l.b16 %v348
    %v1117 = vunpack.c.l.b16 %v349
    %v1118 = vunpack.c.l.b16 %v350
    %v1119 = vunpack.c.l.b16 %v351
    %v1120 = vunpack.c.l.b16 %v352
    %v1121 = vunpack.c.l.b16 %v353
    %v1122 = vunpack.c.l.b16 %v354
    %v1123 = vunpack.c.l.b16 %v355
    %v1124 = vpack.c.b16 %v1061, %v1060
    %v1125 = vpack.c.b16 %v1063, %v1062
    %v1126 = vpack.c.b16 %v1065, %v1064
    %v1127 = vpack.c.b16 %v1067, %v1066
    %v1128 = vpack.c.b16 %v1069, %v1068
    %v1129 = vpack.c.b16 %v1071, %v1070
    %v1130 = vpack.c.b16 %v1073, %v1072
    %v1131 = vpack.c.b16 %v1075, %v1074
    %v1132 = vpack.c.b16 %v1077, %v1076
    %v1133 = vpack.c.b16 %v1079, %v1078
    %v1134 = vpack.c.b16 %v1081, %v1080
    %v1135 = vpack.c.b16 %v1083, %v1082
    %v1136 = vpack.c.b16 %v1085, %v1084
    %v1137 = vpack.c.b16 %v1087, %v1086
    %v1138 = vpack.c.b16 %v1089, %v1088
    %v1139 = vpack.c.b16 %v1091, %v1090
    %v1140 = vpack.c.b16 %v1093, %v1092
    %v1141 = vpack.c.b16 %v1095, %v1094
    %v1142 = vpack.c.b16 %v1097, %v1096
    %v1143 = vpack.c.b16 %v1099, %v1098
    %v1144 = vpack.c.b16 %v1101, %v1100
    %v1145 = vpack.c.b16 %v1103, %v1102
    %v1146 = vpack.c.b16 %v1105, %v1104
    %v1147 = vpack.c.b16 %v1107, %v1106
    %v1148 = vpack.c.b16 %v1109, %v1108
    %v1149 = vpack.c.b16 %v1111, %v1110
    %v1150 = vpack.c.b16 %v1113, %v1112
    %v1151 = vpack.c.b16 %v1115, %v1114
    %v1152 = vpack.c.b16 %v1117, %v1116
    %v1153 = vpack.c.b16 %v1119, %v1118
    %v1154 = vpack.c.b16 %v1121, %v1120
    %v1155 = vpack.c.b16 %v1123, %v1122
    %1188 = vmatpush.bf16.msra.mxu0 %v1131
    %1189 = vmatpush.bf16.msra.mxu0 %v1130
    %1190 = vmatpush.bf16.msra.mxu0 %v1129
    %1191 = vmatpush.bf16.msra.mxu0 %v1128
    %1192 = vmatpush.bf16.msra.mxu0 %v1127
    %1193 = vmatpush.bf16.msra.mxu0 %v1126
    %1194 = vmatpush.bf16.msra.mxu0 %v1125
    %1195 = vmatpush.bf16.msra.mxu0 %v1124
    %1196 = vmatmul.bf16.gmra.mxu0 %v740
    %v1197 = vpop.f32.mrf.mxu0
    %v1198 = vadd.f32 0.0, %v1197
    %v1199 = vpop.f32.mrf.mxu0
    %v1200 = vadd.f32 0.0, %v1199
    %1201 = vmatmul.bf16.gmra.mxu0 %v744
    %v1202 = vpop.f32.mrf.mxu0
    %v1203 = vadd.f32 0.0, %v1202
    %v1204 = vpop.f32.mrf.mxu0
    %v1205 = vadd.f32 0.0, %v1204
    %1206 = vmatmul.bf16.gmra.mxu0 %v748
    %v1207 = vpop.f32.mrf.mxu0
    %v1208 = vadd.f32 0.0, %v1207
    %v1209 = vpop.f32.mrf.mxu0
    %v1210 = vadd.f32 0.0, %v1209
    %1211 = vmatmul.bf16.gmra.mxu0 %v752
    %v1212 = vpop.f32.mrf.mxu0
    %v1213 = vadd.f32 0.0, %v1212
    %v1214 = vpop.f32.mrf.mxu0
    %v1215 = vadd.f32 0.0, %v1214
    %1216 = vmatmul.bf16.gmra.mxu0 %v756
    %v1217 = vpop.f32.mrf.mxu0
    %v1218 = vadd.f32 0.0, %v1217
    %v1219 = vpop.f32.mrf.mxu0
    %v1220 = vadd.f32 0.0, %v1219
    %1221 = vmatmul.bf16.gmra.mxu0 %v760
    %v1222 = vpop.f32.mrf.mxu0
    %v1223 = vadd.f32 0.0, %v1222
    %v1224 = vpop.f32.mrf.mxu0
    %v1225 = vadd.f32 0.0, %v1224
    %1226 = vmatmul.bf16.gmra.mxu0 %v764
    %v1227 = vpop.f32.mrf.mxu0
    %v1228 = vadd.f32 0.0, %v1227
    %v1229 = vpop.f32.mrf.mxu0
    %v1230 = vadd.f32 0.0, %v1229
    %1231 = vmatmul.bf16.gmra.mxu0 %v768
    %v1232 = vpop.f32.mrf.mxu0
    %v1233 = vadd.f32 0.0, %v1232
    %v1234 = vpop.f32.mrf.mxu0
    %v1235 = vadd.f32 0.0, %v1234
    %1236 = vmatmul.bf16.gmra.mxu0 %v772
    %v1237 = vpop.f32.mrf.mxu0
    %v1238 = vadd.f32 0.0, %v1237
    %v1239 = vpop.f32.mrf.mxu0
    %v1240 = vadd.f32 0.0, %v1239
    %1241 = vmatmul.bf16.gmra.mxu0 %v776
    %v1242 = vpop.f32.mrf.mxu0
    %v1243 = vadd.f32 0.0, %v1242
    %v1244 = vpop.f32.mrf.mxu0
    %v1245 = vadd.f32 0.0, %v1244
    %1246 = vmatmul.bf16.gmra.mxu0 %v780
    %v1247 = vpop.f32.mrf.mxu0
    %v1248 = vadd.f32 0.0, %v1247
    %v1249 = vpop.f32.mrf.mxu0
    %v1250 = vadd.f32 0.0, %v1249
    %1251 = vmatmul.bf16.gmra.mxu0 %v784
    %v1252 = vpop.f32.mrf.mxu0
    %v1253 = vadd.f32 0.0, %v1252
    %v1254 = vpop.f32.mrf.mxu0
    %v1255 = vadd.f32 0.0, %v1254
    %1256 = vmatmul.bf16.gmra.mxu0 %v788
    %v1257 = vpop.f32.mrf.mxu0
    %v1258 = vadd.f32 0.0, %v1257
    %v1259 = vpop.f32.mrf.mxu0
    %v1260 = vadd.f32 0.0, %v1259
    %1261 = vmatmul.bf16.gmra.mxu0 %v792
    %v1262 = vpop.f32.mrf.mxu0
    %v1263 = vadd.f32 0.0, %v1262
    %v1264 = vpop.f32.mrf.mxu0
    %v1265 = vadd.f32 0.0, %v1264
    %1266 = vmatmul.bf16.gmra.mxu0 %v796
    %v1267 = vpop.f32.mrf.mxu0
    %v1268 = vadd.f32 0.0, %v1267
    %v1269 = vpop.f32.mrf.mxu0
    %v1270 = vadd.f32 0.0, %v1269
    %1271 = vmatmul.bf16.gmra.mxu0 %v800
    %v1272 = vpop.f32.mrf.mxu0
    %v1273 = vadd.f32 0.0, %v1272
    %v1274 = vpop.f32.mrf.mxu0
    %v1275 = vadd.f32 0.0, %v1274
    %1276 = vmatmul.bf16.gmra.mxu0 %v804
    %v1277 = vpop.f32.mrf.mxu0
    %v1278 = vadd.f32 0.0, %v1277
    %v1279 = vpop.f32.mrf.mxu0
    %v1280 = vadd.f32 0.0, %v1279
    %1281 = vmatmul.bf16.gmra.mxu0 %v808
    %v1282 = vpop.f32.mrf.mxu0
    %v1283 = vadd.f32 0.0, %v1282
    %v1284 = vpop.f32.mrf.mxu0
    %v1285 = vadd.f32 0.0, %v1284
    %1286 = vmatmul.bf16.gmra.mxu0 %v812
    %v1287 = vpop.f32.mrf.mxu0
    %v1288 = vadd.f32 0.0, %v1287
    %v1289 = vpop.f32.mrf.mxu0
    %v1290 = vadd.f32 0.0, %v1289
    %1291 = vmatmul.bf16.gmra.mxu0 %v816
    %v1292 = vpop.f32.mrf.mxu0
    %v1293 = vadd.f32 0.0, %v1292
    %v1294 = vpop.f32.mrf.mxu0
    %v1295 = vadd.f32 0.0, %v1294
    %1296 = vmatmul.bf16.gmra.mxu0 %v820
    %v1297 = vpop.f32.mrf.mxu0
    %v1298 = vadd.f32 0.0, %v1297
    %v1299 = vpop.f32.mrf.mxu0
    %v1300 = vadd.f32 0.0, %v1299
    %1301 = vmatmul.bf16.gmra.mxu0 %v824
    %v1302 = vpop.f32.mrf.mxu0
    %v1303 = vadd.f32 0.0, %v1302
    %v1304 = vpop.f32.mrf.mxu0
    %v1305 = vadd.f32 0.0, %v1304
    %1306 = vmatmul.bf16.gmra.mxu0 %v828
    %v1307 = vpop.f32.mrf.mxu0
    %v1308 = vadd.f32 0.0, %v1307
    %v1309 = vpop.f32.mrf.mxu0
    %v1310 = vadd.f32 0.0, %v1309
    %1311 = vmatmul.bf16.gmra.mxu0 %v832
    %v1312 = vpop.f32.mrf.mxu0
    %v1313 = vadd.f32 0.0, %v1312
    %v1314 = vpop.f32.mrf.mxu0
    %v1315 = vadd.f32 0.0, %v1314
    %1316 = vmatmul.bf16.gmra.mxu0 %v836
    %v1317 = vpop.f32.mrf.mxu0
    %v1318 = vadd.f32 0.0, %v1317
    %v1319 = vpop.f32.mrf.mxu0
    %v1320 = vadd.f32 0.0, %v1319
    %1321 = vmatmul.bf16.gmra.mxu0 %v840
    %v1322 = vpop.f32.mrf.mxu0
    %v1323 = vadd.f32 0.0, %v1322
    %v1324 = vpop.f32.mrf.mxu0
    %v1325 = vadd.f32 0.0, %v1324
    %1326 = vmatmul.bf16.gmra.mxu0 %v844
    %v1327 = vpop.f32.mrf.mxu0
    %v1328 = vadd.f32 0.0, %v1327
    %v1329 = vpop.f32.mrf.mxu0
    %v1330 = vadd.f32 0.0, %v1329
    %1331 = vmatmul.bf16.gmra.mxu0 %v848
    %v1332 = vpop.f32.mrf.mxu0
    %v1333 = vadd.f32 0.0, %v1332
    %v1334 = vpop.f32.mrf.mxu0
    %v1335 = vadd.f32 0.0, %v1334
    %1336 = vmatmul.bf16.gmra.mxu0 %v852
    %v1337 = vpop.f32.mrf.mxu0
    %v1338 = vadd.f32 0.0, %v1337
    %v1339 = vpop.f32.mrf.mxu0
    %v1340 = vadd.f32 0.0, %v1339
    %1341 = vmatmul.bf16.gmra.mxu0 %v856
    %v1342 = vpop.f32.mrf.mxu0
    %v1343 = vadd.f32 0.0, %v1342
    %v1344 = vpop.f32.mrf.mxu0
    %v1345 = vadd.f32 0.0, %v1344
    %1346 = vmatmul.bf16.gmra.mxu0 %v860
    %v1347 = vpop.f32.mrf.mxu0
    %v1348 = vadd.f32 0.0, %v1347
    %v1349 = vpop.f32.mrf.mxu0
    %v1350 = vadd.f32 0.0, %v1349
    %1351 = vmatmul.bf16.gmra.mxu0 %v864
    %v1352 = vpop.f32.mrf.mxu0
    %v1353 = vadd.f32 0.0, %v1352
    %v1354 = vpop.f32.mrf.mxu0
    %v1355 = vadd.f32 0.0, %v1354
    %1356 = vdwg.mxu0
    %1357 = vmatpush.bf16.msra.mxu0 %v1139
    %1358 = vmatpush.bf16.msra.mxu0 %v1138
    %1359 = vmatpush.bf16.msra.mxu0 %v1137
    %1360 = vmatpush.bf16.msra.mxu0 %v1136
    %1361 = vmatpush.bf16.msra.mxu0 %v1135
    %1362 = vmatpush.bf16.msra.mxu0 %v1134
    %1363 = vmatpush.bf16.msra.mxu0 %v1133
    %1364 = vmatpush.bf16.msra.mxu0 %v1132
    %1365 = vmatmul.bf16.gmra.mxu0 %v741
    %v1366 = vpop.f32.mrf.mxu0
    %v1367 = vadd.f32 %v1198, %v1366
    %v1368 = vpop.f32.mrf.mxu0
    %v1369 = vadd.f32 %v1200, %v1368
    %1370 = vmatmul.bf16.gmra.mxu0 %v745
    %v1371 = vpop.f32.mrf.mxu0
    %v1372 = vadd.f32 %v1203, %v1371
    %v1373 = vpop.f32.mrf.mxu0
    %v1374 = vadd.f32 %v1205, %v1373
    %1375 = vmatmul.bf16.gmra.mxu0 %v749
    %v1376 = vpop.f32.mrf.mxu0
    %v1377 = vadd.f32 %v1208, %v1376
    %v1378 = vpop.f32.mrf.mxu0
    %v1379 = vadd.f32 %v1210, %v1378
    %1380 = vmatmul.bf16.gmra.mxu0 %v753
    %v1381 = vpop.f32.mrf.mxu0
    %v1382 = vadd.f32 %v1213, %v1381
    %v1383 = vpop.f32.mrf.mxu0
    %v1384 = vadd.f32 %v1215, %v1383
    %1385 = vmatmul.bf16.gmra.mxu0 %v757
    %v1386 = vpop.f32.mrf.mxu0
    %v1387 = vadd.f32 %v1218, %v1386
    %v1388 = vpop.f32.mrf.mxu0
    %v1389 = vadd.f32 %v1220, %v1388
    %1390 = vmatmul.bf16.gmra.mxu0 %v761
    %v1391 = vpop.f32.mrf.mxu0
    %v1392 = vadd.f32 %v1223, %v1391
    %v1393 = vpop.f32.mrf.mxu0
    %v1394 = vadd.f32 %v1225, %v1393
    %1395 = vmatmul.bf16.gmra.mxu0 %v765
    %v1396 = vpop.f32.mrf.mxu0
    %v1397 = vadd.f32 %v1228, %v1396
    %v1398 = vpop.f32.mrf.mxu0
    %v1399 = vadd.f32 %v1230, %v1398
    %1400 = vmatmul.bf16.gmra.mxu0 %v769
    %v1401 = vpop.f32.mrf.mxu0
    %v1402 = vadd.f32 %v1233, %v1401
    %v1403 = vpop.f32.mrf.mxu0
    %v1404 = vadd.f32 %v1235, %v1403
    %1405 = vmatmul.bf16.gmra.mxu0 %v773
    %v1406 = vpop.f32.mrf.mxu0
    %v1407 = vadd.f32 %v1238, %v1406
    %v1408 = vpop.f32.mrf.mxu0
    %v1409 = vadd.f32 %v1240, %v1408
    %1410 = vmatmul.bf16.gmra.mxu0 %v777
    %v1411 = vpop.f32.mrf.mxu0
    %v1412 = vadd.f32 %v1243, %v1411
    %v1413 = vpop.f32.mrf.mxu0
    %v1414 = vadd.f32 %v1245, %v1413
    %1415 = vmatmul.bf16.gmra.mxu0 %v781
    %v1416 = vpop.f32.mrf.mxu0
    %v1417 = vadd.f32 %v1248, %v1416
    %v1418 = vpop.f32.mrf.mxu0
    %v1419 = vadd.f32 %v1250, %v1418
    %1420 = vmatmul.bf16.gmra.mxu0 %v785
    %v1421 = vpop.f32.mrf.mxu0
    %v1422 = vadd.f32 %v1253, %v1421
    %v1423 = vpop.f32.mrf.mxu0
    %v1424 = vadd.f32 %v1255, %v1423
    %1425 = vmatmul.bf16.gmra.mxu0 %v789
    %v1426 = vpop.f32.mrf.mxu0
    %v1427 = vadd.f32 %v1258, %v1426
    %v1428 = vpop.f32.mrf.mxu0
    %v1429 = vadd.f32 %v1260, %v1428
    %1430 = vmatmul.bf16.gmra.mxu0 %v793
    %v1431 = vpop.f32.mrf.mxu0
    %v1432 = vadd.f32 %v1263, %v1431
    %v1433 = vpop.f32.mrf.mxu0
    %v1434 = vadd.f32 %v1265, %v1433
    %1435 = vmatmul.bf16.gmra.mxu0 %v797
    %v1436 = vpop.f32.mrf.mxu0
    %v1437 = vadd.f32 %v1268, %v1436
    %v1438 = vpop.f32.mrf.mxu0
    %v1439 = vadd.f32 %v1270, %v1438
    %1440 = vmatmul.bf16.gmra.mxu0 %v801
    %v1441 = vpop.f32.mrf.mxu0
    %v1442 = vadd.f32 %v1273, %v1441
    %v1443 = vpop.f32.mrf.mxu0
    %v1444 = vadd.f32 %v1275, %v1443
    %1445 = vmatmul.bf16.gmra.mxu0 %v805
    %v1446 = vpop.f32.mrf.mxu0
    %v1447 = vadd.f32 %v1278, %v1446
    %v1448 = vpop.f32.mrf.mxu0
    %v1449 = vadd.f32 %v1280, %v1448
    %1450 = vmatmul.bf16.gmra.mxu0 %v809
    %v1451 = vpop.f32.mrf.mxu0
    %v1452 = vadd.f32 %v1283, %v1451
    %v1453 = vpop.f32.mrf.mxu0
    %v1454 = vadd.f32 %v1285, %v1453
    %1455 = vmatmul.bf16.gmra.mxu0 %v813
    %v1456 = vpop.f32.mrf.mxu0
    %v1457 = vadd.f32 %v1288, %v1456
    %v1458 = vpop.f32.mrf.mxu0
    %v1459 = vadd.f32 %v1290, %v1458
    %1460 = vmatmul.bf16.gmra.mxu0 %v817
    %v1461 = vpop.f32.mrf.mxu0
    %v1462 = vadd.f32 %v1293, %v1461
    %v1463 = vpop.f32.mrf.mxu0
    %v1464 = vadd.f32 %v1295, %v1463
    %1465 = vmatmul.bf16.gmra.mxu0 %v821
    %v1466 = vpop.f32.mrf.mxu0
    %v1467 = vadd.f32 %v1298, %v1466
    %v1468 = vpop.f32.mrf.mxu0
    %v1469 = vadd.f32 %v1300, %v1468
    %1470 = vmatmul.bf16.gmra.mxu0 %v825
    %v1471 = vpop.f32.mrf.mxu0
    %v1472 = vadd.f32 %v1303, %v1471
    %v1473 = vpop.f32.mrf.mxu0
    %v1474 = vadd.f32 %v1305, %v1473
    %1475 = vmatmul.bf16.gmra.mxu0 %v829
    %v1476 = vpop.f32.mrf.mxu0
    %v1477 = vadd.f32 %v1308, %v1476
    %v1478 = vpop.f32.mrf.mxu0
    %v1479 = vadd.f32 %v1310, %v1478
    %1480 = vmatmul.bf16.gmra.mxu0 %v833
    %v1481 = vpop.f32.mrf.mxu0
    %v1482 = vadd.f32 %v1313, %v1481
    %v1483 = vpop.f32.mrf.mxu0
    %v1484 = vadd.f32 %v1315, %v1483
    %1485 = vmatmul.bf16.gmra.mxu0 %v837
    %v1486 = vpop.f32.mrf.mxu0
    %v1487 = vadd.f32 %v1318, %v1486
    %v1488 = vpop.f32.mrf.mxu0
    %v1489 = vadd.f32 %v1320, %v1488
    %1490 = vmatmul.bf16.gmra.mxu0 %v841
    %v1491 = vpop.f32.mrf.mxu0
    %v1492 = vadd.f32 %v1323, %v1491
    %v1493 = vpop.f32.mrf.mxu0
    %v1494 = vadd.f32 %v1325, %v1493
    %1495 = vmatmul.bf16.gmra.mxu0 %v845
    %v1496 = vpop.f32.mrf.mxu0
    %v1497 = vadd.f32 %v1328, %v1496
    %v1498 = vpop.f32.mrf.mxu0
    %v1499 = vadd.f32 %v1330, %v1498
    %1500 = vmatmul.bf16.gmra.mxu0 %v849
    %v1501 = vpop.f32.mrf.mxu0
    %v1502 = vadd.f32 %v1333, %v1501
    %v1503 = vpop.f32.mrf.mxu0
    %v1504 = vadd.f32 %v1335, %v1503
    %1505 = vmatmul.bf16.gmra.mxu0 %v853
    %v1506 = vpop.f32.mrf.mxu0
    %v1507 = vadd.f32 %v1338, %v1506
    %v1508 = vpop.f32.mrf.mxu0
    %v1509 = vadd.f32 %v1340, %v1508
    %1510 = vmatmul.bf16.gmra.mxu0 %v857
    %v1511 = vpop.f32.mrf.mxu0
    %v1512 = vadd.f32 %v1343, %v1511
    %v1513 = vpop.f32.mrf.mxu0
    %v1514 = vadd.f32 %v1345, %v1513
    %1515 = vmatmul.bf16.gmra.mxu0 %v861
    %v1516 = vpop.f32.mrf.mxu0
    %v1517 = vadd.f32 %v1348, %v1516
    %v1518 = vpop.f32.mrf.mxu0
    %v1519 = vadd.f32 %v1350, %v1518
    %1520 = vmatmul.bf16.gmra.mxu0 %v865
    %v1521 = vpop.f32.mrf.mxu0
    %v1522 = vadd.f32 %v1353, %v1521
    %v1523 = vpop.f32.mrf.mxu0
    %v1524 = vadd.f32 %v1355, %v1523
    %1525 = vdwg.mxu0
    %1526 = vmatpush.bf16.msra.mxu0 %v1147
    %1527 = vmatpush.bf16.msra.mxu0 %v1146
    %1528 = vmatpush.bf16.msra.mxu0 %v1145
    %1529 = vmatpush.bf16.msra.mxu0 %v1144
    %1530 = vmatpush.bf16.msra.mxu0 %v1143
    %1531 = vmatpush.bf16.msra.mxu0 %v1142
    %1532 = vmatpush.bf16.msra.mxu0 %v1141
    %1533 = vmatpush.bf16.msra.mxu0 %v1140
    %1534 = vmatmul.bf16.gmra.mxu0 %v742
    %v1535 = vpop.f32.mrf.mxu0
    %v1536 = vadd.f32 %v1367, %v1535
    %v1537 = vpop.f32.mrf.mxu0
    %v1538 = vadd.f32 %v1369, %v1537
    %1539 = vmatmul.bf16.gmra.mxu0 %v746
    %v1540 = vpop.f32.mrf.mxu0
    %v1541 = vadd.f32 %v1372, %v1540
    %v1542 = vpop.f32.mrf.mxu0
    %v1543 = vadd.f32 %v1374, %v1542
    %1544 = vmatmul.bf16.gmra.mxu0 %v750
    %v1545 = vpop.f32.mrf.mxu0
    %v1546 = vadd.f32 %v1377, %v1545
    %v1547 = vpop.f32.mrf.mxu0
    %v1548 = vadd.f32 %v1379, %v1547
    %1549 = vmatmul.bf16.gmra.mxu0 %v754
    %v1550 = vpop.f32.mrf.mxu0
    %v1551 = vadd.f32 %v1382, %v1550
    %v1552 = vpop.f32.mrf.mxu0
    %v1553 = vadd.f32 %v1384, %v1552
    %1554 = vmatmul.bf16.gmra.mxu0 %v758
    %v1555 = vpop.f32.mrf.mxu0
    %v1556 = vadd.f32 %v1387, %v1555
    %v1557 = vpop.f32.mrf.mxu0
    %v1558 = vadd.f32 %v1389, %v1557
    %1559 = vmatmul.bf16.gmra.mxu0 %v762
    %v1560 = vpop.f32.mrf.mxu0
    %v1561 = vadd.f32 %v1392, %v1560
    %v1562 = vpop.f32.mrf.mxu0
    %v1563 = vadd.f32 %v1394, %v1562
    %1564 = vmatmul.bf16.gmra.mxu0 %v766
    %v1565 = vpop.f32.mrf.mxu0
    %v1566 = vadd.f32 %v1397, %v1565
    %v1567 = vpop.f32.mrf.mxu0
    %v1568 = vadd.f32 %v1399, %v1567
    %1569 = vmatmul.bf16.gmra.mxu0 %v770
    %v1570 = vpop.f32.mrf.mxu0
    %v1571 = vadd.f32 %v1402, %v1570
    %v1572 = vpop.f32.mrf.mxu0
    %v1573 = vadd.f32 %v1404, %v1572
    %1574 = vmatmul.bf16.gmra.mxu0 %v774
    %v1575 = vpop.f32.mrf.mxu0
    %v1576 = vadd.f32 %v1407, %v1575
    %v1577 = vpop.f32.mrf.mxu0
    %v1578 = vadd.f32 %v1409, %v1577
    %1579 = vmatmul.bf16.gmra.mxu0 %v778
    %v1580 = vpop.f32.mrf.mxu0
    %v1581 = vadd.f32 %v1412, %v1580
    %v1582 = vpop.f32.mrf.mxu0
    %v1583 = vadd.f32 %v1414, %v1582
    %1584 = vmatmul.bf16.gmra.mxu0 %v782
    %v1585 = vpop.f32.mrf.mxu0
    %v1586 = vadd.f32 %v1417, %v1585
    %v1587 = vpop.f32.mrf.mxu0
    %v1588 = vadd.f32 %v1419, %v1587
    %1589 = vmatmul.bf16.gmra.mxu0 %v786
    %v1590 = vpop.f32.mrf.mxu0
    %v1591 = vadd.f32 %v1422, %v1590
    %v1592 = vpop.f32.mrf.mxu0
    %v1593 = vadd.f32 %v1424, %v1592
    %1594 = vmatmul.bf16.gmra.mxu0 %v790
    %v1595 = vpop.f32.mrf.mxu0
    %v1596 = vadd.f32 %v1427, %v1595
    %v1597 = vpop.f32.mrf.mxu0
    %v1598 = vadd.f32 %v1429, %v1597
    %1599 = vmatmul.bf16.gmra.mxu0 %v794
    %v1600 = vpop.f32.mrf.mxu0
    %v1601 = vadd.f32 %v1432, %v1600
    %v1602 = vpop.f32.mrf.mxu0
    %v1603 = vadd.f32 %v1434, %v1602
    %1604 = vmatmul.bf16.gmra.mxu0 %v798
    %v1605 = vpop.f32.mrf.mxu0
    %v1606 = vadd.f32 %v1437, %v1605
    %v1607 = vpop.f32.mrf.mxu0
    %v1608 = vadd.f32 %v1439, %v1607
    %1609 = vmatmul.bf16.gmra.mxu0 %v802
    %v1610 = vpop.f32.mrf.mxu0
    %v1611 = vadd.f32 %v1442, %v1610
    %v1612 = vpop.f32.mrf.mxu0
    %v1613 = vadd.f32 %v1444, %v1612
    %1614 = vmatmul.bf16.gmra.mxu0 %v806
    %v1615 = vpop.f32.mrf.mxu0
    %v1616 = vadd.f32 %v1447, %v1615
    %v1617 = vpop.f32.mrf.mxu0
    %v1618 = vadd.f32 %v1449, %v1617
    %1619 = vmatmul.bf16.gmra.mxu0 %v810
    %v1620 = vpop.f32.mrf.mxu0
    %v1621 = vadd.f32 %v1452, %v1620
    %v1622 = vpop.f32.mrf.mxu0
    %v1623 = vadd.f32 %v1454, %v1622
    %1624 = vmatmul.bf16.gmra.mxu0 %v814
    %v1625 = vpop.f32.mrf.mxu0
    %v1626 = vadd.f32 %v1457, %v1625
    %v1627 = vpop.f32.mrf.mxu0
    %v1628 = vadd.f32 %v1459, %v1627
    %1629 = vmatmul.bf16.gmra.mxu0 %v818
    %v1630 = vpop.f32.mrf.mxu0
    %v1631 = vadd.f32 %v1462, %v1630
    %v1632 = vpop.f32.mrf.mxu0
    %v1633 = vadd.f32 %v1464, %v1632
    %1634 = vmatmul.bf16.gmra.mxu0 %v822
    %v1635 = vpop.f32.mrf.mxu0
    %v1636 = vadd.f32 %v1467, %v1635
    %v1637 = vpop.f32.mrf.mxu0
    %v1638 = vadd.f32 %v1469, %v1637
    %1639 = vmatmul.bf16.gmra.mxu0 %v826
    %v1640 = vpop.f32.mrf.mxu0
    %v1641 = vadd.f32 %v1472, %v1640
    %v1642 = vpop.f32.mrf.mxu0
    %v1643 = vadd.f32 %v1474, %v1642
    %1644 = vmatmul.bf16.gmra.mxu0 %v830
    %v1645 = vpop.f32.mrf.mxu0
    %v1646 = vadd.f32 %v1477, %v1645
    %v1647 = vpop.f32.mrf.mxu0
    %v1648 = vadd.f32 %v1479, %v1647
    %1649 = vmatmul.bf16.gmra.mxu0 %v834
    %v1650 = vpop.f32.mrf.mxu0
    %v1651 = vadd.f32 %v1482, %v1650
    %v1652 = vpop.f32.mrf.mxu0
    %v1653 = vadd.f32 %v1484, %v1652
    %1654 = vmatmul.bf16.gmra.mxu0 %v838
    %v1655 = vpop.f32.mrf.mxu0
    %v1656 = vadd.f32 %v1487, %v1655
    %v1657 = vpop.f32.mrf.mxu0
    %v1658 = vadd.f32 %v1489, %v1657
    %1659 = vmatmul.bf16.gmra.mxu0 %v842
    %v1660 = vpop.f32.mrf.mxu0
    %v1661 = vadd.f32 %v1492, %v1660
    %v1662 = vpop.f32.mrf.mxu0
    %v1663 = vadd.f32 %v1494, %v1662
    %1664 = vmatmul.bf16.gmra.mxu0 %v846
    %v1665 = vpop.f32.mrf.mxu0
    %v1666 = vadd.f32 %v1497, %v1665
    %v1667 = vpop.f32.mrf.mxu0
    %v1668 = vadd.f32 %v1499, %v1667
    %1669 = vmatmul.bf16.gmra.mxu0 %v850
    %v1670 = vpop.f32.mrf.mxu0
    %v1671 = vadd.f32 %v1502, %v1670
    %v1672 = vpop.f32.mrf.mxu0
    %v1673 = vadd.f32 %v1504, %v1672
    %1674 = vmatmul.bf16.gmra.mxu0 %v854
    %v1675 = vpop.f32.mrf.mxu0
    %v1676 = vadd.f32 %v1507, %v1675
    %v1677 = vpop.f32.mrf.mxu0
    %v1678 = vadd.f32 %v1509, %v1677
    %1679 = vmatmul.bf16.gmra.mxu0 %v858
    %v1680 = vpop.f32.mrf.mxu0
    %v1681 = vadd.f32 %v1512, %v1680
    %v1682 = vpop.f32.mrf.mxu0
    %v1683 = vadd.f32 %v1514, %v1682
    %1684 = vmatmul.bf16.gmra.mxu0 %v862
    %v1685 = vpop.f32.mrf.mxu0
    %v1686 = vadd.f32 %v1517, %v1685
    %v1687 = vpop.f32.mrf.mxu0
    %v1688 = vadd.f32 %v1519, %v1687
    %1689 = vmatmul.bf16.gmra.mxu0 %v866
    %v1690 = vpop.f32.mrf.mxu0
    %v1691 = vadd.f32 %v1522, %v1690
    %v1692 = vpop.f32.mrf.mxu0
    %v1693 = vadd.f32 %v1524, %v1692
    %1694 = vdwg.mxu0
    %1695 = vmatpush.bf16.msra.mxu0 %v1155
    %1696 = vmatpush.bf16.msra.mxu0 %v1154
    %1697 = vmatpush.bf16.msra.mxu0 %v1153
    %1698 = vmatpush.bf16.msra.mxu0 %v1152
    %1699 = vmatpush.bf16.msra.mxu0 %v1151
    %1700 = vmatpush.bf16.msra.mxu0 %v1150
    %1701 = vmatpush.bf16.msra.mxu0 %v1149
    %1702 = vmatpush.bf16.msra.mxu0 %v1148
    %1703 = vmatmul.bf16.gmra.mxu0 %v743
    %v1704 = vpop.f32.mrf.mxu0
    %v1705 = vadd.f32 %v1536, %v1704
    %v1706 = vpop.f32.mrf.mxu0
    %v1707 = vadd.f32 %v1538, %v1706
    %1708 = vmatmul.bf16.gmra.mxu0 %v747
    %v1709 = vpop.f32.mrf.mxu0
    %v1710 = vadd.f32 %v1541, %v1709
    %v1711 = vpop.f32.mrf.mxu0
    %v1712 = vadd.f32 %v1543, %v1711
    %1713 = vmatmul.bf16.gmra.mxu0 %v751
    %v1714 = vpop.f32.mrf.mxu0
    %v1715 = vadd.f32 %v1546, %v1714
    %v1716 = vpop.f32.mrf.mxu0
    %v1717 = vadd.f32 %v1548, %v1716
    %1718 = vmatmul.bf16.gmra.mxu0 %v755
    %v1719 = vpop.f32.mrf.mxu0
    %v1720 = vadd.f32 %v1551, %v1719
    %v1721 = vpop.f32.mrf.mxu0
    %v1722 = vadd.f32 %v1553, %v1721
    %1723 = vmatmul.bf16.gmra.mxu0 %v759
    %v1724 = vpop.f32.mrf.mxu0
    %v1725 = vadd.f32 %v1556, %v1724
    %v1726 = vpop.f32.mrf.mxu0
    %v1727 = vadd.f32 %v1558, %v1726
    %1728 = vmatmul.bf16.gmra.mxu0 %v763
    %v1729 = vpop.f32.mrf.mxu0
    %v1730 = vadd.f32 %v1561, %v1729
    %v1731 = vpop.f32.mrf.mxu0
    %v1732 = vadd.f32 %v1563, %v1731
    %1733 = vmatmul.bf16.gmra.mxu0 %v767
    %v1734 = vpop.f32.mrf.mxu0
    %v1735 = vadd.f32 %v1566, %v1734
    %v1736 = vpop.f32.mrf.mxu0
    %v1737 = vadd.f32 %v1568, %v1736
    %1738 = vmatmul.bf16.gmra.mxu0 %v771
    %v1739 = vpop.f32.mrf.mxu0
    %v1740 = vadd.f32 %v1571, %v1739
    %v1741 = vpop.f32.mrf.mxu0
    %v1742 = vadd.f32 %v1573, %v1741
    %1743 = vmatmul.bf16.gmra.mxu0 %v775
    %v1744 = vpop.f32.mrf.mxu0
    %v1745 = vadd.f32 %v1576, %v1744
    %v1746 = vpop.f32.mrf.mxu0
    %v1747 = vadd.f32 %v1578, %v1746
    %1748 = vmatmul.bf16.gmra.mxu0 %v779
    %v1749 = vpop.f32.mrf.mxu0
    %v1750 = vadd.f32 %v1581, %v1749
    %v1751 = vpop.f32.mrf.mxu0
    %v1752 = vadd.f32 %v1583, %v1751
    %1753 = vmatmul.bf16.gmra.mxu0 %v783
    %v1754 = vpop.f32.mrf.mxu0
    %v1755 = vadd.f32 %v1586, %v1754
    %v1756 = vpop.f32.mrf.mxu0
    %v1757 = vadd.f32 %v1588, %v1756
    %1758 = vmatmul.bf16.gmra.mxu0 %v787
    %v1759 = vpop.f32.mrf.mxu0
    %v1760 = vadd.f32 %v1591, %v1759
    %v1761 = vpop.f32.mrf.mxu0
    %v1762 = vadd.f32 %v1593, %v1761
    %1763 = vmatmul.bf16.gmra.mxu0 %v791
    %v1764 = vpop.f32.mrf.mxu0
    %v1765 = vadd.f32 %v1596, %v1764
    %v1766 = vpop.f32.mrf.mxu0
    %v1767 = vadd.f32 %v1598, %v1766
    %1768 = vmatmul.bf16.gmra.mxu0 %v795
    %v1769 = vpop.f32.mrf.mxu0
    %v1770 = vadd.f32 %v1601, %v1769
    %v1771 = vpop.f32.mrf.mxu0
    %v1772 = vadd.f32 %v1603, %v1771
    %1773 = vmatmul.bf16.gmra.mxu0 %v799
    %v1774 = vpop.f32.mrf.mxu0
    %v1775 = vadd.f32 %v1606, %v1774
    %v1776 = vpop.f32.mrf.mxu0
    %v1777 = vadd.f32 %v1608, %v1776
    %1778 = vmatmul.bf16.gmra.mxu0 %v803
    %v1779 = vpop.f32.mrf.mxu0
    %v1780 = vadd.f32 %v1611, %v1779
    %v1781 = vpop.f32.mrf.mxu0
    %v1782 = vadd.f32 %v1613, %v1781
    %1783 = vmatmul.bf16.gmra.mxu0 %v807
    %v1784 = vpop.f32.mrf.mxu0
    %v1785 = vadd.f32 %v1616, %v1784
    %v1786 = vpop.f32.mrf.mxu0
    %v1787 = vadd.f32 %v1618, %v1786
    %1788 = vmatmul.bf16.gmra.mxu0 %v811
    %v1789 = vpop.f32.mrf.mxu0
    %v1790 = vadd.f32 %v1621, %v1789
    %v1791 = vpop.f32.mrf.mxu0
    %v1792 = vadd.f32 %v1623, %v1791
    %1793 = vmatmul.bf16.gmra.mxu0 %v815
    %v1794 = vpop.f32.mrf.mxu0
    %v1795 = vadd.f32 %v1626, %v1794
    %v1796 = vpop.f32.mrf.mxu0
    %v1797 = vadd.f32 %v1628, %v1796
    %1798 = vmatmul.bf16.gmra.mxu0 %v819
    %v1799 = vpop.f32.mrf.mxu0
    %v1800 = vadd.f32 %v1631, %v1799
    %v1801 = vpop.f32.mrf.mxu0
    %v1802 = vadd.f32 %v1633, %v1801
    %1803 = vmatmul.bf16.gmra.mxu0 %v823
    %v1804 = vpop.f32.mrf.mxu0
    %v1805 = vadd.f32 %v1636, %v1804
    %v1806 = vpop.f32.mrf.mxu0
    %v1807 = vadd.f32 %v1638, %v1806
    %1808 = vmatmul.bf16.gmra.mxu0 %v827
    %v1809 = vpop.f32.mrf.mxu0
    %v1810 = vadd.f32 %v1641, %v1809
    %v1811 = vpop.f32.mrf.mxu0
    %v1812 = vadd.f32 %v1643, %v1811
    %1813 = vmatmul.bf16.gmra.mxu0 %v831
    %v1814 = vpop.f32.mrf.mxu0
    %v1815 = vadd.f32 %v1646, %v1814
    %v1816 = vpop.f32.mrf.mxu0
    %v1817 = vadd.f32 %v1648, %v1816
    %1818 = vmatmul.bf16.gmra.mxu0 %v835
    %v1819 = vpop.f32.mrf.mxu0
    %v1820 = vadd.f32 %v1651, %v1819
    %v1821 = vpop.f32.mrf.mxu0
    %v1822 = vadd.f32 %v1653, %v1821
    %1823 = vmatmul.bf16.gmra.mxu0 %v839
    %v1824 = vpop.f32.mrf.mxu0
    %v1825 = vadd.f32 %v1656, %v1824
    %v1826 = vpop.f32.mrf.mxu0
    %v1827 = vadd.f32 %v1658, %v1826
    %1828 = vmatmul.bf16.gmra.mxu0 %v843
    %v1829 = vpop.f32.mrf.mxu0
    %v1830 = vadd.f32 %v1661, %v1829
    %v1831 = vpop.f32.mrf.mxu0
    %v1832 = vadd.f32 %v1663, %v1831
    %1833 = vmatmul.bf16.gmra.mxu0 %v847
    %v1834 = vpop.f32.mrf.mxu0
    %v1835 = vadd.f32 %v1666, %v1834
    %v1836 = vpop.f32.mrf.mxu0
    %v1837 = vadd.f32 %v1668, %v1836
    %1838 = vmatmul.bf16.gmra.mxu0 %v851
    %v1839 = vpop.f32.mrf.mxu0
    %v1840 = vadd.f32 %v1671, %v1839
    %v1841 = vpop.f32.mrf.mxu0
    %v1842 = vadd.f32 %v1673, %v1841
    %1843 = vmatmul.bf16.gmra.mxu0 %v855
    %v1844 = vpop.f32.mrf.mxu0
    %v1845 = vadd.f32 %v1676, %v1844
    %v1846 = vpop.f32.mrf.mxu0
    %v1847 = vadd.f32 %v1678, %v1846
    %1848 = vmatmul.bf16.gmra.mxu0 %v859
    %v1849 = vpop.f32.mrf.mxu0
    %v1850 = vadd.f32 %v1681, %v1849
    %v1851 = vpop.f32.mrf.mxu0
    %v1852 = vadd.f32 %v1683, %v1851
    %1853 = vmatmul.bf16.gmra.mxu0 %v863
    %v1854 = vpop.f32.mrf.mxu0
    %v1855 = vadd.f32 %v1686, %v1854
    %v1856 = vpop.f32.mrf.mxu0
    %v1857 = vadd.f32 %v1688, %v1856
    %1858 = vmatmul.bf16.gmra.mxu0 %v867
    %v1859 = vpop.f32.mrf.mxu0
    %v1860 = vadd.f32 %v1691, %v1859
    %v1861 = vpop.f32.mrf.mxu0
    %v1862 = vadd.f32 %v1693, %v1861
    %1863 = vdwg.mxu0
    %v1864 = vadd.f32 %v96, %v1705
    %v1865 = vadd.f32 %v97, %v1707
    %v1866 = vadd.f32 %v98, %v1710
    %v1867 = vadd.f32 %v99, %v1712
    %v1868 = vadd.f32 %v100, %v1715
    %v1869 = vadd.f32 %v101, %v1717
    %v1870 = vadd.f32 %v102, %v1720
    %v1871 = vadd.f32 %v103, %v1722
    %v1872 = vadd.f32 %v104, %v1725
    %v1873 = vadd.f32 %v105, %v1727
    %v1874 = vadd.f32 %v106, %v1730
    %v1875 = vadd.f32 %v107, %v1732
    %v1876 = vadd.f32 %v108, %v1735
    %v1877 = vadd.f32 %v109, %v1737
    %v1878 = vadd.f32 %v110, %v1740
    %v1879 = vadd.f32 %v111, %v1742
    %v1880 = vadd.f32 %v112, %v1745
    %v1881 = vadd.f32 %v113, %v1747
    %v1882 = vadd.f32 %v114, %v1750
    %v1883 = vadd.f32 %v115, %v1752
    %v1884 = vadd.f32 %v116, %v1755
    %v1885 = vadd.f32 %v117, %v1757
    %v1886 = vadd.f32 %v118, %v1760
    %v1887 = vadd.f32 %v119, %v1762
    %v1888 = vadd.f32 %v120, %v1765
    %v1889 = vadd.f32 %v121, %v1767
    %v1890 = vadd.f32 %v122, %v1770
    %v1891 = vadd.f32 %v123, %v1772
    %v1892 = vadd.f32 %v124, %v1775
    %v1893 = vadd.f32 %v125, %v1777
    %v1894 = vadd.f32 %v126, %v1780
    %v1895 = vadd.f32 %v127, %v1782
    %v1896 = vadd.f32 %v128, %v1785
    %v1897 = vadd.f32 %v129, %v1787
    %v1898 = vadd.f32 %v130, %v1790
    %v1899 = vadd.f32 %v131, %v1792
    %v1900 = vadd.f32 %v132, %v1795
    %v1901 = vadd.f32 %v133, %v1797
    %v1902 = vadd.f32 %v134, %v1800
    %v1903 = vadd.f32 %v135, %v1802
    %v1904 = vadd.f32 %v136, %v1805
    %v1905 = vadd.f32 %v137, %v1807
    %v1906 = vadd.f32 %v138, %v1810
    %v1907 = vadd.f32 %v139, %v1812
    %v1908 = vadd.f32 %v140, %v1815
    %v1909 = vadd.f32 %v141, %v1817
    %v1910 = vadd.f32 %v142, %v1820
    %v1911 = vadd.f32 %v143, %v1822
    %v1912 = vadd.f32 %v144, %v1825
    %v1913 = vadd.f32 %v145, %v1827
    %v1914 = vadd.f32 %v146, %v1830
    %v1915 = vadd.f32 %v147, %v1832
    %v1916 = vadd.f32 %v148, %v1835
    %v1917 = vadd.f32 %v149, %v1837
    %v1918 = vadd.f32 %v150, %v1840
    %v1919 = vadd.f32 %v151, %v1842
    %v1920 = vadd.f32 %v152, %v1845
    %v1921 = vadd.f32 %v153, %v1847
    %v1922 = vadd.f32 %v154, %v1850
    %v1923 = vadd.f32 %v155, %v1852
    %v1924 = vadd.f32 %v156, %v1855
    %v1925 = vadd.f32 %v157, %v1857
    %v1926 = vadd.f32 %v158, %v1860
    %v1927 = vadd.f32 %v159, %v1862
    %1928 = vst [vmem:[#allocation2] sm:$0xff] %v1864
    %1929 = vst [vmem:[#allocation2 + $0x8] sm:$0xff] %v1865
    %1930 = vst [vmem:[#allocation2 + $0x10] sm:$0xff] %v1866
    %1931 = vst [vmem:[#allocation2 + $0x18] sm:$0xff] %v1867
    %1932 = vst [vmem:[#allocation2 + $0x20] sm:$0xff] %v1868
    %1933 = vst [vmem:[#allocation2 + $0x28] sm:$0xff] %v1869
    %1934 = vst [vmem:[#allocation2 + $0x30] sm:$0xff] %v1870
    %1935 = vst [vmem:[#allocation2 + $0x38] sm:$0xff] %v1871
    %1936 = vst [vmem:[#allocation2 + $0x40] sm:$0xff] %v1872
    %1937 = vst [vmem:[#allocation2 + $0x48] sm:$0xff] %v1873
    %1938 = vst [vmem:[#allocation2 + $0x50] sm:$0xff] %v1874
    %1939 = vst [vmem:[#allocation2 + $0x58] sm:$0xff] %v1875
    %1940 = vst [vmem:[#allocation2 + $0x60] sm:$0xff] %v1876
    %1941 = vst [vmem:[#allocation2 + $0x68] sm:$0xff] %v1877
    %1942 = vst [vmem:[#allocation2 + $0x70] sm:$0xff] %v1878
    %1943 = vst [vmem:[#allocation2 + $0x78] sm:$0xff] %v1879
    %1944 = vst [vmem:[#allocation2 + $0x80] sm:$0xff] %v1880
    %1945 = vst [vmem:[#allocation2 + $0x88] sm:$0xff] %v1881
    %1946 = vst [vmem:[#allocation2 + $0x90] sm:$0xff] %v1882
    %1947 = vst [vmem:[#allocation2 + $0x98] sm:$0xff] %v1883
    %1948 = vst [vmem:[#allocation2 + $0xa0] sm:$0xff] %v1884
    %1949 = vst [vmem:[#allocation2 + $0xa8] sm:$0xff] %v1885
    %1950 = vst [vmem:[#allocation2 + $0xb0] sm:$0xff] %v1886
    %1951 = vst [vmem:[#allocation2 + $0xb8] sm:$0xff] %v1887
    %1952 = vst [vmem:[#allocation2 + $0xc0] sm:$0xff] %v1888
    %1953 = vst [vmem:[#allocation2 + $0xc8] sm:$0xff] %v1889
    %1954 = vst [vmem:[#allocation2 + $0xd0] sm:$0xff] %v1890
    %1955 = vst [vmem:[#allocation2 + $0xd8] sm:$0xff] %v1891
    %1956 = vst [vmem:[#allocation2 + $0xe0] sm:$0xff] %v1892
    %1957 = vst [vmem:[#allocation2 + $0xe8] sm:$0xff] %v1893
    %1958 = vst [vmem:[#allocation2 + $0xf0] sm:$0xff] %v1894
    %1959 = vst [vmem:[#allocation2 + $0xf8] sm:$0xff] %v1895
    %1960 = vst [vmem:[#allocation2 + $0x100] sm:$0xff] %v1896
    %1961 = vst [vmem:[#allocation2 + $0x108] sm:$0xff] %v1897
    %1962 = vst [vmem:[#allocation2 + $0x110] sm:$0xff] %v1898
    %1963 = vst [vmem:[#allocation2 + $0x118] sm:$0xff] %v1899
    %1964 = vst [vmem:[#allocation2 + $0x120] sm:$0xff] %v1900
    %1965 = vst [vmem:[#allocation2 + $0x128] sm:$0xff] %v1901
    %1966 = vst [vmem:[#allocation2 + $0x130] sm:$0xff] %v1902
    %1967 = vst [vmem:[#allocation2 + $0x138] sm:$0xff] %v1903
    %1968 = vst [vmem:[#allocation2 + $0x140] sm:$0xff] %v1904
    %1969 = vst [vmem:[#allocation2 + $0x148] sm:$0xff] %v1905
    %1970 = vst [vmem:[#allocation2 + $0x150] sm:$0xff] %v1906
    %1971 = vst [vmem:[#allocation2 + $0x158] sm:$0xff] %v1907
    %1972 = vst [vmem:[#allocation2 + $0x160] sm:$0xff] %v1908
    %1973 = vst [vmem:[#allocation2 + $0x168] sm:$0xff] %v1909
    %1974 = vst [vmem:[#allocation2 + $0x170] sm:$0xff] %v1910
    %1975 = vst [vmem:[#allocation2 + $0x178] sm:$0xff] %v1911
    %1976 = vst [vmem:[#allocation2 + $0x180] sm:$0xff] %v1912
    %1977 = vst [vmem:[#allocation2 + $0x188] sm:$0xff] %v1913
    %1978 = vst [vmem:[#allocation2 + $0x190] sm:$0xff] %v1914
    %1979 = vst [vmem:[#allocation2 + $0x198] sm:$0xff] %v1915
    %1980 = vst [vmem:[#allocation2 + $0x1a0] sm:$0xff] %v1916
    %1981 = vst [vmem:[#allocation2 + $0x1a8] sm:$0xff] %v1917
    %1982 = vst [vmem:[#allocation2 + $0x1b0] sm:$0xff] %v1918
    %1983 = vst [vmem:[#allocation2 + $0x1b8] sm:$0xff] %v1919
    %1984 = vst [vmem:[#allocation2 + $0x1c0] sm:$0xff] %v1920
    %1985 = vst [vmem:[#allocation2 + $0x1c8] sm:$0xff] %v1921
    %1986 = vst [vmem:[#allocation2 + $0x1d0] sm:$0xff] %v1922
    %1987 = vst [vmem:[#allocation2 + $0x1d8] sm:$0xff] %v1923
    %1988 = vst [vmem:[#allocation2 + $0x1e0] sm:$0xff] %v1924
    %1989 = vst [vmem:[#allocation2 + $0x1e8] sm:$0xff] %v1925
    %1990 = vst [vmem:[#allocation2 + $0x1f0] sm:$0xff] %v1926
    %1991 = vst [vmem:[#allocation2 + $0x1f8] sm:$0xff] %v1927
    // Predicated region
    $region18: #{gcn_forward_padded.5} parent=1 // pred_check
      %p1992 = pneg %p27
    $region19: #{gcn_forward_padded.5} parent=1 // pred_check_branch
      %1994 = sbr.rel (%p1992) target = $region21
    $region20: #{gcn_forward_padded.5} parent=1 // pred_region
      %v1995 = vld [vmem:[#allocation2] sm:$0xff]
      %v1996 = vld [vmem:[#allocation2 + $0x8] sm:$0xff]
      %v1997 = vld [vmem:[#allocation2 + $0x10] sm:$0xff]
      %v1998 = vld [vmem:[#allocation2 + $0x18] sm:$0xff]
      %v1999 = vld [vmem:[#allocation2 + $0x20] sm:$0xff]
      %v2000 = vld [vmem:[#allocation2 + $0x28] sm:$0xff]
      %v2001 = vld [vmem:[#allocation2 + $0x30] sm:$0xff]
      %v2002 = vld [vmem:[#allocation2 + $0x38] sm:$0xff]
      %v2003 = vld [vmem:[#allocation2 + $0x40] sm:$0xff]
      %v2004 = vld [vmem:[#allocation2 + $0x48] sm:$0xff]
      %v2005 = vld [vmem:[#allocation2 + $0x50] sm:$0xff]
      %v2006 = vld [vmem:[#allocation2 + $0x58] sm:$0xff]
      %v2007 = vld [vmem:[#allocation2 + $0x60] sm:$0xff]
      %v2008 = vld [vmem:[#allocation2 + $0x68] sm:$0xff]
      %v2009 = vld [vmem:[#allocation2 + $0x70] sm:$0xff]
      %v2010 = vld [vmem:[#allocation2 + $0x78] sm:$0xff]
      %v2011 = vld [vmem:[#allocation2 + $0x80] sm:$0xff]
      %v2012 = vld [vmem:[#allocation2 + $0x88] sm:$0xff]
      %v2013 = vld [vmem:[#allocation2 + $0x90] sm:$0xff]
      %v2014 = vld [vmem:[#allocation2 + $0x98] sm:$0xff]
      %v2015 = vld [vmem:[#allocation2 + $0xa0] sm:$0xff]
      %v2016 = vld [vmem:[#allocation2 + $0xa8] sm:$0xff]
      %v2017 = vld [vmem:[#allocation2 + $0xb0] sm:$0xff]
      %v2018 = vld [vmem:[#allocation2 + $0xb8] sm:$0xff]
      %v2019 = vld [vmem:[#allocation2 + $0xc0] sm:$0xff]
      %v2020 = vld [vmem:[#allocation2 + $0xc8] sm:$0xff]
      %v2021 = vld [vmem:[#allocation2 + $0xd0] sm:$0xff]
      %v2022 = vld [vmem:[#allocation2 + $0xd8] sm:$0xff]
      %v2023 = vld [vmem:[#allocation2 + $0xe0] sm:$0xff]
      %v2024 = vld [vmem:[#allocation2 + $0xe8] sm:$0xff]
      %v2025 = vld [vmem:[#allocation2 + $0xf0] sm:$0xff]
      %v2026 = vld [vmem:[#allocation2 + $0xf8] sm:$0xff]
      %v2027 = vld [vmem:[#allocation2 + $0x100] sm:$0xff]
      %v2028 = vld [vmem:[#allocation2 + $0x108] sm:$0xff]
      %v2029 = vld [vmem:[#allocation2 + $0x110] sm:$0xff]
      %v2030 = vld [vmem:[#allocation2 + $0x118] sm:$0xff]
      %v2031 = vld [vmem:[#allocation2 + $0x120] sm:$0xff]
      %v2032 = vld [vmem:[#allocation2 + $0x128] sm:$0xff]
      %v2033 = vld [vmem:[#allocation2 + $0x130] sm:$0xff]
      %v2034 = vld [vmem:[#allocation2 + $0x138] sm:$0xff]
      %v2035 = vld [vmem:[#allocation2 + $0x140] sm:$0xff]
      %v2036 = vld [vmem:[#allocation2 + $0x148] sm:$0xff]
      %v2037 = vld [vmem:[#allocation2 + $0x150] sm:$0xff]
      %v2038 = vld [vmem:[#allocation2 + $0x158] sm:$0xff]
      %v2039 = vld [vmem:[#allocation2 + $0x160] sm:$0xff]
      %v2040 = vld [vmem:[#allocation2 + $0x168] sm:$0xff]
      %v2041 = vld [vmem:[#allocation2 + $0x170] sm:$0xff]
      %v2042 = vld [vmem:[#allocation2 + $0x178] sm:$0xff]
      %v2043 = vld [vmem:[#allocation2 + $0x180] sm:$0xff]
      %v2044 = vld [vmem:[#allocation2 + $0x188] sm:$0xff]
      %v2045 = vld [vmem:[#allocation2 + $0x190] sm:$0xff]
      %v2046 = vld [vmem:[#allocation2 + $0x198] sm:$0xff]
      %v2047 = vld [vmem:[#allocation2 + $0x1a0] sm:$0xff]
      %v2048 = vld [vmem:[#allocation2 + $0x1a8] sm:$0xff]
      %v2049 = vld [vmem:[#allocation2 + $0x1b0] sm:$0xff]
      %v2050 = vld [vmem:[#allocation2 + $0x1b8] sm:$0xff]
      %v2051 = vld [vmem:[#allocation2 + $0x1c0] sm:$0xff]
      %v2052 = vld [vmem:[#allocation2 + $0x1c8] sm:$0xff]
      %v2053 = vld [vmem:[#allocation2 + $0x1d0] sm:$0xff]
      %v2054 = vld [vmem:[#allocation2 + $0x1d8] sm:$0xff]
      %v2055 = vld [vmem:[#allocation2 + $0x1e0] sm:$0xff]
      %v2056 = vld [vmem:[#allocation2 + $0x1e8] sm:$0xff]
      %v2057 = vld [vmem:[#allocation2 + $0x1f0] sm:$0xff]
      %v2058 = vld [vmem:[#allocation2 + $0x1f8] sm:$0xff]
      %v2059 = vmax.f32 %v1995, 0.0
      %v2060 = vmax.f32 %v1996, 0.0
      %v2061 = vmax.f32 %v1997, 0.0
      %v2062 = vmax.f32 %v1998, 0.0
      %v2063 = vmax.f32 %v1999, 0.0
      %v2064 = vmax.f32 %v2000, 0.0
      %v2065 = vmax.f32 %v2001, 0.0
      %v2066 = vmax.f32 %v2002, 0.0
      %v2067 = vmax.f32 %v2003, 0.0
      %v2068 = vmax.f32 %v2004, 0.0
      %v2069 = vmax.f32 %v2005, 0.0
      %v2070 = vmax.f32 %v2006, 0.0
      %v2071 = vmax.f32 %v2007, 0.0
      %v2072 = vmax.f32 %v2008, 0.0
      %v2073 = vmax.f32 %v2009, 0.0
      %v2074 = vmax.f32 %v2010, 0.0
      %v2075 = vmax.f32 %v2011, 0.0
      %v2076 = vmax.f32 %v2012, 0.0
      %v2077 = vmax.f32 %v2013, 0.0
      %v2078 = vmax.f32 %v2014, 0.0
      %v2079 = vmax.f32 %v2015, 0.0
      %v2080 = vmax.f32 %v2016, 0.0
      %v2081 = vmax.f32 %v2017, 0.0
      %v2082 = vmax.f32 %v2018, 0.0
      %v2083 = vmax.f32 %v2019, 0.0
      %v2084 = vmax.f32 %v2020, 0.0
      %v2085 = vmax.f32 %v2021, 0.0
      %v2086 = vmax.f32 %v2022, 0.0
      %v2087 = vmax.f32 %v2023, 0.0
      %v2088 = vmax.f32 %v2024, 0.0
      %v2089 = vmax.f32 %v2025, 0.0
      %v2090 = vmax.f32 %v2026, 0.0
      %v2091 = vmax.f32 %v2027, 0.0
      %v2092 = vmax.f32 %v2028, 0.0
      %v2093 = vmax.f32 %v2029, 0.0
      %v2094 = vmax.f32 %v2030, 0.0
      %v2095 = vmax.f32 %v2031, 0.0
      %v2096 = vmax.f32 %v2032, 0.0
      %v2097 = vmax.f32 %v2033, 0.0
      %v2098 = vmax.f32 %v2034, 0.0
      %v2099 = vmax.f32 %v2035, 0.0
      %v2100 = vmax.f32 %v2036, 0.0
      %v2101 = vmax.f32 %v2037, 0.0
      %v2102 = vmax.f32 %v2038, 0.0
      %v2103 = vmax.f32 %v2039, 0.0
      %v2104 = vmax.f32 %v2040, 0.0
      %v2105 = vmax.f32 %v2041, 0.0
      %v2106 = vmax.f32 %v2042, 0.0
      %v2107 = vmax.f32 %v2043, 0.0
      %v2108 = vmax.f32 %v2044, 0.0
      %v2109 = vmax.f32 %v2045, 0.0
      %v2110 = vmax.f32 %v2046, 0.0
      %v2111 = vmax.f32 %v2047, 0.0
      %v2112 = vmax.f32 %v2048, 0.0
      %v2113 = vmax.f32 %v2049, 0.0
      %v2114 = vmax.f32 %v2050, 0.0
      %v2115 = vmax.f32 %v2051, 0.0
      %v2116 = vmax.f32 %v2052, 0.0
      %v2117 = vmax.f32 %v2053, 0.0
      %v2118 = vmax.f32 %v2054, 0.0
      %v2119 = vmax.f32 %v2055, 0.0
      %v2120 = vmax.f32 %v2056, 0.0
      %v2121 = vmax.f32 %v2057, 0.0
      %v2122 = vmax.f32 %v2058, 0.0
      %v2123 = vpack.c.bf16 %v2059, %v2059
      %v2124 = vpack.c.bf16 %v2060, %v2060
      %v2125 = vpack.c.bf16 %v2061, %v2061
      %v2126 = vpack.c.bf16 %v2062, %v2062
      %v2127 = vpack.c.bf16 %v2063, %v2063
      %v2128 = vpack.c.bf16 %v2064, %v2064
      %v2129 = vpack.c.bf16 %v2065, %v2065
      %v2130 = vpack.c.bf16 %v2066, %v2066
      %v2131 = vpack.c.bf16 %v2067, %v2067
      %v2132 = vpack.c.bf16 %v2068, %v2068
      %v2133 = vpack.c.bf16 %v2069, %v2069
      %v2134 = vpack.c.bf16 %v2070, %v2070
      %v2135 = vpack.c.bf16 %v2071, %v2071
      %v2136 = vpack.c.bf16 %v2072, %v2072
      %v2137 = vpack.c.bf16 %v2073, %v2073
      %v2138 = vpack.c.bf16 %v2074, %v2074
      %v2139 = vpack.c.bf16 %v2075, %v2075
      %v2140 = vpack.c.bf16 %v2076, %v2076
      %v2141 = vpack.c.bf16 %v2077, %v2077
      %v2142 = vpack.c.bf16 %v2078, %v2078
      %v2143 = vpack.c.bf16 %v2079, %v2079
      %v2144 = vpack.c.bf16 %v2080, %v2080
      %v2145 = vpack.c.bf16 %v2081, %v2081
      %v2146 = vpack.c.bf16 %v2082, %v2082
      %v2147 = vpack.c.bf16 %v2083, %v2083
      %v2148 = vpack.c.bf16 %v2084, %v2084
      %v2149 = vpack.c.bf16 %v2085, %v2085
      %v2150 = vpack.c.bf16 %v2086, %v2086
      %v2151 = vpack.c.bf16 %v2087, %v2087
      %v2152 = vpack.c.bf16 %v2088, %v2088
      %v2153 = vpack.c.bf16 %v2089, %v2089
      %v2154 = vpack.c.bf16 %v2090, %v2090
      %v2155 = vpack.c.bf16 %v2091, %v2091
      %v2156 = vpack.c.bf16 %v2092, %v2092
      %v2157 = vpack.c.bf16 %v2093, %v2093
      %v2158 = vpack.c.bf16 %v2094, %v2094
      %v2159 = vpack.c.bf16 %v2095, %v2095
      %v2160 = vpack.c.bf16 %v2096, %v2096
      %v2161 = vpack.c.bf16 %v2097, %v2097
      %v2162 = vpack.c.bf16 %v2098, %v2098
      %v2163 = vpack.c.bf16 %v2099, %v2099
      %v2164 = vpack.c.bf16 %v2100, %v2100
      %v2165 = vpack.c.bf16 %v2101, %v2101
      %v2166 = vpack.c.bf16 %v2102, %v2102
      %v2167 = vpack.c.bf16 %v2103, %v2103
      %v2168 = vpack.c.bf16 %v2104, %v2104
      %v2169 = vpack.c.bf16 %v2105, %v2105
      %v2170 = vpack.c.bf16 %v2106, %v2106
      %v2171 = vpack.c.bf16 %v2107, %v2107
      %v2172 = vpack.c.bf16 %v2108, %v2108
      %v2173 = vpack.c.bf16 %v2109, %v2109
      %v2174 = vpack.c.bf16 %v2110, %v2110
      %v2175 = vpack.c.bf16 %v2111, %v2111
      %v2176 = vpack.c.bf16 %v2112, %v2112
      %v2177 = vpack.c.bf16 %v2113, %v2113
      %v2178 = vpack.c.bf16 %v2114, %v2114
      %v2179 = vpack.c.bf16 %v2115, %v2115
      %v2180 = vpack.c.bf16 %v2116, %v2116
      %v2181 = vpack.c.bf16 %v2117, %v2117
      %v2182 = vpack.c.bf16 %v2118, %v2118
      %v2183 = vpack.c.bf16 %v2119, %v2119
      %v2184 = vpack.c.bf16 %v2120, %v2120
      %v2185 = vpack.c.bf16 %v2121, %v2121
      %v2186 = vpack.c.bf16 %v2122, %v2122
      %2187 = vst [vmem:[%s2] sm:$0xf] %v2123
      %2188 = vst [vmem:[%s2 + $0x4] sm:$0xf] %v2124
      %2189 = vst [vmem:[%s2 + $0x8] sm:$0xf] %v2125
      %2190 = vst [vmem:[%s2 + $0xc] sm:$0xf] %v2126
      %2191 = vst [vmem:[%s2 + $0x10] sm:$0xf] %v2127
      %2192 = vst [vmem:[%s2 + $0x14] sm:$0xf] %v2128
      %2193 = vst [vmem:[%s2 + $0x18] sm:$0xf] %v2129
      %2194 = vst [vmem:[%s2 + $0x1c] sm:$0xf] %v2130
      %2195 = vst [vmem:[%s2 + $0x20] sm:$0xf] %v2131
      %2196 = vst [vmem:[%s2 + $0x24] sm:$0xf] %v2132
      %2197 = vst [vmem:[%s2 + $0x28] sm:$0xf] %v2133
      %2198 = vst [vmem:[%s2 + $0x2c] sm:$0xf] %v2134
      %2199 = vst [vmem:[%s2 + $0x30] sm:$0xf] %v2135
      %2200 = vst [vmem:[%s2 + $0x34] sm:$0xf] %v2136
      %2201 = vst [vmem:[%s2 + $0x38] sm:$0xf] %v2137
      %2202 = vst [vmem:[%s2 + $0x3c] sm:$0xf] %v2138
      %2203 = vst [vmem:[%s2 + $0x40] sm:$0xf] %v2139
      %2204 = vst [vmem:[%s2 + $0x44] sm:$0xf] %v2140
      %2205 = vst [vmem:[%s2 + $0x48] sm:$0xf] %v2141
      %2206 = vst [vmem:[%s2 + $0x4c] sm:$0xf] %v2142
      %2207 = vst [vmem:[%s2 + $0x50] sm:$0xf] %v2143
      %2208 = vst [vmem:[%s2 + $0x54] sm:$0xf] %v2144
      %2209 = vst [vmem:[%s2 + $0x58] sm:$0xf] %v2145
      %2210 = vst [vmem:[%s2 + $0x5c] sm:$0xf] %v2146
      %2211 = vst [vmem:[%s2 + $0x60] sm:$0xf] %v2147
      %2212 = vst [vmem:[%s2 + $0x64] sm:$0xf] %v2148
      %2213 = vst [vmem:[%s2 + $0x68] sm:$0xf] %v2149
      %2214 = vst [vmem:[%s2 + $0x6c] sm:$0xf] %v2150
      %2215 = vst [vmem:[%s2 + $0x70] sm:$0xf] %v2151
      %2216 = vst [vmem:[%s2 + $0x74] sm:$0xf] %v2152
      %2217 = vst [vmem:[%s2 + $0x78] sm:$0xf] %v2153
      %2218 = vst [vmem:[%s2 + $0x7c] sm:$0xf] %v2154
      %2219 = vst [vmem:[%s2 + $0x80] sm:$0xf] %v2155
      %2220 = vst [vmem:[%s2 + $0x84] sm:$0xf] %v2156
      %2221 = vst [vmem:[%s2 + $0x88] sm:$0xf] %v2157
      %2222 = vst [vmem:[%s2 + $0x8c] sm:$0xf] %v2158
      %2223 = vst [vmem:[%s2 + $0x90] sm:$0xf] %v2159
      %2224 = vst [vmem:[%s2 + $0x94] sm:$0xf] %v2160
      %2225 = vst [vmem:[%s2 + $0x98] sm:$0xf] %v2161
      %2226 = vst [vmem:[%s2 + $0x9c] sm:$0xf] %v2162
      %2227 = vst [vmem:[%s2 + $0xa0] sm:$0xf] %v2163
      %2228 = vst [vmem:[%s2 + $0xa4] sm:$0xf] %v2164
      %2229 = vst [vmem:[%s2 + $0xa8] sm:$0xf] %v2165
      %2230 = vst [vmem:[%s2 + $0xac] sm:$0xf] %v2166
      %2231 = vst [vmem:[%s2 + $0xb0] sm:$0xf] %v2167
      %2232 = vst [vmem:[%s2 + $0xb4] sm:$0xf] %v2168
      %2233 = vst [vmem:[%s2 + $0xb8] sm:$0xf] %v2169
      %2234 = vst [vmem:[%s2 + $0xbc] sm:$0xf] %v2170
      %2235 = vst [vmem:[%s2 + $0xc0] sm:$0xf] %v2171
      %2236 = vst [vmem:[%s2 + $0xc4] sm:$0xf] %v2172
      %2237 = vst [vmem:[%s2 + $0xc8] sm:$0xf] %v2173
      %2238 = vst [vmem:[%s2 + $0xcc] sm:$0xf] %v2174
      %2239 = vst [vmem:[%s2 + $0xd0] sm:$0xf] %v2175
      %2240 = vst [vmem:[%s2 + $0xd4] sm:$0xf] %v2176
      %2241 = vst [vmem:[%s2 + $0xd8] sm:$0xf] %v2177
      %2242 = vst [vmem:[%s2 + $0xdc] sm:$0xf] %v2178
      %2243 = vst [vmem:[%s2 + $0xe0] sm:$0xf] %v2179
      %2244 = vst [vmem:[%s2 + $0xe4] sm:$0xf] %v2180
      %2245 = vst [vmem:[%s2 + $0xe8] sm:$0xf] %v2181
      %2246 = vst [vmem:[%s2 + $0xec] sm:$0xf] %v2182
      %2247 = vst [vmem:[%s2 + $0xf0] sm:$0xf] %v2183
      %2248 = vst [vmem:[%s2 + $0xf4] sm:$0xf] %v2184
      %2249 = vst [vmem:[%s2 + $0xf8] sm:$0xf] %v2185
      %2250 = vst [vmem:[%s2 + $0xfc] sm:$0xf] %v2186
    $region21: #{gcn_forward_padded.5} parent=1 // pred_fallthru
      _
    // Predicated region
    $region22: #{gcn_forward_padded.5} parent=1 // pred_check
      _
    $region23: #{gcn_forward_padded.5} parent=1 // pred_check_branch
      %2252 = sbr.rel (0) target = $region25
    $region24: #{gcn_forward_padded.5} parent=1 // pred_region
      _
    $region25: #{gcn_forward_padded.5} parent=1 // pred_fallthru
      _
    // Predicated region
    $region26: #{gcn_forward_padded.5} parent=1 // pred_check
      _
    $region27: #{gcn_forward_padded.5} parent=1 // pred_check_branch
      %2254 = sbr.rel (0) target = $region29
    $region28: #{gcn_forward_padded.5} parent=1 // pred_region
      _
    $region29: #{gcn_forward_padded.5} parent=1 // pred_fallthru
      _
    %2255 = vsyncpa [#allocation4], 1

</llo_original>
